<compile_context>
chip_gen: v6e
topology: v6e:2x2x1
jax: 0.10.0
libtpu: 0.0.40
codegen_flags: <defaults>
</compile_context>

<pallas_src>
import functools

import jax
import jax.numpy as jnp
import numpy as np
from jax.experimental import pallas as pl
from jax.experimental.pallas import tpu as pltpu


# Row indices inside the packed (8, D) vector bundle.
_BQ, _BK, _BV, _BO, _GAMMA, _BETA, _B2 = range(7)


def _encoder_layer_kernel(
    x_q_ref,      # (1, TQ, D) f32   query rows of x (residual / FFN rows for this tile)
    x_kv_ref,     # (1, S,  D) compute_dtype   full sequence (source of K / V)
    mask_ref,     # (1, 1,  S)       padding mask (1.0 at padded key positions)
    wq_ref, wk_ref, wv_ref, wo_ref,   # (D, D)       compute_dtype
    w1_ref,       # (D, HIDDEN)  compute_dtype
    w2_ref,       # (HIDDEN, D)  compute_dtype
    vecs_ref,     # (8, D) f32:  bq, bk, bv, bo, gamma, beta, b2, <pad>
    b1_ref,       # (1, HIDDEN) f32
    out_ref,      # (1, TQ, D)
    k_scr,        # (H, S, d_k) compute_dtype   per-batch K cache (persists across t)
    v_scr,        # (H, S, d_k) compute_dtype   per-batch V cache (persists across t)
    *, num_heads,
):
    f32 = jnp.float32
    cd = wq_ref.dtype                      # MXU input dtype (bf16 or f32)
    # Exact reciprocal in the f32 verification path; approx (EUP) in the fast path.
    approx = bool(np.dtype(cd) != np.dtype(np.float32))

    xq = x_q_ref[0].astype(f32)            # (TQ, D)
    # Hoisted once (not per head): additive mask bias, broadcasts over (H, TQ, S).
    neg_bias = mask_ref[0].astype(f32) * (-1e9)   # (1, S)

    TQ, D = xq.shape
    S = x_kv_ref.shape[1]
    H = num_heads
    d_k = D // H
    scale = float(1.0 / np.sqrt(d_k))

    vecs = vecs_ref[...].astype(f32)       # (8, D) packed bias/scale vectors
    bq, bk, bv, bo = (vecs[i:i + 1] for i in (_BQ, _BK, _BV, _BO))
    gamma, beta, b2 = (vecs[i:i + 1] for i in (_GAMMA, _BETA, _B2))
    b1 = b1_ref[...].astype(f32)           # (1, HIDDEN)

    def mm(a, w_ref):                      # bf16/f32 MXU inputs, f32 accumulation
        return jnp.dot(a.astype(cd), w_ref[...], preferred_element_type=f32)

    # --- K/V projection + head split: once per batch element (t == 0 only) ---
    # The scratch buffers persist across the sequential "arbitrary" t axis, so the
    # remaining (n_tiles - 1) query tiles reuse them for free.
    @pl.when(pl.program_id(1) == 0)
    def _():
        xkv = x_kv_ref[0]                                   # already compute_dtype
        k = jnp.dot(xkv, wk_ref[...], preferred_element_type=f32) + bk   # (S, D)
        v = jnp.dot(xkv, wv_ref[...], preferred_element_type=f32) + bv   # (S, D)
        k_scr[...] = jnp.transpose(k.reshape(S, H, d_k), (1, 0, 2)).astype(cd)
        v_scr[...] = jnp.transpose(v.reshape(S, H, d_k), (1, 0, 2)).astype(cd)

    # --- Q projection; 1/sqrt(d_k) folded here (TQ*D elems, not H*TQ*S) ---
    q = (mm(xq, wq_ref) + bq) * scale                       # (TQ, D)
    q3 = jnp.transpose(q.reshape(TQ, H, d_k), (1, 0, 2))    # (H, TQ, d_k)

    # --- batched multi-head attention (single dot_general over all heads) ---
    s = jnp.einsum("hqd,hkd->hqk", q3.astype(cd), k_scr[...],
                   preferred_element_type=f32)              # (H, TQ, S)
    s = s + neg_bias
    s = s - jnp.max(s, axis=-1, keepdims=True)              # stable softmax
    p = jnp.exp(s)
    denom = jnp.sum(p, axis=-1, keepdims=True)              # (H, TQ, 1)

    # Deferred normalization: PV on unnormalized p, scale the (H, TQ, d_k) output.
    o = jnp.einsum("hqk,hkd->hqd", p.astype(cd), v_scr[...],
                   preferred_element_type=f32)              # (H, TQ, d_k)
    o = o * pl.reciprocal(denom, approx=approx)
    att = jnp.transpose(o, (1, 0, 2)).reshape(TQ, D)        # heads merged

    att_out = mm(att, wo_ref) + bo                          # (TQ, D)

    def layer_norm(z):                     # f32 vector math; shared gamma/beta, as in
        mu = jnp.mean(z, axis=-1, keepdims=True)            # the PyTorch module (one
        c = z - mu                                          # LayerNorm used twice)
        var = jnp.mean(c * c, axis=-1, keepdims=True)
        return c * jax.lax.rsqrt(var + 1e-5) * gamma + beta

    # residual (dropout = identity, eval mode) + LayerNorm
    h1n = layer_norm(xq + att_out)

    # --- position-wise feed-forward ---
    # TODO(synk): for very large hidden, tile the FFN contraction (or quantize weights)
    #             so w1/w2 fit v7x's 64 MiB VMEM alongside a large seq_tile.
    ff = jnp.maximum(mm(h1n, w1_ref) + b1, 0.0)
    ff = mm(ff, w2_ref) + b2

    out_ref[0] = layer_norm(h1n + ff).astype(out_ref.dtype)


def _vmem_limit_bytes():
    """Generation-aware VMEM budget (~7/8 of physical: ~112 MiB v5e/v6e, 56 MiB v7x)."""
    try:
        cap = pltpu.get_tpu_info().vmem_capacity_bytes
    except Exception:
        cap = 64 * 1024 * 1024
    return int(cap) * 7 // 8


def _default_seq_tile(S):
    """Prefer 256-row tiles (fills a 256x256 MXU), fall back to smaller divisors."""
    for t in (256, 128, 64, 32, 16, 8):
        if S % t == 0:
            return t
    return S


def _const_spec(shape):
    """Constant-index operand: DMA'd once, single-buffered (index never changes)."""
    try:
        return pl.BlockSpec(shape, lambda b, t: (0, 0), pipeline_mode=pl.Buffered(1))
    except TypeError:  # older Pallas without pipeline_mode
        return pl.BlockSpec(shape, lambda b, t: (0, 0))


def encoder_layer(x, padding_mask, params, *, num_heads, seq_tile=None,
                  compute_dtype=jnp.bfloat16, out_dtype=None):
    """x: (B, S, D); padding_mask: (B, 1, S) with 1.0 at padded key positions."""
    B, S, D = x.shape
    hidden = params["w1"].shape[-1]
    d_k = D // num_heads
    if seq_tile is None:
        seq_tile = _default_seq_tile(S)
    assert S % seq_tile == 0, "seq_tile must divide S"
    n_tiles = S // seq_tile
    if out_dtype is None:
        out_dtype = x.dtype

    f32 = jnp.float32
    cd = compute_dtype
    # Weights are shipped to VMEM in the MXU input dtype (halves weight DMA/VMEM for bf16).
    wq, wk, wv, wo = (params[n].astype(cd) for n in ("wq", "wk", "wv", "wo"))
    w1, w2 = params["w1"].astype(cd), params["w2"].astype(cd)

    # Pack the seven D-length vectors into a single sublane-aligned (8, D) operand.
    vecs = jnp.concatenate(
        [params[n].astype(f32).reshape(1, D)
         for n in ("bq", "bk", "bv", "bo", "gamma", "beta", "b2")]
        + [jnp.zeros((1, D), f32)],
        axis=0)
    b1 = params["b1"].astype(f32).reshape(1, hidden)
    mask = padding_mask.astype(f32).reshape(B, 1, S)

    # K/V source copy of x is only consumed by MXU matmuls -> ship it in compute_dtype
    # (halves its HBM->VMEM DMA and VMEM footprint). Query/residual copy stays f32.
    x_kv = x.astype(cd)

    grid_spec = pltpu.PrefetchScalarGridSpec(
        num_scalar_prefetch=0,
        grid=(B, n_tiles),
        in_specs=[
            pl.BlockSpec((1, seq_tile, D), lambda b, t: (b, t, 0)),  # x (query tile)
            pl.BlockSpec((1, S, D), lambda b, t: (b, 0, 0)),         # x (full seq, K/V)
            pl.BlockSpec((1, 1, S), lambda b, t: (b, 0, 0)),         # padding mask
            _const_spec((D, D)), _const_spec((D, D)),
            _const_spec((D, D)), _const_spec((D, D)),
            _const_spec((D, hidden)), _const_spec((hidden, D)),
            _const_spec((8, D)),                                     # packed vectors
            _const_spec((1, hidden)),                                # b1
        ],
        out_specs=pl.BlockSpec((1, seq_tile, D), lambda b, t: (b, t, 0)),
        scratch_shapes=[
            pltpu.VMEM((num_heads, S, d_k), cd),   # K cache (persists across t)
            pltpu.VMEM((num_heads, S, d_k), cd),   # V cache (persists across t)
        ],
    )

    kernel = functools.partial(_encoder_layer_kernel, num_heads=num_heads)

    return pl.pallas_call(
        kernel,
        out_shape=jax.ShapeDtypeStruct((B, S, D), out_dtype),
        grid_spec=grid_spec,
        compiler_params=pltpu.CompilerParams(
            # batch axis "parallel" feeds both v7x TensorCores; sequence-tile axis is
            # "arbitrary" so per-batch K/V scratch reuse is sequentialized.
            dimension_semantics=("parallel", "arbitrary"),
            vmem_limit_bytes=_vmem_limit_bytes(),
        ),
    )(x, x_kv, mask, wq, wk, wv, wo, w1, w2, vecs, b1)


def _reference(x, padding_mask, params, *, num_heads):
    """Pure-JAX f32 reference matching the PyTorch forward (eval mode)."""
    B, S, D = x.shape
    d_k = D // num_heads

    def lin(z, w, b):
        return z @ w + b.reshape(1, -1)

    q = lin(x, params["wq"], params["bq"])
    k = lin(x, params["wk"], params["bk"])
    v = lin(x, params["wv"], params["bv"])

    def split(z):  # (B,S,D) -> (B,H,S,d_k)
        return z.reshape(B, S, num_heads, d_k).transpose(0, 2, 1, 3)

    q, k, v = split(q), split(k), split(v)
    scores = jnp.einsum("bhqd,bhkd->bhqk", q, k) / np.sqrt(d_k)
    scores = scores + padding_mask[:, None, :, :] * (-1e9)
    att = jax.nn.softmax(scores, axis=-1)
    out = jnp.einsum("bhqk,bhkd->bhqd", att, v)
    out = out.transpose(0, 2, 1, 3).reshape(B, S, D)
    out = lin(out, params["wo"], params["bo"])

    def layer_norm(z):
        mu = jnp.mean(z, axis=-1, keepdims=True)
        var = jnp.mean((z - mu) ** 2, axis=-1, keepdims=True)
        return (z - mu) / jnp.sqrt(var + 1e-5) * params["gamma"] + params["beta"]

    h1 = layer_norm(x + out)
    ff = jax.nn.relu(lin(h1, params["w1"], params["b1"]))
    ff = lin(ff, params["w2"], params["b2"])
    return layer_norm(h1 + ff)


if __name__ == "__main__":
    # Lane-dense small shapes: D, HIDDEN, d_k multiples of 128; seq tile multiple of 8.
    B, S, D, H, HIDDEN = 2, 16, 256, 2, 256
    TS = 8  # sequence tile -> grid (B, S // TS) = (2, 2); exercises K/V-cache reuse

    key = jax.random.PRNGKey(0)
    keys = jax.random.split(key, 16)

    def w(k, shape, scl=0.1):
        return (scl * jax.random.normal(k, shape)).astype(jnp.float32)

    params = {
        "wq": w(keys[0], (D, D)), "bq": w(keys[1], (1, D)),
        "wk": w(keys[2], (D, D)), "bk": w(keys[3], (1, D)),
        "wv": w(keys[4], (D, D)), "bv": w(keys[5], (1, D)),
        "wo": w(keys[6], (D, D)), "bo": w(keys[7], (1, D)),
        "gamma": (1.0 + 0.1 * jax.random.normal(keys[13], (1, D))).astype(jnp.float32),
        "beta": w(keys[14], (1, D)),
        "w1": w(keys[8], (D, HIDDEN)), "b1": w(keys[9], (1, HIDDEN)),
        "w2": w(keys[10], (HIDDEN, D)), "b2": w(keys[11], (1, D)),
    }

    x = jax.random.normal(keys[12], (B, S, D), dtype=jnp.float32)
    # padding mask: 1.0 for padded key positions (last 3 positions of batch 1)
    padding_mask = jnp.zeros((B, 1, S), jnp.float32)
    padding_mask = padding_mask.at[1, 0, S - 3:].set(1.0)

    ref = _reference(x, padding_mask, params, num_heads=H)

    # Fast path: bf16 MXU inputs, f32 accumulation, approx (EUP) reciprocal.
    out_bf16 = encoder_layer(x, padding_mask, params, num_heads=H,
                             seq_tile=TS, compute_dtype=jnp.bfloat16)
    out_bf16 = jax.block_until_ready(out_bf16)
    np.testing.assert_allclose(np.asarray(out_bf16), np.asarray(ref),
                               rtol=5e-2, atol=5e-2)

    # Exactness check: full-f32 compute path (exact reciprocal).
    out_f32 = encoder_layer(x, padding_mask, params, num_heads=H,
                            seq_tile=TS, compute_dtype=jnp.float32)
    out_f32 = jax.block_until_ready(out_f32)
    np.testing.assert_allclose(np.asarray(out_f32), np.asarray(ref),
                               rtol=1e-2, atol=1e-2)

    # TODO(synk): nn.Dropout is implemented as identity (eval-mode semantics only).
    print("KERNEL_OK")
</pallas_src>

<mosaic_0001>
module attributes {stable_mosaic.version = 11 : i64} {
  func.func @_encoder_layer_kernel(%arg0: i32, %arg1: i32, %arg2: memref<1x8x256xf32, #tpu.memory_space<vmem>>, %arg3: memref<1x16x256xbf16, #tpu.memory_space<vmem>>, %arg4: memref<1x1x16xf32, #tpu.memory_space<vmem>>, %arg5: memref<256x256xbf16, #tpu.memory_space<vmem>>, %arg6: memref<256x256xbf16, #tpu.memory_space<vmem>>, %arg7: memref<256x256xbf16, #tpu.memory_space<vmem>>, %arg8: memref<256x256xbf16, #tpu.memory_space<vmem>>, %arg9: memref<256x256xbf16, #tpu.memory_space<vmem>>, %arg10: memref<256x256xbf16, #tpu.memory_space<vmem>>, %arg11: memref<8x256xf32, #tpu.memory_space<vmem>>, %arg12: memref<1x256xf32, #tpu.memory_space<vmem>>, %arg13: memref<1x8x256xf32, #tpu.memory_space<vmem>>, %arg14: memref<2x16x128xbf16, #tpu.memory_space<vmem>>, %arg15: memref<2x16x128xbf16, #tpu.memory_space<vmem>>) attributes {dimension_semantics = [#tpu.dimension_semantics<parallel>, #tpu.dimension_semantics<arbitrary>], iteration_bounds = array<i64: 2, 2>, scalar_prefetch = 0 : i64, scratch_operands = 2 : i64, tpu.core_type = #tpu.core_type<tc>, window_params = [{transform_indices = @transform_0, window_bounds = array<i64: 1, 8, 256>}, {transform_indices = @transform_1, window_bounds = array<i64: 1, 16, 256>}, {transform_indices = @transform_2, window_bounds = array<i64: 1, 1, 16>}, {pipeline_mode = #tpu.pipeline_mode<synchronous>, transform_indices = @transform_3, window_bounds = array<i64: 256, 256>}, {pipeline_mode = #tpu.pipeline_mode<synchronous>, transform_indices = @transform_4, window_bounds = array<i64: 256, 256>}, {pipeline_mode = #tpu.pipeline_mode<synchronous>, transform_indices = @transform_5, window_bounds = array<i64: 256, 256>}, {pipeline_mode = #tpu.pipeline_mode<synchronous>, transform_indices = @transform_6, window_bounds = array<i64: 256, 256>}, {pipeline_mode = #tpu.pipeline_mode<synchronous>, transform_indices = @transform_7, window_bounds = array<i64: 256, 256>}, {pipeline_mode = #tpu.pipeline_mode<synchronous>, transform_indices = @transform_8, window_bounds = array<i64: 256, 256>}, {pipeline_mode = #tpu.pipeline_mode<synchronous>, transform_indices = @transform_9, window_bounds = array<i64: 8, 256>}, {pipeline_mode = #tpu.pipeline_mode<synchronous>, transform_indices = @transform_10, window_bounds = array<i64: 1, 256>}, {transform_indices = @transform_11, window_bounds = array<i64: 1, 8, 256>}]} {
    %c0 = arith.constant 0 : index
    %c0_0 = arith.constant 0 : index
    %c0_1 = arith.constant 0 : index
    %0 = vector.load %arg2[%c0, %c0_0, %c0_1] : memref<1x8x256xf32, #tpu.memory_space<vmem>>, vector<1x8x256xf32>
    %1 = vector.shape_cast %0 : vector<1x8x256xf32> to vector<8x256xf32>
    %c0_2 = arith.constant 0 : index
    %c0_3 = arith.constant 0 : index
    %c0_4 = arith.constant 0 : index
    %2 = vector.load %arg4[%c0_2, %c0_3, %c0_4] : memref<1x1x16xf32, #tpu.memory_space<vmem>>, vector<1x1x16xf32>
    %3 = vector.shape_cast %2 : vector<1x1x16xf32> to vector<1x16xf32>
    %cst = arith.constant -1.000000e+09 : f32
    %4 = vector.broadcast %cst : f32 to vector<1x16xf32>
    %5 = arith.mulf %3, %4 : vector<1x16xf32>
    %c0_5 = arith.constant 0 : index
    %c0_6 = arith.constant 0 : index
    %6 = vector.load %arg11[%c0_5, %c0_6] : memref<8x256xf32, #tpu.memory_space<vmem>>, vector<8x256xf32>
    %7 = vector.extract_strided_slice %6 {offsets = [0, 0], sizes = [1, 256], strides = [1, 1]} : vector<8x256xf32> to vector<1x256xf32>
    %8 = vector.extract_strided_slice %6 {offsets = [1, 0], sizes = [1, 256], strides = [1, 1]} : vector<8x256xf32> to vector<1x256xf32>
    %9 = vector.extract_strided_slice %6 {offsets = [2, 0], sizes = [1, 256], strides = [1, 1]} : vector<8x256xf32> to vector<1x256xf32>
    %10 = vector.extract_strided_slice %6 {offsets = [3, 0], sizes = [1, 256], strides = [1, 1]} : vector<8x256xf32> to vector<1x256xf32>
    %11 = vector.extract_strided_slice %6 {offsets = [4, 0], sizes = [1, 256], strides = [1, 1]} : vector<8x256xf32> to vector<1x256xf32>
    %12 = vector.extract_strided_slice %6 {offsets = [5, 0], sizes = [1, 256], strides = [1, 1]} : vector<8x256xf32> to vector<1x256xf32>
    %13 = vector.extract_strided_slice %6 {offsets = [6, 0], sizes = [1, 256], strides = [1, 1]} : vector<8x256xf32> to vector<1x256xf32>
    %c0_7 = arith.constant 0 : index
    %c0_8 = arith.constant 0 : index
    %14 = vector.load %arg12[%c0_7, %c0_8] : memref<1x256xf32, #tpu.memory_space<vmem>>, vector<1x256xf32>
    %c0_i32 = arith.constant 0 : i32
    %15 = arith.cmpi eq, %arg1, %c0_i32 : i32
    %16 = arith.extui %15 : i1 to i32
    %c0_i32_9 = arith.constant 0 : i32
    %17 = arith.cmpi ne, %16, %c0_i32_9 : i32
    scf.if %17 {
      %c0_47 = arith.constant 0 : index
      %c0_48 = arith.constant 0 : index
      %c0_49 = arith.constant 0 : index
      %110 = vector.load %arg3[%c0_47, %c0_48, %c0_49] : memref<1x16x256xbf16, #tpu.memory_space<vmem>>, vector<1x16x256xbf16>
      %111 = vector.shape_cast %110 : vector<1x16x256xbf16> to vector<16x256xbf16>
      %c0_50 = arith.constant 0 : index
      %c0_51 = arith.constant 0 : index
      %112 = vector.load %arg6[%c0_50, %c0_51] : memref<256x256xbf16, #tpu.memory_space<vmem>>, vector<256x256xbf16>
      %cst_52 = arith.constant dense<0.000000e+00> : vector<16x256xf32>
      %113 = tpu.matmul %111, %112, %cst_52 {dimension_numbers = #tpu.dot_dimension_numbers<[1], [0], [0], [1], [0, 0, 1, 1], [], []>} : vector<16x256xbf16>, vector<256x256xbf16>, vector<16x256xf32> -> vector<16x256xf32>
      %114 = vector.broadcast %8 : vector<1x256xf32> to vector<16x256xf32>
      %115 = arith.addf %113, %114 : vector<16x256xf32>
      %c0_53 = arith.constant 0 : index
      %c0_54 = arith.constant 0 : index
      %116 = vector.load %arg7[%c0_53, %c0_54] : memref<256x256xbf16, #tpu.memory_space<vmem>>, vector<256x256xbf16>
      %cst_55 = arith.constant dense<0.000000e+00> : vector<16x256xf32>
      %117 = tpu.matmul %111, %116, %cst_55 {dimension_numbers = #tpu.dot_dimension_numbers<[1], [0], [0], [1], [0, 0, 1, 1], [], []>} : vector<16x256xbf16>, vector<256x256xbf16>, vector<16x256xf32> -> vector<16x256xf32>
      %118 = vector.broadcast %9 : vector<1x256xf32> to vector<16x256xf32>
      %119 = arith.addf %117, %118 : vector<16x256xf32>
      %120 = vector.shape_cast %115 : vector<16x256xf32> to vector<16x2x128xf32>
      %121 = tpu.transpose %120, [1, 0, 2] : vector<16x2x128xf32> -> vector<2x16x128xf32>
      %122 = arith.truncf %121 : vector<2x16x128xf32> to vector<2x16x128xbf16>
      %c0_56 = arith.constant 0 : index
      %c0_57 = arith.constant 0 : index
      %c0_58 = arith.constant 0 : index
      %123 = vector.load %arg14[%c0_56, %c0_57, %c0_58] : memref<2x16x128xbf16, #tpu.memory_space<vmem>>, vector<2x16x128xbf16>
      tpu.vector_store %arg14[%c0_56, %c0_57, %c0_58], %122 {strides = array<i32>} : memref<2x16x128xbf16, #tpu.memory_space<vmem>>, vector<2x16x128xbf16>,
      %124 = vector.shape_cast %119 : vector<16x256xf32> to vector<16x2x128xf32>
      %125 = tpu.transpose %124, [1, 0, 2] : vector<16x2x128xf32> -> vector<2x16x128xf32>
      %126 = arith.truncf %125 : vector<2x16x128xf32> to vector<2x16x128xbf16>
      %c0_59 = arith.constant 0 : index
      %c0_60 = arith.constant 0 : index
      %c0_61 = arith.constant 0 : index
      %127 = vector.load %arg15[%c0_59, %c0_60, %c0_61] : memref<2x16x128xbf16, #tpu.memory_space<vmem>>, vector<2x16x128xbf16>
      tpu.vector_store %arg15[%c0_59, %c0_60, %c0_61], %126 {strides = array<i32>} : memref<2x16x128xbf16, #tpu.memory_space<vmem>>, vector<2x16x128xbf16>,
    } else {
    }
    %18 = arith.truncf %1 : vector<8x256xf32> to vector<8x256xbf16>
    %c0_10 = arith.constant 0 : index
    %c0_11 = arith.constant 0 : index
    %19 = vector.load %arg5[%c0_10, %c0_11] : memref<256x256xbf16, #tpu.memory_space<vmem>>, vector<256x256xbf16>
    %cst_12 = arith.constant dense<0.000000e+00> : vector<8x256xf32>
    %20 = tpu.matmul %18, %19, %cst_12 {dimension_numbers = #tpu.dot_dimension_numbers<[1], [0], [0], [1], [0, 0, 1, 1], [], []>} : vector<8x256xbf16>, vector<256x256xbf16>, vector<8x256xf32> -> vector<8x256xf32>
    %21 = vector.broadcast %7 : vector<1x256xf32> to vector<8x256xf32>
    %22 = arith.addf %20, %21 : vector<8x256xf32>
    %cst_13 = arith.constant 0.0883883461 : f32
    %23 = vector.broadcast %cst_13 : f32 to vector<8x256xf32>
    %24 = arith.mulf %22, %23 : vector<8x256xf32>
    %25 = vector.shape_cast %24 : vector<8x256xf32> to vector<8x2x128xf32>
    %26 = tpu.transpose %25, [1, 0, 2] : vector<8x2x128xf32> -> vector<2x8x128xf32>
    %27 = arith.truncf %26 : vector<2x8x128xf32> to vector<2x8x128xbf16>
    %c0_14 = arith.constant 0 : index
    %c0_15 = arith.constant 0 : index
    %c0_16 = arith.constant 0 : index
    %28 = vector.load %arg14[%c0_14, %c0_15, %c0_16] : memref<2x16x128xbf16, #tpu.memory_space<vmem>>, vector<2x16x128xbf16>
    "tpu.trace_start"() <{level = 10 : i32, message = "hqd,hkd->hqk"}> : () -> ()
    %cst_17 = arith.constant dense<0.000000e+00> : vector<2x8x16xf32>
    %29 = tpu.matmul %27, %28, %cst_17 {dimension_numbers = #tpu.dot_dimension_numbers<[2], [2], [1], [1], [0, 0, 0, 1, 1, 1], [0], [0]>} : vector<2x8x128xbf16>, vector<2x16x128xbf16>, vector<2x8x16xf32> -> vector<2x8x16xf32>
    "tpu.trace_stop"() : () -> ()
    %30 = vector.shape_cast %5 : vector<1x16xf32> to vector<1x1x16xf32>
    %31 = vector.broadcast %30 : vector<1x1x16xf32> to vector<2x8x16xf32>
    %32 = arith.addf %29, %31 : vector<2x8x16xf32>
    %cst_18 = arith.constant dense<0xFF800000> : vector<2x8xf32>
    %33 = vector.multi_reduction <maximumf>, %32, %cst_18 [2] : vector<2x8x16xf32> to vector<2x8xf32>
    %34 = vector.shape_cast %33 : vector<2x8xf32> to vector<2x8x1xf32>
    %35 = vector.broadcast %34 : vector<2x8x1xf32> to vector<2x8x16xf32>
    %36 = arith.subf %32, %35 : vector<2x8x16xf32>
    %37 = math.exp %36 : vector<2x8x16xf32>
    %cst_19 = arith.constant dense<0.000000e+00> : vector<2x8xf32>
    %38 = vector.multi_reduction <add>, %37, %cst_19 [2] : vector<2x8x16xf32> to vector<2x8xf32>
    %39 = vector.shape_cast %38 : vector<2x8xf32> to vector<2x8x1xf32>
    %40 = arith.truncf %37 : vector<2x8x16xf32> to vector<2x8x16xbf16>
    %c0_20 = arith.constant 0 : index
    %c0_21 = arith.constant 0 : index
    %c0_22 = arith.constant 0 : index
    %41 = vector.load %arg15[%c0_20, %c0_21, %c0_22] : memref<2x16x128xbf16, #tpu.memory_space<vmem>>, vector<2x16x128xbf16>
    "tpu.trace_start"() <{level = 10 : i32, message = "hqk,hkd->hqd"}> : () -> ()
    %cst_23 = arith.constant dense<0.000000e+00> : vector<2x8x128xf32>
    %42 = tpu.matmul %40, %41, %cst_23 {dimension_numbers = #tpu.dot_dimension_numbers<[2], [1], [1], [2], [0, 0, 0, 1, 1, 2], [0], [0]>} : vector<2x8x16xbf16>, vector<2x16x128xbf16>, vector<2x8x128xf32> -> vector<2x8x128xf32>
    "tpu.trace_stop"() : () -> ()
    %43 = tpu.reciprocal %39 {approx = true} : vector<2x8x1xf32> -> vector<2x8x1xf32>
    %44 = vector.broadcast %43 : vector<2x8x1xf32> to vector<2x8x128xf32>
    %45 = arith.mulf %42, %44 : vector<2x8x128xf32>
    %46 = tpu.transpose %45, [1, 0, 2] : vector<2x8x128xf32> -> vector<8x2x128xf32>
    %47 = vector.shape_cast %46 : vector<8x2x128xf32> to vector<8x256xf32>
    %48 = arith.truncf %47 : vector<8x256xf32> to vector<8x256xbf16>
    %c0_24 = arith.constant 0 : index
    %c0_25 = arith.constant 0 : index
    %49 = vector.load %arg8[%c0_24, %c0_25] : memref<256x256xbf16, #tpu.memory_space<vmem>>, vector<256x256xbf16>
    %cst_26 = arith.constant dense<0.000000e+00> : vector<8x256xf32>
    %50 = tpu.matmul %48, %49, %cst_26 {dimension_numbers = #tpu.dot_dimension_numbers<[1], [0], [0], [1], [0, 0, 1, 1], [], []>} : vector<8x256xbf16>, vector<256x256xbf16>, vector<8x256xf32> -> vector<8x256xf32>
    %51 = vector.broadcast %10 : vector<1x256xf32> to vector<8x256xf32>
    %52 = arith.addf %50, %51 : vector<8x256xf32>
    %53 = arith.addf %1, %52 : vector<8x256xf32>
    %cst_27 = arith.constant dense<0.000000e+00> : vector<8xf32>
    %54 = vector.multi_reduction <add>, %53, %cst_27 [1] : vector<8x256xf32> to vector<8xf32>
    %55 = vector.shape_cast %54 : vector<8xf32> to vector<8x1xf32>
    %cst_28 = arith.constant 2.560000e+02 : f32
    %56 = vector.broadcast %cst_28 : f32 to vector<8x1xf32>
    %57 = arith.divf %55, %56 : vector<8x1xf32>
    %58 = vector.broadcast %57 : vector<8x1xf32> to vector<8x256xf32>
    %59 = arith.subf %53, %58 : vector<8x256xf32>
    %60 = arith.mulf %59, %59 : vector<8x256xf32>
    %cst_29 = arith.constant dense<0.000000e+00> : vector<8xf32>
    %61 = vector.multi_reduction <add>, %60, %cst_29 [1] : vector<8x256xf32> to vector<8xf32>
    %62 = vector.shape_cast %61 : vector<8xf32> to vector<8x1xf32>
    %cst_30 = arith.constant 2.560000e+02 : f32
    %63 = vector.broadcast %cst_30 : f32 to vector<8x1xf32>
    %64 = arith.divf %62, %63 : vector<8x1xf32>
    %cst_31 = arith.constant 9.99999974E-6 : f32
    %65 = vector.broadcast %cst_31 : f32 to vector<8x1xf32>
    %66 = arith.addf %64, %65 : vector<8x1xf32>
    %67 = math.rsqrt %66 : vector<8x1xf32>
    %68 = vector.broadcast %67 : vector<8x1xf32> to vector<8x256xf32>
    %69 = arith.mulf %59, %68 : vector<8x256xf32>
    %70 = vector.broadcast %11 : vector<1x256xf32> to vector<8x256xf32>
    %71 = arith.mulf %69, %70 : vector<8x256xf32>
    %72 = vector.broadcast %12 : vector<1x256xf32> to vector<8x256xf32>
    %73 = arith.addf %71, %72 : vector<8x256xf32>
    %74 = arith.truncf %73 : vector<8x256xf32> to vector<8x256xbf16>
    %c0_32 = arith.constant 0 : index
    %c0_33 = arith.constant 0 : index
    %75 = vector.load %arg9[%c0_32, %c0_33] : memref<256x256xbf16, #tpu.memory_space<vmem>>, vector<256x256xbf16>
    %cst_34 = arith.constant dense<0.000000e+00> : vector<8x256xf32>
    %76 = tpu.matmul %74, %75, %cst_34 {dimension_numbers = #tpu.dot_dimension_numbers<[1], [0], [0], [1], [0, 0, 1, 1], [], []>} : vector<8x256xbf16>, vector<256x256xbf16>, vector<8x256xf32> -> vector<8x256xf32>
    %77 = vector.broadcast %14 : vector<1x256xf32> to vector<8x256xf32>
    %78 = arith.addf %76, %77 : vector<8x256xf32>
    %cst_35 = arith.constant 0.000000e+00 : f32
    %79 = vector.broadcast %cst_35 : f32 to vector<8x256xf32>
    %80 = arith.maximumf %78, %79 : vector<8x256xf32>
    %81 = arith.truncf %80 : vector<8x256xf32> to vector<8x256xbf16>
    %c0_36 = arith.constant 0 : index
    %c0_37 = arith.constant 0 : index
    %82 = vector.load %arg10[%c0_36, %c0_37] : memref<256x256xbf16, #tpu.memory_space<vmem>>, vector<256x256xbf16>
    %cst_38 = arith.constant dense<0.000000e+00> : vector<8x256xf32>
    %83 = tpu.matmul %81, %82, %cst_38 {dimension_numbers = #tpu.dot_dimension_numbers<[1], [0], [0], [1], [0, 0, 1, 1], [], []>} : vector<8x256xbf16>, vector<256x256xbf16>, vector<8x256xf32> -> vector<8x256xf32>
    %84 = vector.broadcast %13 : vector<1x256xf32> to vector<8x256xf32>
    %85 = arith.addf %83, %84 : vector<8x256xf32>
    %86 = arith.addf %73, %85 : vector<8x256xf32>
    %cst_39 = arith.constant dense<0.000000e+00> : vector<8xf32>
    %87 = vector.multi_reduction <add>, %86, %cst_39 [1] : vector<8x256xf32> to vector<8xf32>
    %88 = vector.shape_cast %87 : vector<8xf32> to vector<8x1xf32>
    %cst_40 = arith.constant 2.560000e+02 : f32
    %89 = vector.broadcast %cst_40 : f32 to vector<8x1xf32>
    %90 = arith.divf %88, %89 : vector<8x1xf32>
    %91 = vector.broadcast %90 : vector<8x1xf32> to vector<8x256xf32>
    %92 = arith.subf %86, %91 : vector<8x256xf32>
    %93 = arith.mulf %92, %92 : vector<8x256xf32>
    %cst_41 = arith.constant dense<0.000000e+00> : vector<8xf32>
    %94 = vector.multi_reduction <add>, %93, %cst_41 [1] : vector<8x256xf32> to vector<8xf32>
    %95 = vector.shape_cast %94 : vector<8xf32> to vector<8x1xf32>
    %cst_42 = arith.constant 2.560000e+02 : f32
    %96 = vector.broadcast %cst_42 : f32 to vector<8x1xf32>
    %97 = arith.divf %95, %96 : vector<8x1xf32>
    %cst_43 = arith.constant 9.99999974E-6 : f32
    %98 = vector.broadcast %cst_43 : f32 to vector<8x1xf32>
    %99 = arith.addf %97, %98 : vector<8x1xf32>
    %100 = math.rsqrt %99 : vector<8x1xf32>
    %101 = vector.broadcast %100 : vector<8x1xf32> to vector<8x256xf32>
    %102 = arith.mulf %92, %101 : vector<8x256xf32>
    %103 = vector.broadcast %11 : vector<1x256xf32> to vector<8x256xf32>
    %104 = arith.mulf %102, %103 : vector<8x256xf32>
    %105 = vector.broadcast %12 : vector<1x256xf32> to vector<8x256xf32>
    %106 = arith.addf %104, %105 : vector<8x256xf32>
    %c0_44 = arith.constant 0 : index
    %c0_45 = arith.constant 0 : index
    %c0_46 = arith.constant 0 : index
    %107 = vector.load %arg13[%c0_44, %c0_45, %c0_46] : memref<1x8x256xf32, #tpu.memory_space<vmem>>, vector<1x8x256xf32>
    %108 = vector.shape_cast %107 : vector<1x8x256xf32> to vector<8x256xf32>
    %109 = vector.shape_cast %106 : vector<8x256xf32> to vector<1x8x256xf32>
    tpu.vector_store %arg13[%c0_44, %c0_45, %c0_46], %109 {strides = array<i32>} : memref<1x8x256xf32, #tpu.memory_space<vmem>>, vector<1x8x256xf32>,
    return
  }
  func.func @transform_0(%arg0: i32, %arg1: i32) -> (i32, i32, i32) {
    %c0_i32 = arith.constant 0 : i32
    %c0_i32_0 = arith.constant 0 : i32
    return %arg0, %arg1, %c0_i32 : i32, i32, i32
  }
  func.func @transform_1(%arg0: i32, %arg1: i32) -> (i32, i32, i32) {
    %c0_i32 = arith.constant 0 : i32
    %c0_i32_0 = arith.constant 0 : i32
    %c0_i32_1 = arith.constant 0 : i32
    return %arg0, %c0_i32, %c0_i32_0 : i32, i32, i32
  }
  func.func @transform_2(%arg0: i32, %arg1: i32) -> (i32, i32, i32) {
    %c0_i32 = arith.constant 0 : i32
    %c0_i32_0 = arith.constant 0 : i32
    %c0_i32_1 = arith.constant 0 : i32
    return %arg0, %c0_i32, %c0_i32_0 : i32, i32, i32
  }
  func.func @transform_3(%arg0: i32, %arg1: i32) -> (i32, i32) {
    %c0_i32 = arith.constant 0 : i32
    %c0_i32_0 = arith.constant 0 : i32
    %c0_i32_1 = arith.constant 0 : i32
    return %c0_i32, %c0_i32_0 : i32, i32
  }
  func.func @transform_4(%arg0: i32, %arg1: i32) -> (i32, i32) {
    %c0_i32 = arith.constant 0 : i32
    %c0_i32_0 = arith.constant 0 : i32
    %c0_i32_1 = arith.constant 0 : i32
    return %c0_i32, %c0_i32_0 : i32, i32
  }
  func.func @transform_5(%arg0: i32, %arg1: i32) -> (i32, i32) {
    %c0_i32 = arith.constant 0 : i32
    %c0_i32_0 = arith.constant 0 : i32
    %c0_i32_1 = arith.constant 0 : i32
    return %c0_i32, %c0_i32_0 : i32, i32
  }
  func.func @transform_6(%arg0: i32, %arg1: i32) -> (i32, i32) {
    %c0_i32 = arith.constant 0 : i32
    %c0_i32_0 = arith.constant 0 : i32
    %c0_i32_1 = arith.constant 0 : i32
    return %c0_i32, %c0_i32_0 : i32, i32
  }
  func.func @transform_7(%arg0: i32, %arg1: i32) -> (i32, i32) {
    %c0_i32 = arith.constant 0 : i32
    %c0_i32_0 = arith.constant 0 : i32
    %c0_i32_1 = arith.constant 0 : i32
    return %c0_i32, %c0_i32_0 : i32, i32
  }
  func.func @transform_8(%arg0: i32, %arg1: i32) -> (i32, i32) {
    %c0_i32 = arith.constant 0 : i32
    %c0_i32_0 = arith.constant 0 : i32
    %c0_i32_1 = arith.constant 0 : i32
    return %c0_i32, %c0_i32_0 : i32, i32
  }
  func.func @transform_9(%arg0: i32, %arg1: i32) -> (i32, i32) {
    %c0_i32 = arith.constant 0 : i32
    %c0_i32_0 = arith.constant 0 : i32
    %c0_i32_1 = arith.constant 0 : i32
    return %c0_i32, %c0_i32_0 : i32, i32
  }
  func.func @transform_10(%arg0: i32, %arg1: i32) -> (i32, i32) {
    %c0_i32 = arith.constant 0 : i32
    %c0_i32_0 = arith.constant 0 : i32
    %c0_i32_1 = arith.constant 0 : i32
    return %c0_i32, %c0_i32_0 : i32, i32
  }
  func.func @transform_11(%arg0: i32, %arg1: i32) -> (i32, i32, i32) {
    %c0_i32 = arith.constant 0 : i32
    %c0_i32_0 = arith.constant 0 : i32
    return %arg0, %arg1, %c0_i32 : i32, i32, i32
  }
}

</mosaic_0001>

<llo_original>
// kernel: tpu_custom_call.1
$region0: #{tpu_custom_call.1}
  #allocation0 [shape = 'u32[]', space=smem, size = 0x4, offset = 0x4, fixed_abs, tag = 'smem constant byte address 0x4 - core index']
  #allocation1 [shape = 'u32[144,128]{1,0:T(1,128)}', space=vmem, size = 0x12000, scoped, tag = 'internal scratch']
  #allocation2 [shape = 'bf16[2,16,128]{2,1,0:T(8,128)(2,1)}', space=vmem, size = 0x2000, scoped, tag = 'scratch operand']
  #allocation3 [shape = 'bf16[2,16,128]{2,1,0:T(8,128)(2,1)}', space=vmem, size = 0x2000, scoped, tag = 'scratch operand']
  %s0 = inlined_call_operand.hbm [shape: f32[2,16,256], index: 0, kind: input, shape index: {}]
  %s1 = inlined_call_operand.hbm [shape: bf16[2,16,256], index: 1, kind: input, shape index: {}]
  %s2 = inlined_call_operand.hbm [shape: f32[2,1,16], index: 2, kind: input, shape index: {}]
  %s3 = inlined_call_operand.hbm [shape: bf16[256,256], index: 3, kind: input, shape index: {}]
  %s4 = inlined_call_operand.hbm [shape: bf16[256,256], index: 4, kind: input, shape index: {}]
  %s5 = inlined_call_operand.hbm [shape: bf16[256,256], index: 5, kind: input, shape index: {}]
  %s6 = inlined_call_operand.hbm [shape: bf16[256,256], index: 6, kind: input, shape index: {}]
  %s7 = inlined_call_operand.hbm [shape: bf16[256,256], index: 7, kind: input, shape index: {}]
  %s8 = inlined_call_operand.hbm [shape: bf16[256,256], index: 8, kind: input, shape index: {}]
  %s9 = inlined_call_operand.vmem [shape: f32[8,256], index: 9, kind: input, shape index: {}]
  %s10 = inlined_call_operand.vmem [shape: f32[1,256], index: 10, kind: input, shape index: {}]
  %s11 = inlined_call_operand.hbm [shape: f32[2,16,256], index: 11, kind: output, shape index: {}]
  %s12 = sld [smem:[#allocation0]]
  $region117: #{tpu_custom_call.1} parent=0
    _
  %s14 = ssub.s32 1, %s12
  %s15 = scalar_select 0, %s14, %s12
  $region1: #{tpu_custom_call.1} parent=0
    #allocation4 [shape = 'u8[16384]{0}', space=vmem, size = 0x4000, scoped, tag = 'input window, operand 0']
    #allocation5 [shape = 's32[2]{0}', space=sflag, size = 0x8, scoped, tag = 'scoped memory for tpu_custom_call.1']
    #allocation6 [shape = 's32[2]{0}', space=sflag, size = 0x8, scoped, tag = 'scoped memory for tpu_custom_call.1']
    #allocation7 [shape = 'u8[16384]{0}', space=vmem, size = 0x4000, scoped, tag = 'input window, operand 1']
    #allocation8 [shape = 's32[2]{0}', space=sflag, size = 0x8, scoped, tag = 'scoped memory for tpu_custom_call.1']
    #allocation9 [shape = 'u8[1024]{0}', space=vmem, size = 0x400, scoped, tag = 'input window, operand 2']
    #allocation10 [shape = 'u8[131072]{0}', space=vmem, size = 0x20000, scoped, tag = 'input window, operand 3, single buffered']
    #allocation11 [shape = 's32[1]{0}', space=sflag, size = 0x4, scoped, tag = 'scoped memory for tpu_custom_call.1']
    #allocation12 [shape = 'u8[131072]{0}', space=vmem, size = 0x20000, scoped, tag = 'input window, operand 4, single buffered']
    #allocation13 [shape = 'u8[131072]{0}', space=vmem, size = 0x20000, scoped, tag = 'input window, operand 5, single buffered']
    #allocation14 [shape = 's32[1]{0}', space=sflag, size = 0x4, scoped, tag = 'scoped memory for tpu_custom_call.1']
    #allocation15 [shape = 'u8[131072]{0}', space=vmem, size = 0x20000, scoped, tag = 'input window, operand 6, single buffered']
    #allocation16 [shape = 'u8[131072]{0}', space=vmem, size = 0x20000, scoped, tag = 'input window, operand 7, single buffered']
    #allocation17 [shape = 's32[1]{0}', space=sflag, size = 0x4, scoped, tag = 'scoped memory for tpu_custom_call.1']
    #allocation18 [shape = 'u8[131072]{0}', space=vmem, size = 0x20000, scoped, tag = 'input window, operand 8, single buffered']
    #allocation19 [shape = 'u8[16384]{0}', space=vmem, size = 0x4000, scoped, tag = 'output window, operand 0']
    %16 = vsyncpa [#allocation5], 0
    %s17 = scalar_lea.sflag [#allocation5], 1
    %18 = vsyncpa %s17, 0
    %19 = vsyncpa [#allocation8], 0
    %s20 = scalar_lea.sflag [#allocation8], 1
    %21 = vsyncpa %s20, 0
    %22 = vsyncpa [#allocation11], 0
    %23 = vsyncpa [#allocation14], 0
    %24 = vsyncpa [#allocation17], 0
    %25 = vsyncpa [#allocation6], 0
    %s26 = scalar_lea.sflag [#allocation6], 1
    %27 = vsyncpa %s26, 0
    loop: start=0, step=1, limit=6
    $region2: #{tpu_custom_call.1} parent=1 // loop_pre_header
      _
    $region3: #{tpu_custom_call.1} parent=1 // loop_header
      %s29 = sphi 0, %s33
      %p30 = scmp.ge.s32.totalorder %s29, 6
      %s36 = sphi 0, %s48
      %s37 = sphi 0, %s44
      %s38 = sphi 0, %s36
      %s39 = sphi 0, %s37
      %s40 = sphi 0, %s38
      %s41 = sphi 0, %s39
      %s53 = sphi 0, %s55
      %s56 = sphi 0, %s53
      %s57 = sphi 0, %s56
      %s73 = sphi 0, %s57
      %s79 = sphi 0, %s81
      %s82 = sphi 0, %s79
      %s83 = sphi 0, %s82
      %s99 = sphi 0, %s83
      %s105 = sphi 0, %s107
      %s108 = sphi 0, %s105
      %s109 = sphi 0, %s108
      %s125 = sphi 0, %s109
      %s129 = sphi 0, %s129
      %s131 = sphi 0, %s129
      %s132 = sphi 0, %s131
      %s146 = sphi 0, %s132
      %s150 = sphi 0, %s150
      %s152 = sphi 0, %s150
      %s153 = sphi 0, %s152
      %s167 = sphi 0, %s153
      %s171 = sphi 0, %s171
      %s173 = sphi 0, %s171
      %s174 = sphi 0, %s173
      %s188 = sphi 0, %s174
      %s192 = sphi 0, %s192
      %s194 = sphi 0, %s192
      %s195 = sphi 0, %s194
      %s209 = sphi 0, %s195
      %s213 = sphi 0, %s213
      %s215 = sphi 0, %s213
      %s216 = sphi 0, %s215
      %s230 = sphi 0, %s216
      %s234 = sphi 0, %s234
      %s236 = sphi 0, %s234
      %s237 = sphi 0, %s236
      %s251 = sphi 0, %s237
      %s255 = sphi 0, %s255
      %s257 = sphi 0, %s255
      %s258 = sphi 0, %s257
      %s272 = sphi 0, %s258
      %s276 = sphi 0, %s276
      %s278 = sphi 0, %s276
      %s279 = sphi 0, %s278
      %s293 = sphi 0, %s279
      %s301 = sphi 0, %s303
      %s304 = sphi 0, %s301
      %s305 = sphi 0, %s304
      %s321 = sphi 0, %s305
    $region4: #{tpu_custom_call.1} parent=1 // loop_header_branch
      %32 = sbr.rel (%p30) target = $region8
    $region5: #{tpu_custom_call.1} parent=1 // loop_body
      %s34 = ssub.s32 %s29, 1
      %s35 = ssub.s32 %s29, 2
      %s42 = sadd.s32 1, %s37
      %p43 = scmp.ge.s32.totalorder %s42, 2
      %s44 = scalar_select %p43, 0, %s42
      %s45 = sadd.s32 1, %s36
      %s46 = scalar_select %p43, %s45, %s36
      %p47 = scmp.ge.s32.totalorder %s46, 2
      %s48 = scalar_select %p47, 0, %s46
      %s49 = ssub.s32 %s36, %s48
      %s50 = ssub.s32 %s37, %s44
      %s51 = sor.u32 %s49, %s50
      %p52 = scmp.eq.s32.totalorder %s51, 0
      %s54 = sadd.s32 %s53, 1
      %s55 = scalar_select %p52, %s53, %s54
      %p58 = pneg %p52
      %p59 = scmp.eq.s32.totalorder %s29, 3
      %p60 = por %p58, %p59
      %p61 = scmp.ne.s32.totalorder %s53, %s56
      %p62 = scmp.eq.s32.totalorder %s29, 0
      %p63 = por %p61, %p62
      %p64 = scmp.ne.s32.totalorder %s53, %s56
      %p65 = scmp.eq.s32.totalorder %s34, 3
      %p66 = por %p64, %p65
      %p67 = scmp.ne.s32.totalorder %s56, %s57
      %p68 = scmp.eq.s32.totalorder %s34, 0
      %p69 = por %p67, %p68
      %p70 = scmp.ne.s32.totalorder %s56, %s57
      %p71 = scmp.eq.s32.totalorder %s35, 3
      %p72 = por %p70, %p71
      %p74 = scmp.ne.s32.totalorder %s57, %s73
      %p75 = scmp.eq.s32.totalorder %s35, 0
      %p76 = por %p74, %p75
      %s77 = ssub.s32 %s36, %s48
      %p78 = scmp.eq.s32.totalorder %s77, 0
      %s80 = sadd.s32 %s79, 1
      %s81 = scalar_select %p78, %s79, %s80
      %p84 = pneg %p78
      %p85 = scmp.eq.s32.totalorder %s29, 3
      %p86 = por %p84, %p85
      %p87 = scmp.ne.s32.totalorder %s79, %s82
      %p88 = scmp.eq.s32.totalorder %s29, 0
      %p89 = por %p87, %p88
      %p90 = scmp.ne.s32.totalorder %s79, %s82
      %p91 = scmp.eq.s32.totalorder %s34, 3
      %p92 = por %p90, %p91
      %p93 = scmp.ne.s32.totalorder %s82, %s83
      %p94 = scmp.eq.s32.totalorder %s34, 0
      %p95 = por %p93, %p94
      %p96 = scmp.ne.s32.totalorder %s82, %s83
      %p97 = scmp.eq.s32.totalorder %s35, 3
      %p98 = por %p96, %p97
      %p100 = scmp.ne.s32.totalorder %s83, %s99
      %p101 = scmp.eq.s32.totalorder %s35, 0
      %p102 = por %p100, %p101
      %s103 = ssub.s32 %s36, %s48
      %p104 = scmp.eq.s32.totalorder %s103, 0
      %s106 = sadd.s32 %s105, 1
      %s107 = scalar_select %p104, %s105, %s106
      %p110 = pneg %p104
      %p111 = scmp.eq.s32.totalorder %s29, 3
      %p112 = por %p110, %p111
      %p113 = scmp.ne.s32.totalorder %s105, %s108
      %p114 = scmp.eq.s32.totalorder %s29, 0
      %p115 = por %p113, %p114
      %p116 = scmp.ne.s32.totalorder %s105, %s108
      %p117 = scmp.eq.s32.totalorder %s34, 3
      %p118 = por %p116, %p117
      %p119 = scmp.ne.s32.totalorder %s108, %s109
      %p120 = scmp.eq.s32.totalorder %s34, 0
      %p121 = por %p119, %p120
      %p122 = scmp.ne.s32.totalorder %s108, %s109
      %p123 = scmp.eq.s32.totalorder %s35, 3
      %p124 = por %p122, %p123
      %p126 = scmp.ne.s32.totalorder %s109, %s125
      %p127 = scmp.eq.s32.totalorder %s35, 0
      %p128 = por %p126, %p127
      %s130 = sadd.s32 %s129, 1
      %p133 = scmp.eq.s32.totalorder %s29, 3
      %p134 = scmp.ne.s32.totalorder %s129, %s131
      %p135 = scmp.eq.s32.totalorder %s29, 0
      %p136 = por %p134, %p135
      %p137 = scmp.ne.s32.totalorder %s129, %s131
      %p138 = scmp.eq.s32.totalorder %s34, 3
      %p139 = por %p137, %p138
      %p140 = scmp.ne.s32.totalorder %s131, %s132
      %p141 = scmp.eq.s32.totalorder %s34, 0
      %p142 = por %p140, %p141
      %p143 = scmp.ne.s32.totalorder %s131, %s132
      %p144 = scmp.eq.s32.totalorder %s35, 3
      %p145 = por %p143, %p144
      %p147 = scmp.ne.s32.totalorder %s132, %s146
      %p148 = scmp.eq.s32.totalorder %s35, 0
      %p149 = por %p147, %p148
      %s151 = sadd.s32 %s150, 1
      %p154 = scmp.eq.s32.totalorder %s29, 3
      %p155 = scmp.ne.s32.totalorder %s150, %s152
      %p156 = scmp.eq.s32.totalorder %s29, 0
      %p157 = por %p155, %p156
      %p158 = scmp.ne.s32.totalorder %s150, %s152
      %p159 = scmp.eq.s32.totalorder %s34, 3
      %p160 = por %p158, %p159
      %p161 = scmp.ne.s32.totalorder %s152, %s153
      %p162 = scmp.eq.s32.totalorder %s34, 0
      %p163 = por %p161, %p162
      %p164 = scmp.ne.s32.totalorder %s152, %s153
      %p165 = scmp.eq.s32.totalorder %s35, 3
      %p166 = por %p164, %p165
      %p168 = scmp.ne.s32.totalorder %s153, %s167
      %p169 = scmp.eq.s32.totalorder %s35, 0
      %p170 = por %p168, %p169
      %s172 = sadd.s32 %s171, 1
      %p175 = scmp.eq.s32.totalorder %s29, 3
      %p176 = scmp.ne.s32.totalorder %s171, %s173
      %p177 = scmp.eq.s32.totalorder %s29, 0
      %p178 = por %p176, %p177
      %p179 = scmp.ne.s32.totalorder %s171, %s173
      %p180 = scmp.eq.s32.totalorder %s34, 3
      %p181 = por %p179, %p180
      %p182 = scmp.ne.s32.totalorder %s173, %s174
      %p183 = scmp.eq.s32.totalorder %s34, 0
      %p184 = por %p182, %p183
      %p185 = scmp.ne.s32.totalorder %s173, %s174
      %p186 = scmp.eq.s32.totalorder %s35, 3
      %p187 = por %p185, %p186
      %p189 = scmp.ne.s32.totalorder %s174, %s188
      %p190 = scmp.eq.s32.totalorder %s35, 0
      %p191 = por %p189, %p190
      %s193 = sadd.s32 %s192, 1
      %p196 = scmp.eq.s32.totalorder %s29, 3
      %p197 = scmp.ne.s32.totalorder %s192, %s194
      %p198 = scmp.eq.s32.totalorder %s29, 0
      %p199 = por %p197, %p198
      %p200 = scmp.ne.s32.totalorder %s192, %s194
      %p201 = scmp.eq.s32.totalorder %s34, 3
      %p202 = por %p200, %p201
      %p203 = scmp.ne.s32.totalorder %s194, %s195
      %p204 = scmp.eq.s32.totalorder %s34, 0
      %p205 = por %p203, %p204
      %p206 = scmp.ne.s32.totalorder %s194, %s195
      %p207 = scmp.eq.s32.totalorder %s35, 3
      %p208 = por %p206, %p207
      %p210 = scmp.ne.s32.totalorder %s195, %s209
      %p211 = scmp.eq.s32.totalorder %s35, 0
      %p212 = por %p210, %p211
      %s214 = sadd.s32 %s213, 1
      %p217 = scmp.eq.s32.totalorder %s29, 3
      %p218 = scmp.ne.s32.totalorder %s213, %s215
      %p219 = scmp.eq.s32.totalorder %s29, 0
      %p220 = por %p218, %p219
      %p221 = scmp.ne.s32.totalorder %s213, %s215
      %p222 = scmp.eq.s32.totalorder %s34, 3
      %p223 = por %p221, %p222
      %p224 = scmp.ne.s32.totalorder %s215, %s216
      %p225 = scmp.eq.s32.totalorder %s34, 0
      %p226 = por %p224, %p225
      %p227 = scmp.ne.s32.totalorder %s215, %s216
      %p228 = scmp.eq.s32.totalorder %s35, 3
      %p229 = por %p227, %p228
      %p231 = scmp.ne.s32.totalorder %s216, %s230
      %p232 = scmp.eq.s32.totalorder %s35, 0
      %p233 = por %p231, %p232
      %s235 = sadd.s32 %s234, 1
      %p238 = scmp.eq.s32.totalorder %s29, 3
      %p239 = scmp.ne.s32.totalorder %s234, %s236
      %p240 = scmp.eq.s32.totalorder %s29, 0
      %p241 = por %p239, %p240
      %p242 = scmp.ne.s32.totalorder %s234, %s236
      %p243 = scmp.eq.s32.totalorder %s34, 3
      %p244 = por %p242, %p243
      %p245 = scmp.ne.s32.totalorder %s236, %s237
      %p246 = scmp.eq.s32.totalorder %s34, 0
      %p247 = por %p245, %p246
      %p248 = scmp.ne.s32.totalorder %s236, %s237
      %p249 = scmp.eq.s32.totalorder %s35, 3
      %p250 = por %p248, %p249
      %p252 = scmp.ne.s32.totalorder %s237, %s251
      %p253 = scmp.eq.s32.totalorder %s35, 0
      %p254 = por %p252, %p253
      %s256 = sadd.s32 %s255, 1
      %p259 = scmp.eq.s32.totalorder %s29, 3
      %p260 = scmp.ne.s32.totalorder %s255, %s257
      %p261 = scmp.eq.s32.totalorder %s29, 0
      %p262 = por %p260, %p261
      %p263 = scmp.ne.s32.totalorder %s255, %s257
      %p264 = scmp.eq.s32.totalorder %s34, 3
      %p265 = por %p263, %p264
      %p266 = scmp.ne.s32.totalorder %s257, %s258
      %p267 = scmp.eq.s32.totalorder %s34, 0
      %p268 = por %p266, %p267
      %p269 = scmp.ne.s32.totalorder %s257, %s258
      %p270 = scmp.eq.s32.totalorder %s35, 3
      %p271 = por %p269, %p270
      %p273 = scmp.ne.s32.totalorder %s258, %s272
      %p274 = scmp.eq.s32.totalorder %s35, 0
      %p275 = por %p273, %p274
      %s277 = sadd.s32 %s276, 1
      %p280 = scmp.eq.s32.totalorder %s29, 3
      %p281 = scmp.ne.s32.totalorder %s276, %s278
      %p282 = scmp.eq.s32.totalorder %s29, 0
      %p283 = por %p281, %p282
      %p284 = scmp.ne.s32.totalorder %s276, %s278
      %p285 = scmp.eq.s32.totalorder %s34, 3
      %p286 = por %p284, %p285
      %p287 = scmp.ne.s32.totalorder %s278, %s279
      %p288 = scmp.eq.s32.totalorder %s34, 0
      %p289 = por %p287, %p288
      %p290 = scmp.ne.s32.totalorder %s278, %s279
      %p291 = scmp.eq.s32.totalorder %s35, 3
      %p292 = por %p290, %p291
      %p294 = scmp.ne.s32.totalorder %s279, %s293
      %p295 = scmp.eq.s32.totalorder %s35, 0
      %p296 = por %p294, %p295
      %s297 = ssub.s32 %s36, %s48
      %s298 = ssub.s32 %s37, %s44
      %s299 = sor.u32 %s297, %s298
      %p300 = scmp.eq.s32.totalorder %s299, 0
      %s302 = sadd.s32 %s301, 1
      %s303 = scalar_select %p300, %s301, %s302
      %p306 = pneg %p300
      %p307 = scmp.eq.s32.totalorder %s29, 3
      %p308 = por %p306, %p307
      %p309 = scmp.ne.s32.totalorder %s301, %s304
      %p310 = scmp.eq.s32.totalorder %s29, 0
      %p311 = por %p309, %p310
      %p312 = scmp.ne.s32.totalorder %s301, %s304
      %p313 = scmp.eq.s32.totalorder %s34, 3
      %p314 = por %p312, %p313
      %p315 = scmp.ne.s32.totalorder %s304, %s305
      %p316 = scmp.eq.s32.totalorder %s34, 0
      %p317 = por %p315, %p316
      %p318 = scmp.ne.s32.totalorder %s304, %s305
      %p319 = scmp.eq.s32.totalorder %s35, 3
      %p320 = por %p318, %p319
      %p322 = scmp.ne.s32.totalorder %s305, %s321
      %p323 = scmp.eq.s32.totalorder %s35, 0
      %p324 = por %p322, %p323
      %p325 = scmp.le.s32.totalorder 1, %s29
      %p326 = scmp.lt.s32.totalorder %s29, 5
      %p327 = pnand %p325, %p326
      %p328 = pneg %p327
      // Predicated region
      $region9: #{tpu_custom_call.1} parent=5 // pred_check
        _
      $region10: #{tpu_custom_call.1} parent=5 // pred_check_branch
        %330 = sbr.rel (%p327) target = $region12
      $region11: #{tpu_custom_call.1} parent=5 // pred_region
        %s331 = ssub.s32 %s29, 1
        // Predicated region
        $region13: #{tpu_custom_call.1} parent=11 // pred_check
          %p332 = pneg %p142
        $region14: #{tpu_custom_call.1} parent=11 // pred_check_branch
          %334 = sbr.rel (%p332) target = $region16
        $region15: #{tpu_custom_call.1} parent=11 // pred_region
          %s336 = ssub.s32 4096, 4096
          %337 = vsyncadd [#allocation11], %s336
          %s338 = sshll.u32 [#allocation10], 4
          %s339 = int_to_ptr.vmem [resolvable:$true] %s338
          %344 = dma.hbm_to_vmem [thread:$0]  %s3, 4096, %s339, [#allocation11], 128, 128, 8
        $region16: #{tpu_custom_call.1} parent=11 // pred_fallthru
          _
        // Predicated region
        $region17: #{tpu_custom_call.1} parent=11 // pred_check
          %p345 = pneg %p163
        $region18: #{tpu_custom_call.1} parent=11 // pred_check_branch
          %347 = sbr.rel (%p345) target = $region20
        $region19: #{tpu_custom_call.1} parent=11 // pred_region
          %s349 = ssub.s32 4096, 4096
          %350 = vsyncadd [#allocation11], %s349
          %s351 = sshll.u32 [#allocation12], 4
          %s352 = int_to_ptr.vmem [resolvable:$true] %s351
          %357 = dma.hbm_to_vmem [thread:$0]  %s4, 4096, %s352, [#allocation11], 128, 128, 8
        $region20: #{tpu_custom_call.1} parent=11 // pred_fallthru
          _
        // Predicated region
        $region21: #{tpu_custom_call.1} parent=11 // pred_check
          %p358 = pneg %p184
        $region22: #{tpu_custom_call.1} parent=11 // pred_check_branch
          %360 = sbr.rel (%p358) target = $region24
        $region23: #{tpu_custom_call.1} parent=11 // pred_region
          %s362 = ssub.s32 4096, 4096
          %363 = vsyncadd [#allocation14], %s362
          %s364 = sshll.u32 [#allocation13], 4
          %s365 = int_to_ptr.vmem [resolvable:$true] %s364
          %370 = dma.hbm_to_vmem [thread:$0]  %s5, 4096, %s365, [#allocation14], 128, 128, 8
        $region24: #{tpu_custom_call.1} parent=11 // pred_fallthru
          _
        // Predicated region
        $region25: #{tpu_custom_call.1} parent=11 // pred_check
          %p371 = pneg %p205
        $region26: #{tpu_custom_call.1} parent=11 // pred_check_branch
          %373 = sbr.rel (%p371) target = $region28
        $region27: #{tpu_custom_call.1} parent=11 // pred_region
          %s375 = ssub.s32 4096, 4096
          %376 = vsyncadd [#allocation14], %s375
          %s377 = sshll.u32 [#allocation15], 4
          %s378 = int_to_ptr.vmem [resolvable:$true] %s377
          %383 = dma.hbm_to_vmem [thread:$0]  %s6, 4096, %s378, [#allocation14], 128, 128, 8
        $region28: #{tpu_custom_call.1} parent=11 // pred_fallthru
          _
        // Predicated region
        $region29: #{tpu_custom_call.1} parent=11 // pred_check
          %p384 = pneg %p226
        $region30: #{tpu_custom_call.1} parent=11 // pred_check_branch
          %386 = sbr.rel (%p384) target = $region32
        $region31: #{tpu_custom_call.1} parent=11 // pred_region
          %s388 = ssub.s32 4096, 4096
          %389 = vsyncadd [#allocation17], %s388
          %s390 = sshll.u32 [#allocation16], 4
          %s391 = int_to_ptr.vmem [resolvable:$true] %s390
          %396 = dma.hbm_to_vmem [thread:$0]  %s7, 4096, %s391, [#allocation17], 128, 128, 8
        $region32: #{tpu_custom_call.1} parent=11 // pred_fallthru
          _
        // Predicated region
        $region33: #{tpu_custom_call.1} parent=11 // pred_check
          %p397 = pneg %p247
        $region34: #{tpu_custom_call.1} parent=11 // pred_check_branch
          %399 = sbr.rel (%p397) target = $region36
        $region35: #{tpu_custom_call.1} parent=11 // pred_region
          %s401 = ssub.s32 4096, 4096
          %402 = vsyncadd [#allocation17], %s401
          %s403 = sshll.u32 [#allocation18], 4
          %s404 = int_to_ptr.vmem [resolvable:$true] %s403
          %409 = dma.hbm_to_vmem [thread:$0]  %s8, 4096, %s404, [#allocation17], 128, 128, 8
        $region36: #{tpu_custom_call.1} parent=11 // pred_fallthru
          _
        // Predicated region
        $region37: #{tpu_custom_call.1} parent=11 // pred_check
          %p410 = pneg %p268
        $region38: #{tpu_custom_call.1} parent=11 // pred_check_branch
          %412 = sbr.rel (%p410) target = $region40
        $region39: #{tpu_custom_call.1} parent=11 // pred_region
          _
        $region40: #{tpu_custom_call.1} parent=11 // pred_fallthru
          _
        // Predicated region
        $region41: #{tpu_custom_call.1} parent=11 // pred_check
          %p413 = pneg %p289
        $region42: #{tpu_custom_call.1} parent=11 // pred_check_branch
          %415 = sbr.rel (%p413) target = $region44
        $region43: #{tpu_custom_call.1} parent=11 // pred_region
          _
        $region44: #{tpu_custom_call.1} parent=11 // pred_fallthru
          _
      $region12: #{tpu_custom_call.1} parent=5 // pred_fallthru
        _
      %p416 = scmp.lt.s32.totalorder %s29, 4
      // Predicated region
      $region45: #{tpu_custom_call.1} parent=5 // pred_check
        %p417 = pneg %p416
      $region46: #{tpu_custom_call.1} parent=5 // pred_check_branch
        %419 = sbr.rel (%p417) target = $region48
      $region47: #{tpu_custom_call.1} parent=5 // pred_region
        // Predicated region
        $region49: #{tpu_custom_call.1} parent=47 // pred_check
          %p420 = pneg %p63
        $region50: #{tpu_custom_call.1} parent=47 // pred_check_branch
          %422 = sbr.rel (%p420) target = $region52
        $region51: #{tpu_custom_call.1} parent=47 // pred_region
          %s423 = sand.u32 %s53, 1
          %s424 = scalar_lea.sflag [#allocation5], %s423
          %s425 = sand.u32 %s53, 1
          %s426 = smul.addr %s425, 16
          %s427 = scalar_lea.vmem [#allocation4], %s426
          %s429 = ssub.s32 256, 256
          %430 = vsyncadd %s424, %s429
          %s431 = smul.addr %s37, 2
          %s432 = smul.addr %s36, 4
          %s433 = sadd.s32 %s431, %s432
          %s434 = smul.addr %s433, 128
          %s435 = scalar_lea.hbm %s0, %s434
          %s437 = sshll.u32 %s427, 4
          %s438 = int_to_ptr.vmem [resolvable:$true] %s437
          %440 = dma.hbm_to_vmem [thread:$0]  %s435, 256, %s438, %s424
        $region52: #{tpu_custom_call.1} parent=47 // pred_fallthru
          _
        // Predicated region
        $region53: #{tpu_custom_call.1} parent=47 // pred_check
          %p441 = pneg %p89
        $region54: #{tpu_custom_call.1} parent=47 // pred_check_branch
          %443 = sbr.rel (%p441) target = $region56
        $region55: #{tpu_custom_call.1} parent=47 // pred_region
          %s444 = sand.u32 %s29, 1
          %s445 = scalar_lea.sflag [#allocation8], %s444
          %s446 = sand.u32 %s79, 1
          %s447 = smul.addr %s446, 16
          %s448 = scalar_lea.vmem [#allocation7], %s447
          %s450 = ssub.s32 256, 256
          %451 = vsyncadd %s445, %s450
          %s452 = smul.addr %s36, 4
          %s453 = smul.addr %s452, 64
          %s454 = scalar_lea.hbm %s1, %s453
          %s455 = sshll.u32 %s448, 4
          %s456 = int_to_ptr.vmem [resolvable:$true] %s455
          %461 = dma.hbm_to_vmem [thread:$0]  %s454, 256, %s456, %s445, 128, 128, 8
        $region56: #{tpu_custom_call.1} parent=47 // pred_fallthru
          _
        // Predicated region
        $region57: #{tpu_custom_call.1} parent=47 // pred_check
          %p462 = pneg %p115
        $region58: #{tpu_custom_call.1} parent=47 // pred_check_branch
          %464 = sbr.rel (%p462) target = $region60
        $region59: #{tpu_custom_call.1} parent=47 // pred_region
          %s465 = sand.u32 %s29, 1
          %s466 = scalar_lea.sflag [#allocation8], %s465
          %s467 = sand.u32 %s105, 1
          %s468 = scalar_lea.vmem [#allocation9], %s467
          %s470 = ssub.s32 16, 16
          %471 = vsyncadd %s466, %s470
          %s472 = smul.addr %s36, 16
          %s473 = scalar_lea.hbm %s2, %s472
          %s475 = sshll.u32 %s468, 4
          %s476 = int_to_ptr.vmem [resolvable:$true] %s475
          %478 = dma.hbm_to_vmem [thread:$0]  %s473, 16, %s476, %s466
        $region60: #{tpu_custom_call.1} parent=47 // pred_fallthru
          _
      $region48: #{tpu_custom_call.1} parent=5 // pred_fallthru
        _
      %p479 = scmp.le.s32.totalorder 1, %s29
      %p480 = scmp.lt.s32.totalorder %s29, 5
      %p481 = pnand %p479, %p480
      %p482 = pneg %p481
      // Predicated region
      $region61: #{tpu_custom_call.1} parent=5 // pred_check
        _
      $region62: #{tpu_custom_call.1} parent=5 // pred_check_branch
        %484 = sbr.rel (%p481) target = $region64
      $region63: #{tpu_custom_call.1} parent=5 // pred_region
        %s485 = ssub.s32 %s29, 1
        %s486 = sand.u32 %s56, 1
        %s487 = scalar_lea.sflag [#allocation5], %s486
        %s488 = sand.u32 %s56, 1
        %s489 = smul.addr %s488, 16
        %s490 = scalar_lea.vmem [#allocation4], %s489
        // Predicated region
        $region65: #{tpu_custom_call.1} parent=63 // pred_check
          %p491 = pneg %p69
        $region66: #{tpu_custom_call.1} parent=63 // pred_check_branch
          %493 = sbr.rel (%p491) target = $region68
        $region67: #{tpu_custom_call.1} parent=63 // pred_region
          %494 = dma.done %s487, 256
        $region68: #{tpu_custom_call.1} parent=63 // pred_fallthru
          _
        %s495 = sand.u32 %s34, 1
        %s496 = scalar_lea.sflag [#allocation8], %s495
        %s497 = sand.u32 %s82, 1
        %s498 = smul.addr %s497, 16
        %s499 = scalar_lea.vmem [#allocation7], %s498
        // Predicated region
        $region69: #{tpu_custom_call.1} parent=63 // pred_check
          %p500 = pneg %p95
        $region70: #{tpu_custom_call.1} parent=63 // pred_check_branch
          %502 = sbr.rel (%p500) target = $region72
        $region71: #{tpu_custom_call.1} parent=63 // pred_region
          %503 = dma.done %s496, 256
        $region72: #{tpu_custom_call.1} parent=63 // pred_fallthru
          _
        %s504 = sand.u32 %s34, 1
        %s505 = scalar_lea.sflag [#allocation8], %s504
        %s506 = sand.u32 %s108, 1
        %s507 = scalar_lea.vmem [#allocation9], %s506
        // Predicated region
        $region73: #{tpu_custom_call.1} parent=63 // pred_check
          %p508 = pneg %p121
        $region74: #{tpu_custom_call.1} parent=63 // pred_check_branch
          %510 = sbr.rel (%p508) target = $region76
        $region75: #{tpu_custom_call.1} parent=63 // pred_region
          %511 = dma.done %s505, 16
        $region76: #{tpu_custom_call.1} parent=63 // pred_fallthru
          _
        // Predicated region
        $region77: #{tpu_custom_call.1} parent=63 // pred_check
          %p512 = pneg %p142
        $region78: #{tpu_custom_call.1} parent=63 // pred_check_branch
          %514 = sbr.rel (%p512) target = $region80
        $region79: #{tpu_custom_call.1} parent=63 // pred_region
          %515 = dma.done [#allocation11], 4096
        $region80: #{tpu_custom_call.1} parent=63 // pred_fallthru
          _
        // Predicated region
        $region81: #{tpu_custom_call.1} parent=63 // pred_check
          %p516 = pneg %p163
        $region82: #{tpu_custom_call.1} parent=63 // pred_check_branch
          %518 = sbr.rel (%p516) target = $region84
        $region83: #{tpu_custom_call.1} parent=63 // pred_region
          %519 = dma.done [#allocation11], 4096
        $region84: #{tpu_custom_call.1} parent=63 // pred_fallthru
          _
        // Predicated region
        $region85: #{tpu_custom_call.1} parent=63 // pred_check
          %p520 = pneg %p184
        $region86: #{tpu_custom_call.1} parent=63 // pred_check_branch
          %522 = sbr.rel (%p520) target = $region88
        $region87: #{tpu_custom_call.1} parent=63 // pred_region
          %523 = dma.done [#allocation14], 4096
        $region88: #{tpu_custom_call.1} parent=63 // pred_fallthru
          _
        // Predicated region
        $region89: #{tpu_custom_call.1} parent=63 // pred_check
          %p524 = pneg %p205
        $region90: #{tpu_custom_call.1} parent=63 // pred_check_branch
          %526 = sbr.rel (%p524) target = $region92
        $region91: #{tpu_custom_call.1} parent=63 // pred_region
          %527 = dma.done [#allocation14], 4096
        $region92: #{tpu_custom_call.1} parent=63 // pred_fallthru
          _
        // Predicated region
        $region93: #{tpu_custom_call.1} parent=63 // pred_check
          %p528 = pneg %p226
        $region94: #{tpu_custom_call.1} parent=63 // pred_check_branch
          %530 = sbr.rel (%p528) target = $region96
        $region95: #{tpu_custom_call.1} parent=63 // pred_region
          %531 = dma.done [#allocation17], 4096
        $region96: #{tpu_custom_call.1} parent=63 // pred_fallthru
          _
        // Predicated region
        $region97: #{tpu_custom_call.1} parent=63 // pred_check
          %p532 = pneg %p247
        $region98: #{tpu_custom_call.1} parent=63 // pred_check_branch
          %534 = sbr.rel (%p532) target = $region100
        $region99: #{tpu_custom_call.1} parent=63 // pred_region
          %535 = dma.done [#allocation17], 4096
        $region100: #{tpu_custom_call.1} parent=63 // pred_fallthru
          _
        %s536 = sand.u32 %s56, 1
        %s537 = scalar_lea.sflag [#allocation5], %s536
        %s538 = sand.u32 %s56, 1
        %s539 = smul.addr %s538, 16
        %s540 = scalar_lea.vmem [#allocation4], %s539
        %p541 = pneg %p69
        %p542 = pneg %p66
        %s543 = sand.u32 %s34, 1
        %s544 = scalar_lea.sflag [#allocation8], %s543
        %s545 = sand.u32 %s82, 1
        %s546 = smul.addr %s545, 16
        %s547 = scalar_lea.vmem [#allocation7], %s546
        %p548 = pneg %p95
        %p549 = pneg %p92
        %s550 = sand.u32 %s34, 1
        %s551 = scalar_lea.sflag [#allocation8], %s550
        %s552 = sand.u32 %s108, 1
        %s553 = scalar_lea.vmem [#allocation9], %s552
        %p554 = pneg %p121
        %p555 = pneg %p118
        %p556 = pneg %p142
        %p557 = pneg %p139
        %p558 = pneg %p163
        %p559 = pneg %p160
        %p560 = pneg %p184
        %p561 = pneg %p181
        %p562 = pneg %p205
        %p563 = pneg %p202
        %p564 = pneg %p226
        %p565 = pneg %p223
        %p566 = pneg %p247
        %p567 = pneg %p244
        %p568 = pneg %p268
        %p569 = pneg %p265
        %p570 = pneg %p289
        %p571 = pneg %p286
        %p572 = pneg %p317
        %p573 = pneg %p314
        %s574 = sand.u32 %s304, 1
        %s575 = scalar_lea.sflag [#allocation6], %s574
        %s576 = sand.u32 %s304, 1
        %s577 = smul.addr %s576, 16
        %s578 = scalar_lea.vmem [#allocation19], %s577
        %v580 = vld [vmem:[%s490] sm:$0xff]
        %v581 = vld [vmem:[%s490 + $0x8] sm:$0xff]
        %v582 = vld [vmem:[%s507] sm:$0x1]
        %v583 = vmul.f32 %v582, -1e+09
        %v584 = vld [vmem:[%s9] sm:$0xff]
        %v585 = vld [vmem:[%s9 + $0x8] sm:$0xff]
        %v586 = vld [vmem:[%s10] sm:$0x3]
        %p587 = scmp.eq.s32.totalorder %s39, 0
        // Predicated region
        $region101: #{tpu_custom_call.1} parent=63 // pred_check
          %p588 = pneg %p587
        $region102: #{tpu_custom_call.1} parent=63 // pred_check_branch
          %590 = sbr.rel (%p588) target = $region104
        $region103: #{tpu_custom_call.1} parent=63 // pred_region
          %v591 = vld [vmem:[%s499] sm:$0xff]
          %v592 = vld [vmem:[%s499 + $0x8] sm:$0xff]
          %v593 = vld [vmem:[#allocation12] sm:$0xff]
          %v594 = vld [vmem:[#allocation12 + $0x8] sm:$0xff]
          %v595 = vld [vmem:[#allocation12 + $0x10] sm:$0xff]
          %v596 = vld [vmem:[#allocation12 + $0x18] sm:$0xff]
          %v597 = vld [vmem:[#allocation12 + $0x20] sm:$0xff]
          %v598 = vld [vmem:[#allocation12 + $0x28] sm:$0xff]
          %v599 = vld [vmem:[#allocation12 + $0x30] sm:$0xff]
          %v600 = vld [vmem:[#allocation12 + $0x38] sm:$0xff]
          %v601 = vld [vmem:[#allocation12 + $0x40] sm:$0xff]
          %v602 = vld [vmem:[#allocation12 + $0x48] sm:$0xff]
          %v603 = vld [vmem:[#allocation12 + $0x50] sm:$0xff]
          %v604 = vld [vmem:[#allocation12 + $0x58] sm:$0xff]
          %v605 = vld [vmem:[#allocation12 + $0x60] sm:$0xff]
          %v606 = vld [vmem:[#allocation12 + $0x68] sm:$0xff]
          %v607 = vld [vmem:[#allocation12 + $0x70] sm:$0xff]
          %v608 = vld [vmem:[#allocation12 + $0x78] sm:$0xff]
          %v609 = vld [vmem:[#allocation12 + $0x80] sm:$0xff]
          %v610 = vld [vmem:[#allocation12 + $0x88] sm:$0xff]
          %v611 = vld [vmem:[#allocation12 + $0x90] sm:$0xff]
          %v612 = vld [vmem:[#allocation12 + $0x98] sm:$0xff]
          %v613 = vld [vmem:[#allocation12 + $0xa0] sm:$0xff]
          %v614 = vld [vmem:[#allocation12 + $0xa8] sm:$0xff]
          %v615 = vld [vmem:[#allocation12 + $0xb0] sm:$0xff]
          %v616 = vld [vmem:[#allocation12 + $0xb8] sm:$0xff]
          %v617 = vld [vmem:[#allocation12 + $0xc0] sm:$0xff]
          %v618 = vld [vmem:[#allocation12 + $0xc8] sm:$0xff]
          %v619 = vld [vmem:[#allocation12 + $0xd0] sm:$0xff]
          %v620 = vld [vmem:[#allocation12 + $0xd8] sm:$0xff]
          %v621 = vld [vmem:[#allocation12 + $0xe0] sm:$0xff]
          %v622 = vld [vmem:[#allocation12 + $0xe8] sm:$0xff]
          %v623 = vld [vmem:[#allocation12 + $0xf0] sm:$0xff]
          %v624 = vld [vmem:[#allocation12 + $0xf8] sm:$0xff]
          %v625 = vlaneseq
          %v626 = vshrl.u32 %v625, 7
          %v627 = vsub.s32 1, %v626
          %v628 = vrot.slane %v584, %v627
          %v629 = vlaneseq
          %v630 = vshrl.u32 %v629, 7
          %v631 = vsub.s32 1, %v630
          %v632 = vrot.slane %v585, %v631
          %v635 = vunpack.c.l.b16 %v591
          %v636 = vunpack.c.h.b16 %v591
          %v637 = vunpack.c.l.b16 %v592
          %v638 = vunpack.c.h.b16 %v592
          %v639 = vpack.c.b16 %v637, %v635
          %v640 = vpack.c.b16 %v638, %v636
          %v675 = vunpack.c.l.b16 %v593
          %v676 = vunpack.c.h.b16 %v593
          %v677 = vunpack.c.l.b16 %v594
          %v678 = vunpack.c.h.b16 %v594
          %v679 = vunpack.c.l.b16 %v595
          %v680 = vunpack.c.h.b16 %v595
          %v681 = vunpack.c.l.b16 %v596
          %v682 = vunpack.c.h.b16 %v596
          %v683 = vunpack.c.l.b16 %v597
          %v684 = vunpack.c.h.b16 %v597
          %v685 = vunpack.c.l.b16 %v598
          %v686 = vunpack.c.h.b16 %v598
          %v687 = vunpack.c.l.b16 %v599
          %v688 = vunpack.c.h.b16 %v599
          %v689 = vunpack.c.l.b16 %v600
          %v690 = vunpack.c.h.b16 %v600
          %v691 = vunpack.c.l.b16 %v601
          %v692 = vunpack.c.h.b16 %v601
          %v693 = vunpack.c.l.b16 %v602
          %v694 = vunpack.c.h.b16 %v602
          %v695 = vunpack.c.l.b16 %v603
          %v696 = vunpack.c.h.b16 %v603
          %v697 = vunpack.c.l.b16 %v604
          %v698 = vunpack.c.h.b16 %v604
          %v699 = vunpack.c.l.b16 %v605
          %v700 = vunpack.c.h.b16 %v605
          %v701 = vunpack.c.l.b16 %v606
          %v702 = vunpack.c.h.b16 %v606
          %v703 = vunpack.c.l.b16 %v607
          %v704 = vunpack.c.h.b16 %v607
          %v705 = vunpack.c.l.b16 %v608
          %v706 = vunpack.c.h.b16 %v608
          %v707 = vunpack.c.l.b16 %v609
          %v708 = vunpack.c.h.b16 %v609
          %v709 = vunpack.c.l.b16 %v610
          %v710 = vunpack.c.h.b16 %v610
          %v711 = vunpack.c.l.b16 %v611
          %v712 = vunpack.c.h.b16 %v611
          %v713 = vunpack.c.l.b16 %v612
          %v714 = vunpack.c.h.b16 %v612
          %v715 = vunpack.c.l.b16 %v613
          %v716 = vunpack.c.h.b16 %v613
          %v717 = vunpack.c.l.b16 %v614
          %v718 = vunpack.c.h.b16 %v614
          %v719 = vunpack.c.l.b16 %v615
          %v720 = vunpack.c.h.b16 %v615
          %v721 = vunpack.c.l.b16 %v616
          %v722 = vunpack.c.h.b16 %v616
          %v723 = vunpack.c.l.b16 %v617
          %v724 = vunpack.c.h.b16 %v617
          %v725 = vunpack.c.l.b16 %v618
          %v726 = vunpack.c.h.b16 %v618
          %v727 = vunpack.c.l.b16 %v619
          %v728 = vunpack.c.h.b16 %v619
          %v729 = vunpack.c.l.b16 %v620
          %v730 = vunpack.c.h.b16 %v620
          %v731 = vunpack.c.l.b16 %v621
          %v732 = vunpack.c.h.b16 %v621
          %v733 = vunpack.c.l.b16 %v622
          %v734 = vunpack.c.h.b16 %v622
          %v735 = vunpack.c.l.b16 %v623
          %v736 = vunpack.c.h.b16 %v623
          %v737 = vunpack.c.l.b16 %v624
          %v738 = vunpack.c.h.b16 %v624
          %v739 = vpack.c.b16 %v677, %v675
          %v740 = vpack.c.b16 %v678, %v676
          %v741 = vpack.c.b16 %v681, %v679
          %v742 = vpack.c.b16 %v682, %v680
          %v743 = vpack.c.b16 %v685, %v683
          %v744 = vpack.c.b16 %v686, %v684
          %v745 = vpack.c.b16 %v689, %v687
          %v746 = vpack.c.b16 %v690, %v688
          %v747 = vpack.c.b16 %v693, %v691
          %v748 = vpack.c.b16 %v694, %v692
          %v749 = vpack.c.b16 %v697, %v695
          %v750 = vpack.c.b16 %v698, %v696
          %v751 = vpack.c.b16 %v701, %v699
          %v752 = vpack.c.b16 %v702, %v700
          %v753 = vpack.c.b16 %v705, %v703
          %v754 = vpack.c.b16 %v706, %v704
          %v755 = vpack.c.b16 %v709, %v707
          %v756 = vpack.c.b16 %v710, %v708
          %v757 = vpack.c.b16 %v713, %v711
          %v758 = vpack.c.b16 %v714, %v712
          %v759 = vpack.c.b16 %v717, %v715
          %v760 = vpack.c.b16 %v718, %v716
          %v761 = vpack.c.b16 %v721, %v719
          %v762 = vpack.c.b16 %v722, %v720
          %v763 = vpack.c.b16 %v725, %v723
          %v764 = vpack.c.b16 %v726, %v724
          %v765 = vpack.c.b16 %v729, %v727
          %v766 = vpack.c.b16 %v730, %v728
          %v767 = vpack.c.b16 %v733, %v731
          %v768 = vpack.c.b16 %v734, %v732
          %v769 = vpack.c.b16 %v737, %v735
          %v770 = vpack.c.b16 %v738, %v736
          %803 = vmatprep.subr.bf16.mxu0 %v754
          %804 = vmatpush1.bf16.msra.mxu0 %v753
          %805 = vmatprep.subr.bf16.mxu0 %v752
          %806 = vmatpush1.bf16.msra.mxu0 %v751
          %807 = vmatprep.subr.bf16.mxu0 %v750
          %808 = vmatpush1.bf16.msra.mxu0 %v749
          %809 = vmatprep.subr.bf16.mxu0 %v748
          %810 = vmatpush1.bf16.msra.mxu0 %v747
          %811 = vmatprep.subr.bf16.mxu0 %v746
          %812 = vmatpush1.bf16.msra.mxu0 %v745
          %813 = vmatprep.subr.bf16.mxu0 %v744
          %814 = vmatpush1.bf16.msra.mxu0 %v743
          %815 = vmatprep.subr.bf16.mxu0 %v742
          %816 = vmatpush1.bf16.msra.mxu0 %v741
          %817 = vmatprep.subr.bf16.mxu0 %v740
          %818 = vmatpush1.bf16.msra.mxu0 %v739
          %819 = vmatprep.subr.bf16.mxu0 %v770
          %820 = vmatpush2.bf16.msra.mxu0 %v769
          %821 = vmatprep.subr.bf16.mxu0 %v768
          %822 = vmatpush2.bf16.msra.mxu0 %v767
          %823 = vmatprep.subr.bf16.mxu0 %v766
          %824 = vmatpush2.bf16.msra.mxu0 %v765
          %825 = vmatprep.subr.bf16.mxu0 %v764
          %826 = vmatpush2.bf16.msra.mxu0 %v763
          %827 = vmatprep.subr.bf16.mxu0 %v762
          %828 = vmatpush2.bf16.msra.mxu0 %v761
          %829 = vmatprep.subr.bf16.mxu0 %v760
          %830 = vmatpush2.bf16.msra.mxu0 %v759
          %831 = vmatprep.subr.bf16.mxu0 %v758
          %832 = vmatpush2.bf16.msra.mxu0 %v757
          %833 = vmatprep.subr.bf16.mxu0 %v756
          %834 = vmatpush2.bf16.msra.mxu0 %v755
          %835 = vmatprep.mubr.bf16.mxu0 %v640
          %836 = vmatmul.mubr.bf16.gmra.mxu0 %v639
          %v837 = vpop.f32.mrf.mxu0
          %v838 = vadd.f32 %v628, %v837
          %v839 = vpop.f32.mrf.mxu0
          %v840 = vadd.f32 %v632, %v839
          %v841 = vpop.f32.mrf.mxu0
          %v842 = vadd.f32 %v628, %v841
          %v843 = vpop.f32.mrf.mxu0
          %v844 = vadd.f32 %v632, %v843
          %845 = vdwg.mxu0
          %v846 = vld [vmem:[#allocation13] sm:$0xff]
          %v847 = vld [vmem:[#allocation13 + $0x8] sm:$0xff]
          %v848 = vld [vmem:[#allocation13 + $0x10] sm:$0xff]
          %v849 = vld [vmem:[#allocation13 + $0x18] sm:$0xff]
          %v850 = vld [vmem:[#allocation13 + $0x20] sm:$0xff]
          %v851 = vld [vmem:[#allocation13 + $0x28] sm:$0xff]
          %v852 = vld [vmem:[#allocation13 + $0x30] sm:$0xff]
          %v853 = vld [vmem:[#allocation13 + $0x38] sm:$0xff]
          %v854 = vld [vmem:[#allocation13 + $0x40] sm:$0xff]
          %v855 = vld [vmem:[#allocation13 + $0x48] sm:$0xff]
          %v856 = vld [vmem:[#allocation13 + $0x50] sm:$0xff]
          %v857 = vld [vmem:[#allocation13 + $0x58] sm:$0xff]
          %v858 = vld [vmem:[#allocation13 + $0x60] sm:$0xff]
          %v859 = vld [vmem:[#allocation13 + $0x68] sm:$0xff]
          %v860 = vld [vmem:[#allocation13 + $0x70] sm:$0xff]
          %v861 = vld [vmem:[#allocation13 + $0x78] sm:$0xff]
          %v862 = vld [vmem:[#allocation13 + $0x80] sm:$0xff]
          %v863 = vld [vmem:[#allocation13 + $0x88] sm:$0xff]
          %v864 = vld [vmem:[#allocation13 + $0x90] sm:$0xff]
          %v865 = vld [vmem:[#allocation13 + $0x98] sm:$0xff]
          %v866 = vld [vmem:[#allocation13 + $0xa0] sm:$0xff]
          %v867 = vld [vmem:[#allocation13 + $0xa8] sm:$0xff]
          %v868 = vld [vmem:[#allocation13 + $0xb0] sm:$0xff]
          %v869 = vld [vmem:[#allocation13 + $0xb8] sm:$0xff]
          %v870 = vld [vmem:[#allocation13 + $0xc0] sm:$0xff]
          %v871 = vld [vmem:[#allocation13 + $0xc8] sm:$0xff]
          %v872 = vld [vmem:[#allocation13 + $0xd0] sm:$0xff]
          %v873 = vld [vmem:[#allocation13 + $0xd8] sm:$0xff]
          %v874 = vld [vmem:[#allocation13 + $0xe0] sm:$0xff]
          %v875 = vld [vmem:[#allocation13 + $0xe8] sm:$0xff]
          %v876 = vld [vmem:[#allocation13 + $0xf0] sm:$0xff]
          %v877 = vld [vmem:[#allocation13 + $0xf8] sm:$0xff]
          %v878 = vlaneseq
          %v879 = vshrl.u32 %v878, 7
          %v880 = vsub.s32 2, %v879
          %v881 = vrot.slane %v584, %v880
          %v882 = vlaneseq
          %v883 = vshrl.u32 %v882, 7
          %v884 = vsub.s32 2, %v883
          %v885 = vrot.slane %v585, %v884
          %v918 = vunpack.c.l.b16 %v846
          %v919 = vunpack.c.h.b16 %v846
          %v920 = vunpack.c.l.b16 %v847
          %v921 = vunpack.c.h.b16 %v847
          %v922 = vunpack.c.l.b16 %v848
          %v923 = vunpack.c.h.b16 %v848
          %v924 = vunpack.c.l.b16 %v849
          %v925 = vunpack.c.h.b16 %v849
          %v926 = vunpack.c.l.b16 %v850
          %v927 = vunpack.c.h.b16 %v850
          %v928 = vunpack.c.l.b16 %v851
          %v929 = vunpack.c.h.b16 %v851
          %v930 = vunpack.c.l.b16 %v852
          %v931 = vunpack.c.h.b16 %v852
          %v932 = vunpack.c.l.b16 %v853
          %v933 = vunpack.c.h.b16 %v853
          %v934 = vunpack.c.l.b16 %v854
          %v935 = vunpack.c.h.b16 %v854
          %v936 = vunpack.c.l.b16 %v855
          %v937 = vunpack.c.h.b16 %v855
          %v938 = vunpack.c.l.b16 %v856
          %v939 = vunpack.c.h.b16 %v856
          %v940 = vunpack.c.l.b16 %v857
          %v941 = vunpack.c.h.b16 %v857
          %v942 = vunpack.c.l.b16 %v858
          %v943 = vunpack.c.h.b16 %v858
          %v944 = vunpack.c.l.b16 %v859
          %v945 = vunpack.c.h.b16 %v859
          %v946 = vunpack.c.l.b16 %v860
          %v947 = vunpack.c.h.b16 %v860
          %v948 = vunpack.c.l.b16 %v861
          %v949 = vunpack.c.h.b16 %v861
          %v950 = vunpack.c.l.b16 %v862
          %v951 = vunpack.c.h.b16 %v862
          %v952 = vunpack.c.l.b16 %v863
          %v953 = vunpack.c.h.b16 %v863
          %v954 = vunpack.c.l.b16 %v864
          %v955 = vunpack.c.h.b16 %v864
          %v956 = vunpack.c.l.b16 %v865
          %v957 = vunpack.c.h.b16 %v865
          %v958 = vunpack.c.l.b16 %v866
          %v959 = vunpack.c.h.b16 %v866
          %v960 = vunpack.c.l.b16 %v867
          %v961 = vunpack.c.h.b16 %v867
          %v962 = vunpack.c.l.b16 %v868
          %v963 = vunpack.c.h.b16 %v868
          %v964 = vunpack.c.l.b16 %v869
          %v965 = vunpack.c.h.b16 %v869
          %v966 = vunpack.c.l.b16 %v870
          %v967 = vunpack.c.h.b16 %v870
          %v968 = vunpack.c.l.b16 %v871
          %v969 = vunpack.c.h.b16 %v871
          %v970 = vunpack.c.l.b16 %v872
          %v971 = vunpack.c.h.b16 %v872
          %v972 = vunpack.c.l.b16 %v873
          %v973 = vunpack.c.h.b16 %v873
          %v974 = vunpack.c.l.b16 %v874
          %v975 = vunpack.c.h.b16 %v874
          %v976 = vunpack.c.l.b16 %v875
          %v977 = vunpack.c.h.b16 %v875
          %v978 = vunpack.c.l.b16 %v876
          %v979 = vunpack.c.h.b16 %v876
          %v980 = vunpack.c.l.b16 %v877
          %v981 = vunpack.c.h.b16 %v877
          %v982 = vpack.c.b16 %v920, %v918
          %v983 = vpack.c.b16 %v921, %v919
          %v984 = vpack.c.b16 %v924, %v922
          %v985 = vpack.c.b16 %v925, %v923
          %v986 = vpack.c.b16 %v928, %v926
          %v987 = vpack.c.b16 %v929, %v927
          %v988 = vpack.c.b16 %v932, %v930
          %v989 = vpack.c.b16 %v933, %v931
          %v990 = vpack.c.b16 %v936, %v934
          %v991 = vpack.c.b16 %v937, %v935
          %v992 = vpack.c.b16 %v940, %v938
          %v993 = vpack.c.b16 %v941, %v939
          %v994 = vpack.c.b16 %v944, %v942
          %v995 = vpack.c.b16 %v945, %v943
          %v996 = vpack.c.b16 %v948, %v946
          %v997 = vpack.c.b16 %v949, %v947
          %v998 = vpack.c.b16 %v952, %v950
          %v999 = vpack.c.b16 %v953, %v951
          %v1000 = vpack.c.b16 %v956, %v954
          %v1001 = vpack.c.b16 %v957, %v955
          %v1002 = vpack.c.b16 %v960, %v958
          %v1003 = vpack.c.b16 %v961, %v959
          %v1004 = vpack.c.b16 %v964, %v962
          %v1005 = vpack.c.b16 %v965, %v963
          %v1006 = vpack.c.b16 %v968, %v966
          %v1007 = vpack.c.b16 %v969, %v967
          %v1008 = vpack.c.b16 %v972, %v970
          %v1009 = vpack.c.b16 %v973, %v971
          %v1010 = vpack.c.b16 %v976, %v974
          %v1011 = vpack.c.b16 %v977, %v975
          %v1012 = vpack.c.b16 %v980, %v978
          %v1013 = vpack.c.b16 %v981, %v979
          %1046 = vmatprep.subr.bf16.mxu0 %v997
          %1047 = vmatpush1.bf16.msra.mxu0 %v996
          %1048 = vmatprep.subr.bf16.mxu0 %v995
          %1049 = vmatpush1.bf16.msra.mxu0 %v994
          %1050 = vmatprep.subr.bf16.mxu0 %v993
          %1051 = vmatpush1.bf16.msra.mxu0 %v992
          %1052 = vmatprep.subr.bf16.mxu0 %v991
          %1053 = vmatpush1.bf16.msra.mxu0 %v990
          %1054 = vmatprep.subr.bf16.mxu0 %v989
          %1055 = vmatpush1.bf16.msra.mxu0 %v988
          %1056 = vmatprep.subr.bf16.mxu0 %v987
          %1057 = vmatpush1.bf16.msra.mxu0 %v986
          %1058 = vmatprep.subr.bf16.mxu0 %v985
          %1059 = vmatpush1.bf16.msra.mxu0 %v984
          %1060 = vmatprep.subr.bf16.mxu0 %v983
          %1061 = vmatpush1.bf16.msra.mxu0 %v982
          %1062 = vmatprep.subr.bf16.mxu0 %v1013
          %1063 = vmatpush2.bf16.msra.mxu0 %v1012
          %1064 = vmatprep.subr.bf16.mxu0 %v1011
          %1065 = vmatpush2.bf16.msra.mxu0 %v1010
          %1066 = vmatprep.subr.bf16.mxu0 %v1009
          %1067 = vmatpush2.bf16.msra.mxu0 %v1008
          %1068 = vmatprep.subr.bf16.mxu0 %v1007
          %1069 = vmatpush2.bf16.msra.mxu0 %v1006
          %1070 = vmatprep.subr.bf16.mxu0 %v1005
          %1071 = vmatpush2.bf16.msra.mxu0 %v1004
          %1072 = vmatprep.subr.bf16.mxu0 %v1003
          %1073 = vmatpush2.bf16.msra.mxu0 %v1002
          %1074 = vmatprep.subr.bf16.mxu0 %v1001
          %1075 = vmatpush2.bf16.msra.mxu0 %v1000
          %1076 = vmatprep.subr.bf16.mxu0 %v999
          %1077 = vmatpush2.bf16.msra.mxu0 %v998
          %1078 = vmatprep.mubr.bf16.mxu0 %v640
          %1079 = vmatmul.mubr.bf16.gmra.mxu0 %v639
          %v1080 = vpop.f32.mrf.mxu0
          %v1081 = vadd.f32 %v881, %v1080
          %v1082 = vpop.f32.mrf.mxu0
          %v1083 = vadd.f32 %v885, %v1082
          %v1084 = vpop.f32.mrf.mxu0
          %v1085 = vadd.f32 %v881, %v1084
          %v1086 = vpop.f32.mrf.mxu0
          %v1087 = vadd.f32 %v885, %v1086
          %1088 = vdwg.mxu0
          %v1089 = vcombine.high %v838, 0.0
          %v1091 = vunpack.c.l.s4 1983009808
          %v1092 = vunpack.c.0.s8 %v1091
          %v1093 = vlaneseq
          %v1094 = vshrl.u32 %v1093, 7
          %v1095 = vsub.s32 %v1092, %v1094
          %v1096 = vrot.slane %v838, %v1095
          %v1098 = vunpack.c.l.s4 1983009808
          %v1099 = vunpack.c.0.s8 %v1098
          %v1100 = vlaneseq
          %v1101 = vshrl.u32 %v1100, 7
          %v1102 = vsub.s32 %v1099, %v1101
          %v1103 = vrot.slane %v1089, %v1102
          %v1104 = vcombine.high %v840, 0.0
          %v1106 = vunpack.c.l.s4 1983009808
          %v1107 = vunpack.c.0.s8 %v1106
          %v1108 = vlaneseq
          %v1109 = vshrl.u32 %v1108, 7
          %v1110 = vsub.s32 %v1107, %v1109
          %v1111 = vrot.slane %v840, %v1110
          %v1113 = vunpack.c.l.s4 1983009808
          %v1114 = vunpack.c.0.s8 %v1113
          %v1115 = vlaneseq
          %v1116 = vshrl.u32 %v1115, 7
          %v1117 = vsub.s32 %v1114, %v1116
          %v1118 = vrot.slane %v1104, %v1117
          %v1119 = vcombine.low %v1096, %v1111
          %v1120 = vcombine.high %v1096, %v1111
          %v1122 = vunpack.c.l.s4 1934713408
          %v1123 = vunpack.c.0.s8 %v1122
          %v1124 = vlaneseq
          %v1125 = vshrl.u32 %v1124, 7
          %v1126 = vsub.s32 %v1123, %v1125
          %v1127 = vrot.slane %v1119, %v1126
          %v1129 = vunpack.c.l.s4 1934713408
          %v1130 = vunpack.c.0.s8 %v1129
          %v1131 = vlaneseq
          %v1132 = vshrl.u32 %v1131, 7
          %v1133 = vsub.s32 %v1130, %v1132
          %v1134 = vrot.slane %v1120, %v1133
          %v1135 = vcombine.low %v1103, %v1118
          %v1136 = vcombine.high %v1103, %v1118
          %v1138 = vunpack.c.l.s4 1934713408
          %v1139 = vunpack.c.0.s8 %v1138
          %v1140 = vlaneseq
          %v1141 = vshrl.u32 %v1140, 7
          %v1142 = vsub.s32 %v1139, %v1141
          %v1143 = vrot.slane %v1135, %v1142
          %v1145 = vunpack.c.l.s4 1934713408
          %v1146 = vunpack.c.0.s8 %v1145
          %v1147 = vlaneseq
          %v1148 = vshrl.u32 %v1147, 7
          %v1149 = vsub.s32 %v1146, %v1148
          %v1150 = vrot.slane %v1136, %v1149
          %v1151 = vcombine.high %v1127, 0.0
          %v1152 = vcombine.high %v1134, 0.0
          %v1153 = vcombine.high %v1143, 0.0
          %v1154 = vcombine.high %v1150, 0.0
          %v1155 = vcombine.high %v842, 0.0
          %v1157 = vunpack.c.l.s4 1983009808
          %v1158 = vunpack.c.0.s8 %v1157
          %v1159 = vlaneseq
          %v1160 = vshrl.u32 %v1159, 7
          %v1161 = vsub.s32 %v1158, %v1160
          %v1162 = vrot.slane %v842, %v1161
          %v1164 = vunpack.c.l.s4 1983009808
          %v1165 = vunpack.c.0.s8 %v1164
          %v1166 = vlaneseq
          %v1167 = vshrl.u32 %v1166, 7
          %v1168 = vsub.s32 %v1165, %v1167
          %v1169 = vrot.slane %v1155, %v1168
          %v1170 = vcombine.high %v844, 0.0
          %v1172 = vunpack.c.l.s4 1983009808
          %v1173 = vunpack.c.0.s8 %v1172
          %v1174 = vlaneseq
          %v1175 = vshrl.u32 %v1174, 7
          %v1176 = vsub.s32 %v1173, %v1175
          %v1177 = vrot.slane %v844, %v1176
          %v1179 = vunpack.c.l.s4 1983009808
          %v1180 = vunpack.c.0.s8 %v1179
          %v1181 = vlaneseq
          %v1182 = vshrl.u32 %v1181, 7
          %v1183 = vsub.s32 %v1180, %v1182
          %v1184 = vrot.slane %v1170, %v1183
          %v1185 = vcombine.low %v1162, %v1177
          %v1186 = vcombine.high %v1162, %v1177
          %v1188 = vunpack.c.l.s4 1934713408
          %v1189 = vunpack.c.0.s8 %v1188
          %v1190 = vlaneseq
          %v1191 = vshrl.u32 %v1190, 7
          %v1192 = vsub.s32 %v1189, %v1191
          %v1193 = vrot.slane %v1185, %v1192
          %v1195 = vunpack.c.l.s4 1934713408
          %v1196 = vunpack.c.0.s8 %v1195
          %v1197 = vlaneseq
          %v1198 = vshrl.u32 %v1197, 7
          %v1199 = vsub.s32 %v1196, %v1198
          %v1200 = vrot.slane %v1186, %v1199
          %v1201 = vcombine.low %v1169, %v1184
          %v1202 = vcombine.high %v1169, %v1184
          %v1204 = vunpack.c.l.s4 1934713408
          %v1205 = vunpack.c.0.s8 %v1204
          %v1206 = vlaneseq
          %v1207 = vshrl.u32 %v1206, 7
          %v1208 = vsub.s32 %v1205, %v1207
          %v1209 = vrot.slane %v1201, %v1208
          %v1211 = vunpack.c.l.s4 1934713408
          %v1212 = vunpack.c.0.s8 %v1211
          %v1213 = vlaneseq
          %v1214 = vshrl.u32 %v1213, 7
          %v1215 = vsub.s32 %v1212, %v1214
          %v1216 = vrot.slane %v1202, %v1215
          %v1217 = vcombine.high %v1193, 0.0
          %v1218 = vcombine.high %v1200, 0.0
          %v1219 = vcombine.high %v1209, 0.0
          %v1220 = vcombine.high %v1216, 0.0
          %v1221 = vcombine.low %v1127, %v1134
          %v1223 = vunpack.c.l.s4 1983009808
          %v1224 = vunpack.c.0.s8 %v1223
          %v1225 = vlaneseq
          %v1226 = vshrl.u32 %v1225, 7
          %v1227 = vsub.s32 %v1224, %v1226
          %v1228 = vrot.slane %v1221, %v1227
          %v1229 = vcombine.low %v1151, %v1152
          %v1231 = vunpack.c.l.s4 1983009808
          %v1232 = vunpack.c.0.s8 %v1231
          %v1233 = vlaneseq
          %v1234 = vshrl.u32 %v1233, 7
          %v1235 = vsub.s32 %v1232, %v1234
          %v1236 = vrot.slane %v1229, %v1235
          %v1237 = vcombine.low %v1143, %v1150
          %v1239 = vunpack.c.l.s4 1983009808
          %v1240 = vunpack.c.0.s8 %v1239
          %v1241 = vlaneseq
          %v1242 = vshrl.u32 %v1241, 7
          %v1243 = vsub.s32 %v1240, %v1242
          %v1244 = vrot.slane %v1237, %v1243
          %v1245 = vcombine.low %v1153, %v1154
          %v1247 = vunpack.c.l.s4 1983009808
          %v1248 = vunpack.c.0.s8 %v1247
          %v1249 = vlaneseq
          %v1250 = vshrl.u32 %v1249, 7
          %v1251 = vsub.s32 %v1248, %v1250
          %v1252 = vrot.slane %v1245, %v1251
          %v1253 = vcombine.low %v1228, %v1236
          %v1255 = vunpack.c.l.s4 1934713408
          %v1256 = vunpack.c.0.s8 %v1255
          %v1257 = vlaneseq
          %v1258 = vshrl.u32 %v1257, 7
          %v1259 = vsub.s32 %v1256, %v1258
          %v1260 = vrot.slane %v1253, %v1259
          %v1261 = vcombine.low %v1244, %v1252
          %v1263 = vunpack.c.l.s4 1934713408
          %v1264 = vunpack.c.0.s8 %v1263
          %v1265 = vlaneseq
          %v1266 = vshrl.u32 %v1265, 7
          %v1267 = vsub.s32 %v1264, %v1266
          %v1268 = vrot.slane %v1261, %v1267
          %v1269 = vcombine.low %v1260, %v1268
          %v1270 = vcombine.high %v1260, %v1268
          %v1271 = vcombine.low %v1193, %v1200
          %v1273 = vunpack.c.l.s4 1983009808
          %v1274 = vunpack.c.0.s8 %v1273
          %v1275 = vlaneseq
          %v1276 = vshrl.u32 %v1275, 7
          %v1277 = vsub.s32 %v1274, %v1276
          %v1278 = vrot.slane %v1271, %v1277
          %v1279 = vcombine.low %v1217, %v1218
          %v1281 = vunpack.c.l.s4 1983009808
          %v1282 = vunpack.c.0.s8 %v1281
          %v1283 = vlaneseq
          %v1284 = vshrl.u32 %v1283, 7
          %v1285 = vsub.s32 %v1282, %v1284
          %v1286 = vrot.slane %v1279, %v1285
          %v1287 = vcombine.low %v1209, %v1216
          %v1289 = vunpack.c.l.s4 1983009808
          %v1290 = vunpack.c.0.s8 %v1289
          %v1291 = vlaneseq
          %v1292 = vshrl.u32 %v1291, 7
          %v1293 = vsub.s32 %v1290, %v1292
          %v1294 = vrot.slane %v1287, %v1293
          %v1295 = vcombine.low %v1219, %v1220
          %v1297 = vunpack.c.l.s4 1983009808
          %v1298 = vunpack.c.0.s8 %v1297
          %v1299 = vlaneseq
          %v1300 = vshrl.u32 %v1299, 7
          %v1301 = vsub.s32 %v1298, %v1300
          %v1302 = vrot.slane %v1295, %v1301
          %v1303 = vcombine.low %v1278, %v1286
          %v1305 = vunpack.c.l.s4 1934713408
          %v1306 = vunpack.c.0.s8 %v1305
          %v1307 = vlaneseq
          %v1308 = vshrl.u32 %v1307, 7
          %v1309 = vsub.s32 %v1306, %v1308
          %v1310 = vrot.slane %v1303, %v1309
          %v1311 = vcombine.low %v1294, %v1302
          %v1313 = vunpack.c.l.s4 1934713408
          %v1314 = vunpack.c.0.s8 %v1313
          %v1315 = vlaneseq
          %v1316 = vshrl.u32 %v1315, 7
          %v1317 = vsub.s32 %v1314, %v1316
          %v1318 = vrot.slane %v1311, %v1317
          %v1319 = vcombine.low %v1310, %v1318
          %v1320 = vcombine.high %v1310, %v1318
          %v1321 = vpack.c.bf16 %v1319, %v1269
          %v1322 = vpack.c.bf16 %v1320, %v1270
          %v1325 = vunpack.c.l.b16 %v1321
          %v1326 = vunpack.c.h.b16 %v1321
          %v1327 = vunpack.c.l.b16 %v1322
          %v1328 = vunpack.c.h.b16 %v1322
          %v1329 = vpack.c.b16 %v1325, %v1325
          %v1330 = vpack.c.b16 %v1326, %v1326
          %v1331 = vpack.c.b16 %v1327, %v1327
          %v1332 = vpack.c.b16 %v1328, %v1328
          %1337 = vst [vmem:[#allocation2] sm:$0xf] %v1329
          %1338 = vst [vmem:[#allocation2 + $0x4] sm:$0xf] %v1330
          %1339 = vst [vmem:[#allocation2 + $0x8] sm:$0xf] %v1331
          %1340 = vst [vmem:[#allocation2 + $0xc] sm:$0xf] %v1332
          %v1341 = vcombine.high %v1081, 0.0
          %v1343 = vunpack.c.l.s4 1983009808
          %v1344 = vunpack.c.0.s8 %v1343
          %v1345 = vlaneseq
          %v1346 = vshrl.u32 %v1345, 7
          %v1347 = vsub.s32 %v1344, %v1346
          %v1348 = vrot.slane %v1081, %v1347
          %v1350 = vunpack.c.l.s4 1983009808
          %v1351 = vunpack.c.0.s8 %v1350
          %v1352 = vlaneseq
          %v1353 = vshrl.u32 %v1352, 7
          %v1354 = vsub.s32 %v1351, %v1353
          %v1355 = vrot.slane %v1341, %v1354
          %v1356 = vcombine.high %v1083, 0.0
          %v1358 = vunpack.c.l.s4 1983009808
          %v1359 = vunpack.c.0.s8 %v1358
          %v1360 = vlaneseq
          %v1361 = vshrl.u32 %v1360, 7
          %v1362 = vsub.s32 %v1359, %v1361
          %v1363 = vrot.slane %v1083, %v1362
          %v1365 = vunpack.c.l.s4 1983009808
          %v1366 = vunpack.c.0.s8 %v1365
          %v1367 = vlaneseq
          %v1368 = vshrl.u32 %v1367, 7
          %v1369 = vsub.s32 %v1366, %v1368
          %v1370 = vrot.slane %v1356, %v1369
          %v1371 = vcombine.low %v1348, %v1363
          %v1372 = vcombine.high %v1348, %v1363
          %v1374 = vunpack.c.l.s4 1934713408
          %v1375 = vunpack.c.0.s8 %v1374
          %v1376 = vlaneseq
          %v1377 = vshrl.u32 %v1376, 7
          %v1378 = vsub.s32 %v1375, %v1377
          %v1379 = vrot.slane %v1371, %v1378
          %v1381 = vunpack.c.l.s4 1934713408
          %v1382 = vunpack.c.0.s8 %v1381
          %v1383 = vlaneseq
          %v1384 = vshrl.u32 %v1383, 7
          %v1385 = vsub.s32 %v1382, %v1384
          %v1386 = vrot.slane %v1372, %v1385
          %v1387 = vcombine.low %v1355, %v1370
          %v1388 = vcombine.high %v1355, %v1370
          %v1390 = vunpack.c.l.s4 1934713408
          %v1391 = vunpack.c.0.s8 %v1390
          %v1392 = vlaneseq
          %v1393 = vshrl.u32 %v1392, 7
          %v1394 = vsub.s32 %v1391, %v1393
          %v1395 = vrot.slane %v1387, %v1394
          %v1397 = vunpack.c.l.s4 1934713408
          %v1398 = vunpack.c.0.s8 %v1397
          %v1399 = vlaneseq
          %v1400 = vshrl.u32 %v1399, 7
          %v1401 = vsub.s32 %v1398, %v1400
          %v1402 = vrot.slane %v1388, %v1401
          %v1403 = vcombine.high %v1379, 0.0
          %v1404 = vcombine.high %v1386, 0.0
          %v1405 = vcombine.high %v1395, 0.0
          %v1406 = vcombine.high %v1402, 0.0
          %v1407 = vcombine.high %v1085, 0.0
          %v1409 = vunpack.c.l.s4 1983009808
          %v1410 = vunpack.c.0.s8 %v1409
          %v1411 = vlaneseq
          %v1412 = vshrl.u32 %v1411, 7
          %v1413 = vsub.s32 %v1410, %v1412
          %v1414 = vrot.slane %v1085, %v1413
          %v1416 = vunpack.c.l.s4 1983009808
          %v1417 = vunpack.c.0.s8 %v1416
          %v1418 = vlaneseq
          %v1419 = vshrl.u32 %v1418, 7
          %v1420 = vsub.s32 %v1417, %v1419
          %v1421 = vrot.slane %v1407, %v1420
          %v1422 = vcombine.high %v1087, 0.0
          %v1424 = vunpack.c.l.s4 1983009808
          %v1425 = vunpack.c.0.s8 %v1424
          %v1426 = vlaneseq
          %v1427 = vshrl.u32 %v1426, 7
          %v1428 = vsub.s32 %v1425, %v1427
          %v1429 = vrot.slane %v1087, %v1428
          %v1431 = vunpack.c.l.s4 1983009808
          %v1432 = vunpack.c.0.s8 %v1431
          %v1433 = vlaneseq
          %v1434 = vshrl.u32 %v1433, 7
          %v1435 = vsub.s32 %v1432, %v1434
          %v1436 = vrot.slane %v1422, %v1435
          %v1437 = vcombine.low %v1414, %v1429
          %v1438 = vcombine.high %v1414, %v1429
          %v1440 = vunpack.c.l.s4 1934713408
          %v1441 = vunpack.c.0.s8 %v1440
          %v1442 = vlaneseq
          %v1443 = vshrl.u32 %v1442, 7
          %v1444 = vsub.s32 %v1441, %v1443
          %v1445 = vrot.slane %v1437, %v1444
          %v1447 = vunpack.c.l.s4 1934713408
          %v1448 = vunpack.c.0.s8 %v1447
          %v1449 = vlaneseq
          %v1450 = vshrl.u32 %v1449, 7
          %v1451 = vsub.s32 %v1448, %v1450
          %v1452 = vrot.slane %v1438, %v1451
          %v1453 = vcombine.low %v1421, %v1436
          %v1454 = vcombine.high %v1421, %v1436
          %v1456 = vunpack.c.l.s4 1934713408
          %v1457 = vunpack.c.0.s8 %v1456
          %v1458 = vlaneseq
          %v1459 = vshrl.u32 %v1458, 7
          %v1460 = vsub.s32 %v1457, %v1459
          %v1461 = vrot.slane %v1453, %v1460
          %v1463 = vunpack.c.l.s4 1934713408
          %v1464 = vunpack.c.0.s8 %v1463
          %v1465 = vlaneseq
          %v1466 = vshrl.u32 %v1465, 7
          %v1467 = vsub.s32 %v1464, %v1466
          %v1468 = vrot.slane %v1454, %v1467
          %v1469 = vcombine.high %v1445, 0.0
          %v1470 = vcombine.high %v1452, 0.0
          %v1471 = vcombine.high %v1461, 0.0
          %v1472 = vcombine.high %v1468, 0.0
          %v1473 = vcombine.low %v1379, %v1386
          %v1475 = vunpack.c.l.s4 1983009808
          %v1476 = vunpack.c.0.s8 %v1475
          %v1477 = vlaneseq
          %v1478 = vshrl.u32 %v1477, 7
          %v1479 = vsub.s32 %v1476, %v1478
          %v1480 = vrot.slane %v1473, %v1479
          %v1481 = vcombine.low %v1403, %v1404
          %v1483 = vunpack.c.l.s4 1983009808
          %v1484 = vunpack.c.0.s8 %v1483
          %v1485 = vlaneseq
          %v1486 = vshrl.u32 %v1485, 7
          %v1487 = vsub.s32 %v1484, %v1486
          %v1488 = vrot.slane %v1481, %v1487
          %v1489 = vcombine.low %v1395, %v1402
          %v1491 = vunpack.c.l.s4 1983009808
          %v1492 = vunpack.c.0.s8 %v1491
          %v1493 = vlaneseq
          %v1494 = vshrl.u32 %v1493, 7
          %v1495 = vsub.s32 %v1492, %v1494
          %v1496 = vrot.slane %v1489, %v1495
          %v1497 = vcombine.low %v1405, %v1406
          %v1499 = vunpack.c.l.s4 1983009808
          %v1500 = vunpack.c.0.s8 %v1499
          %v1501 = vlaneseq
          %v1502 = vshrl.u32 %v1501, 7
          %v1503 = vsub.s32 %v1500, %v1502
          %v1504 = vrot.slane %v1497, %v1503
          %v1505 = vcombine.low %v1480, %v1488
          %v1507 = vunpack.c.l.s4 1934713408
          %v1508 = vunpack.c.0.s8 %v1507
          %v1509 = vlaneseq
          %v1510 = vshrl.u32 %v1509, 7
          %v1511 = vsub.s32 %v1508, %v1510
          %v1512 = vrot.slane %v1505, %v1511
          %v1513 = vcombine.low %v1496, %v1504
          %v1515 = vunpack.c.l.s4 1934713408
          %v1516 = vunpack.c.0.s8 %v1515
          %v1517 = vlaneseq
          %v1518 = vshrl.u32 %v1517, 7
          %v1519 = vsub.s32 %v1516, %v1518
          %v1520 = vrot.slane %v1513, %v1519
          %v1521 = vcombine.low %v1512, %v1520
          %v1522 = vcombine.high %v1512, %v1520
          %v1523 = vcombine.low %v1445, %v1452
          %v1525 = vunpack.c.l.s4 1983009808
          %v1526 = vunpack.c.0.s8 %v1525
          %v1527 = vlaneseq
          %v1528 = vshrl.u32 %v1527, 7
          %v1529 = vsub.s32 %v1526, %v1528
          %v1530 = vrot.slane %v1523, %v1529
          %v1531 = vcombine.low %v1469, %v1470
          %v1533 = vunpack.c.l.s4 1983009808
          %v1534 = vunpack.c.0.s8 %v1533
          %v1535 = vlaneseq
          %v1536 = vshrl.u32 %v1535, 7
          %v1537 = vsub.s32 %v1534, %v1536
          %v1538 = vrot.slane %v1531, %v1537
          %v1539 = vcombine.low %v1461, %v1468
          %v1541 = vunpack.c.l.s4 1983009808
          %v1542 = vunpack.c.0.s8 %v1541
          %v1543 = vlaneseq
          %v1544 = vshrl.u32 %v1543, 7
          %v1545 = vsub.s32 %v1542, %v1544
          %v1546 = vrot.slane %v1539, %v1545
          %v1547 = vcombine.low %v1471, %v1472
          %v1549 = vunpack.c.l.s4 1983009808
          %v1550 = vunpack.c.0.s8 %v1549
          %v1551 = vlaneseq
          %v1552 = vshrl.u32 %v1551, 7
          %v1553 = vsub.s32 %v1550, %v1552
          %v1554 = vrot.slane %v1547, %v1553
          %v1555 = vcombine.low %v1530, %v1538
          %v1557 = vunpack.c.l.s4 1934713408
          %v1558 = vunpack.c.0.s8 %v1557
          %v1559 = vlaneseq
          %v1560 = vshrl.u32 %v1559, 7
          %v1561 = vsub.s32 %v1558, %v1560
          %v1562 = vrot.slane %v1555, %v1561
          %v1563 = vcombine.low %v1546, %v1554
          %v1565 = vunpack.c.l.s4 1934713408
          %v1566 = vunpack.c.0.s8 %v1565
          %v1567 = vlaneseq
          %v1568 = vshrl.u32 %v1567, 7
          %v1569 = vsub.s32 %v1566, %v1568
          %v1570 = vrot.slane %v1563, %v1569
          %v1571 = vcombine.low %v1562, %v1570
          %v1572 = vcombine.high %v1562, %v1570
          %v1573 = vpack.c.bf16 %v1571, %v1521
          %v1574 = vpack.c.bf16 %v1572, %v1522
          %v1577 = vunpack.c.l.b16 %v1573
          %v1578 = vunpack.c.h.b16 %v1573
          %v1579 = vunpack.c.l.b16 %v1574
          %v1580 = vunpack.c.h.b16 %v1574
          %v1581 = vpack.c.b16 %v1577, %v1577
          %v1582 = vpack.c.b16 %v1578, %v1578
          %v1583 = vpack.c.b16 %v1579, %v1579
          %v1584 = vpack.c.b16 %v1580, %v1580
          %1589 = vst [vmem:[#allocation3] sm:$0xf] %v1581
          %1590 = vst [vmem:[#allocation3 + $0x4] sm:$0xf] %v1582
          %1591 = vst [vmem:[#allocation3 + $0x8] sm:$0xf] %v1583
          %1592 = vst [vmem:[#allocation3 + $0xc] sm:$0xf] %v1584
        $region104: #{tpu_custom_call.1} parent=63 // pred_fallthru
          _
        %v1593 = vpack.c.bf16 %v580, %v580
        %v1594 = vpack.c.bf16 %v581, %v581
        %v1595 = vld [vmem:[#allocation10] sm:$0xff]
        %v1596 = vld [vmem:[#allocation10 + $0x8] sm:$0xff]
        %v1597 = vld [vmem:[#allocation10 + $0x10] sm:$0xff]
        %v1598 = vld [vmem:[#allocation10 + $0x18] sm:$0xff]
        %v1599 = vld [vmem:[#allocation10 + $0x20] sm:$0xff]
        %v1600 = vld [vmem:[#allocation10 + $0x28] sm:$0xff]
        %v1601 = vld [vmem:[#allocation10 + $0x30] sm:$0xff]
        %v1602 = vld [vmem:[#allocation10 + $0x38] sm:$0xff]
        %v1603 = vld [vmem:[#allocation10 + $0x40] sm:$0xff]
        %v1604 = vld [vmem:[#allocation10 + $0x48] sm:$0xff]
        %v1605 = vld [vmem:[#allocation10 + $0x50] sm:$0xff]
        %v1606 = vld [vmem:[#allocation10 + $0x58] sm:$0xff]
        %v1607 = vld [vmem:[#allocation10 + $0x60] sm:$0xff]
        %v1608 = vld [vmem:[#allocation10 + $0x68] sm:$0xff]
        %v1609 = vld [vmem:[#allocation10 + $0x70] sm:$0xff]
        %v1610 = vld [vmem:[#allocation10 + $0x78] sm:$0xff]
        %v1611 = vld [vmem:[#allocation10 + $0x80] sm:$0xff]
        %v1612 = vld [vmem:[#allocation10 + $0x88] sm:$0xff]
        %v1613 = vld [vmem:[#allocation10 + $0x90] sm:$0xff]
        %v1614 = vld [vmem:[#allocation10 + $0x98] sm:$0xff]
        %v1615 = vld [vmem:[#allocation10 + $0xa0] sm:$0xff]
        %v1616 = vld [vmem:[#allocation10 + $0xa8] sm:$0xff]
        %v1617 = vld [vmem:[#allocation10 + $0xb0] sm:$0xff]
        %v1618 = vld [vmem:[#allocation10 + $0xb8] sm:$0xff]
        %v1619 = vld [vmem:[#allocation10 + $0xc0] sm:$0xff]
        %v1620 = vld [vmem:[#allocation10 + $0xc8] sm:$0xff]
        %v1621 = vld [vmem:[#allocation10 + $0xd0] sm:$0xff]
        %v1622 = vld [vmem:[#allocation10 + $0xd8] sm:$0xff]
        %v1623 = vld [vmem:[#allocation10 + $0xe0] sm:$0xff]
        %v1624 = vld [vmem:[#allocation10 + $0xe8] sm:$0xff]
        %v1625 = vld [vmem:[#allocation10 + $0xf0] sm:$0xff]
        %v1626 = vld [vmem:[#allocation10 + $0xf8] sm:$0xff]
        %v1627 = vlaneseq
        %v1628 = vshrl.u32 %v1627, 7
        %v1629 = vsub.s32 0, %v1628
        %v1630 = vrot.slane %v584, %v1629
        %v1631 = vlaneseq
        %v1632 = vshrl.u32 %v1631, 7
        %v1633 = vsub.s32 0, %v1632
        %v1634 = vrot.slane %v585, %v1633
        %v1667 = vunpack.c.l.b16 %v1595
        %v1668 = vunpack.c.h.b16 %v1595
        %v1669 = vunpack.c.l.b16 %v1596
        %v1670 = vunpack.c.h.b16 %v1596
        %v1671 = vunpack.c.l.b16 %v1597
        %v1672 = vunpack.c.h.b16 %v1597
        %v1673 = vunpack.c.l.b16 %v1598
        %v1674 = vunpack.c.h.b16 %v1598
        %v1675 = vunpack.c.l.b16 %v1599
        %v1676 = vunpack.c.h.b16 %v1599
        %v1677 = vunpack.c.l.b16 %v1600
        %v1678 = vunpack.c.h.b16 %v1600
        %v1679 = vunpack.c.l.b16 %v1601
        %v1680 = vunpack.c.h.b16 %v1601
        %v1681 = vunpack.c.l.b16 %v1602
        %v1682 = vunpack.c.h.b16 %v1602
        %v1683 = vunpack.c.l.b16 %v1603
        %v1684 = vunpack.c.h.b16 %v1603
        %v1685 = vunpack.c.l.b16 %v1604
        %v1686 = vunpack.c.h.b16 %v1604
        %v1687 = vunpack.c.l.b16 %v1605
        %v1688 = vunpack.c.h.b16 %v1605
        %v1689 = vunpack.c.l.b16 %v1606
        %v1690 = vunpack.c.h.b16 %v1606
        %v1691 = vunpack.c.l.b16 %v1607
        %v1692 = vunpack.c.h.b16 %v1607
        %v1693 = vunpack.c.l.b16 %v1608
        %v1694 = vunpack.c.h.b16 %v1608
        %v1695 = vunpack.c.l.b16 %v1609
        %v1696 = vunpack.c.h.b16 %v1609
        %v1697 = vunpack.c.l.b16 %v1610
        %v1698 = vunpack.c.h.b16 %v1610
        %v1699 = vunpack.c.l.b16 %v1611
        %v1700 = vunpack.c.h.b16 %v1611
        %v1701 = vunpack.c.l.b16 %v1612
        %v1702 = vunpack.c.h.b16 %v1612
        %v1703 = vunpack.c.l.b16 %v1613
        %v1704 = vunpack.c.h.b16 %v1613
        %v1705 = vunpack.c.l.b16 %v1614
        %v1706 = vunpack.c.h.b16 %v1614
        %v1707 = vunpack.c.l.b16 %v1615
        %v1708 = vunpack.c.h.b16 %v1615
        %v1709 = vunpack.c.l.b16 %v1616
        %v1710 = vunpack.c.h.b16 %v1616
        %v1711 = vunpack.c.l.b16 %v1617
        %v1712 = vunpack.c.h.b16 %v1617
        %v1713 = vunpack.c.l.b16 %v1618
        %v1714 = vunpack.c.h.b16 %v1618
        %v1715 = vunpack.c.l.b16 %v1619
        %v1716 = vunpack.c.h.b16 %v1619
        %v1717 = vunpack.c.l.b16 %v1620
        %v1718 = vunpack.c.h.b16 %v1620
        %v1719 = vunpack.c.l.b16 %v1621
        %v1720 = vunpack.c.h.b16 %v1621
        %v1721 = vunpack.c.l.b16 %v1622
        %v1722 = vunpack.c.h.b16 %v1622
        %v1723 = vunpack.c.l.b16 %v1623
        %v1724 = vunpack.c.h.b16 %v1623
        %v1725 = vunpack.c.l.b16 %v1624
        %v1726 = vunpack.c.h.b16 %v1624
        %v1727 = vunpack.c.l.b16 %v1625
        %v1728 = vunpack.c.h.b16 %v1625
        %v1729 = vunpack.c.l.b16 %v1626
        %v1730 = vunpack.c.h.b16 %v1626
        %v1731 = vpack.c.b16 %v1669, %v1667
        %v1732 = vpack.c.b16 %v1670, %v1668
        %v1733 = vpack.c.b16 %v1673, %v1671
        %v1734 = vpack.c.b16 %v1674, %v1672
        %v1735 = vpack.c.b16 %v1677, %v1675
        %v1736 = vpack.c.b16 %v1678, %v1676
        %v1737 = vpack.c.b16 %v1681, %v1679
        %v1738 = vpack.c.b16 %v1682, %v1680
        %v1739 = vpack.c.b16 %v1685, %v1683
        %v1740 = vpack.c.b16 %v1686, %v1684
        %v1741 = vpack.c.b16 %v1689, %v1687
        %v1742 = vpack.c.b16 %v1690, %v1688
        %v1743 = vpack.c.b16 %v1693, %v1691
        %v1744 = vpack.c.b16 %v1694, %v1692
        %v1745 = vpack.c.b16 %v1697, %v1695
        %v1746 = vpack.c.b16 %v1698, %v1696
        %v1747 = vpack.c.b16 %v1701, %v1699
        %v1748 = vpack.c.b16 %v1702, %v1700
        %v1749 = vpack.c.b16 %v1705, %v1703
        %v1750 = vpack.c.b16 %v1706, %v1704
        %v1751 = vpack.c.b16 %v1709, %v1707
        %v1752 = vpack.c.b16 %v1710, %v1708
        %v1753 = vpack.c.b16 %v1713, %v1711
        %v1754 = vpack.c.b16 %v1714, %v1712
        %v1755 = vpack.c.b16 %v1717, %v1715
        %v1756 = vpack.c.b16 %v1718, %v1716
        %v1757 = vpack.c.b16 %v1721, %v1719
        %v1758 = vpack.c.b16 %v1722, %v1720
        %v1759 = vpack.c.b16 %v1725, %v1723
        %v1760 = vpack.c.b16 %v1726, %v1724
        %v1761 = vpack.c.b16 %v1729, %v1727
        %v1762 = vpack.c.b16 %v1730, %v1728
        %1795 = vmatprep.subr.bf16.mxu0 %v1746
        %1796 = vmatpush1.bf16.msra.mxu0 %v1745
        %1797 = vmatprep.subr.bf16.mxu0 %v1744
        %1798 = vmatpush1.bf16.msra.mxu0 %v1743
        %1799 = vmatprep.subr.bf16.mxu0 %v1742
        %1800 = vmatpush1.bf16.msra.mxu0 %v1741
        %1801 = vmatprep.subr.bf16.mxu0 %v1740
        %1802 = vmatpush1.bf16.msra.mxu0 %v1739
        %1803 = vmatprep.subr.bf16.mxu0 %v1738
        %1804 = vmatpush1.bf16.msra.mxu0 %v1737
        %1805 = vmatprep.subr.bf16.mxu0 %v1736
        %1806 = vmatpush1.bf16.msra.mxu0 %v1735
        %1807 = vmatprep.subr.bf16.mxu0 %v1734
        %1808 = vmatpush1.bf16.msra.mxu0 %v1733
        %1809 = vmatprep.subr.bf16.mxu0 %v1732
        %1810 = vmatpush1.bf16.msra.mxu0 %v1731
        %1811 = vmatprep.subr.bf16.mxu0 %v1762
        %1812 = vmatpush2.bf16.msra.mxu0 %v1761
        %1813 = vmatprep.subr.bf16.mxu0 %v1760
        %1814 = vmatpush2.bf16.msra.mxu0 %v1759
        %1815 = vmatprep.subr.bf16.mxu0 %v1758
        %1816 = vmatpush2.bf16.msra.mxu0 %v1757
        %1817 = vmatprep.subr.bf16.mxu0 %v1756
        %1818 = vmatpush2.bf16.msra.mxu0 %v1755
        %1819 = vmatprep.subr.bf16.mxu0 %v1754
        %1820 = vmatpush2.bf16.msra.mxu0 %v1753
        %1821 = vmatprep.subr.bf16.mxu0 %v1752
        %1822 = vmatpush2.bf16.msra.mxu0 %v1751
        %1823 = vmatprep.subr.bf16.mxu0 %v1750
        %1824 = vmatpush2.bf16.msra.mxu0 %v1749
        %1825 = vmatprep.subr.bf16.mxu0 %v1748
        %1826 = vmatpush2.bf16.msra.mxu0 %v1747
        %1827 = vmatprep.mubr.bf16.mxu0 %v1594
        %1828 = vmatmul.mubr.bf16.gmra.mxu0 %v1593
        %v1829 = vpop.f32.mrf.mxu0
        %v1830 = vadd.f32 %v1630, %v1829
        %v1831 = vpop.f32.mrf.mxu0
        %v1832 = vadd.f32 %v1634, %v1831
        %v1833 = vpop.f32.mrf.mxu0
        %v1834 = vpop.f32.mrf.mxu0
        %1835 = vdwg.mxu0
        %v1836 = vmul.f32 %v1830, 0.088388346
        %v1837 = vmul.f32 %v1832, 0.088388346
        %v1838 = vcombine.high %v1836, 0.0
        %v1840 = vunpack.c.l.s4 1983009808
        %v1841 = vunpack.c.0.s8 %v1840
        %v1842 = vlaneseq
        %v1843 = vshrl.u32 %v1842, 7
        %v1844 = vsub.s32 %v1841, %v1843
        %v1845 = vrot.slane %v1836, %v1844
        %v1847 = vunpack.c.l.s4 1983009808
        %v1848 = vunpack.c.0.s8 %v1847
        %v1849 = vlaneseq
        %v1850 = vshrl.u32 %v1849, 7
        %v1851 = vsub.s32 %v1848, %v1850
        %v1852 = vrot.slane %v1838, %v1851
        %v1853 = vcombine.high %v1837, 0.0
        %v1855 = vunpack.c.l.s4 1983009808
        %v1856 = vunpack.c.0.s8 %v1855
        %v1857 = vlaneseq
        %v1858 = vshrl.u32 %v1857, 7
        %v1859 = vsub.s32 %v1856, %v1858
        %v1860 = vrot.slane %v1837, %v1859
        %v1862 = vunpack.c.l.s4 1983009808
        %v1863 = vunpack.c.0.s8 %v1862
        %v1864 = vlaneseq
        %v1865 = vshrl.u32 %v1864, 7
        %v1866 = vsub.s32 %v1863, %v1865
        %v1867 = vrot.slane %v1853, %v1866
        %v1868 = vcombine.low %v1845, %v1860
        %v1869 = vcombine.high %v1845, %v1860
        %v1871 = vunpack.c.l.s4 1934713408
        %v1872 = vunpack.c.0.s8 %v1871
        %v1873 = vlaneseq
        %v1874 = vshrl.u32 %v1873, 7
        %v1875 = vsub.s32 %v1872, %v1874
        %v1876 = vrot.slane %v1868, %v1875
        %v1878 = vunpack.c.l.s4 1934713408
        %v1879 = vunpack.c.0.s8 %v1878
        %v1880 = vlaneseq
        %v1881 = vshrl.u32 %v1880, 7
        %v1882 = vsub.s32 %v1879, %v1881
        %v1883 = vrot.slane %v1869, %v1882
        %v1884 = vcombine.low %v1852, %v1867
        %v1885 = vcombine.high %v1852, %v1867
        %v1887 = vunpack.c.l.s4 1934713408
        %v1888 = vunpack.c.0.s8 %v1887
        %v1889 = vlaneseq
        %v1890 = vshrl.u32 %v1889, 7
        %v1891 = vsub.s32 %v1888, %v1890
        %v1892 = vrot.slane %v1884, %v1891
        %v1894 = vunpack.c.l.s4 1934713408
        %v1895 = vunpack.c.0.s8 %v1894
        %v1896 = vlaneseq
        %v1897 = vshrl.u32 %v1896, 7
        %v1898 = vsub.s32 %v1895, %v1897
        %v1899 = vrot.slane %v1885, %v1898
        %v1900 = vcombine.high %v1876, 0.0
        %v1901 = vcombine.high %v1883, 0.0
        %v1902 = vcombine.high %v1892, 0.0
        %v1903 = vcombine.high %v1899, 0.0
        %v1904 = vcombine.low %v1876, %v1883
        %v1906 = vunpack.c.l.s4 1983009808
        %v1907 = vunpack.c.0.s8 %v1906
        %v1908 = vlaneseq
        %v1909 = vshrl.u32 %v1908, 7
        %v1910 = vsub.s32 %v1907, %v1909
        %v1911 = vrot.slane %v1904, %v1910
        %v1912 = vcombine.low %v1900, %v1901
        %v1914 = vunpack.c.l.s4 1983009808
        %v1915 = vunpack.c.0.s8 %v1914
        %v1916 = vlaneseq
        %v1917 = vshrl.u32 %v1916, 7
        %v1918 = vsub.s32 %v1915, %v1917
        %v1919 = vrot.slane %v1912, %v1918
        %v1920 = vcombine.low %v1892, %v1899
        %v1922 = vunpack.c.l.s4 1983009808
        %v1923 = vunpack.c.0.s8 %v1922
        %v1924 = vlaneseq
        %v1925 = vshrl.u32 %v1924, 7
        %v1926 = vsub.s32 %v1923, %v1925
        %v1927 = vrot.slane %v1920, %v1926
        %v1928 = vcombine.low %v1902, %v1903
        %v1930 = vunpack.c.l.s4 1983009808
        %v1931 = vunpack.c.0.s8 %v1930
        %v1932 = vlaneseq
        %v1933 = vshrl.u32 %v1932, 7
        %v1934 = vsub.s32 %v1931, %v1933
        %v1935 = vrot.slane %v1928, %v1934
        %v1936 = vcombine.low %v1911, %v1919
        %v1938 = vunpack.c.l.s4 1934713408
        %v1939 = vunpack.c.0.s8 %v1938
        %v1940 = vlaneseq
        %v1941 = vshrl.u32 %v1940, 7
        %v1942 = vsub.s32 %v1939, %v1941
        %v1943 = vrot.slane %v1936, %v1942
        %v1944 = vcombine.low %v1927, %v1935
        %v1946 = vunpack.c.l.s4 1934713408
        %v1947 = vunpack.c.0.s8 %v1946
        %v1948 = vlaneseq
        %v1949 = vshrl.u32 %v1948, 7
        %v1950 = vsub.s32 %v1947, %v1949
        %v1951 = vrot.slane %v1944, %v1950
        %v1952 = vcombine.low %v1943, %v1951
        %v1953 = vcombine.high %v1943, %v1951
        %v1954 = vpack.c.bf16 %v1952, %v1952
        %v1955 = vpack.c.bf16 %v1953, %v1953
        %v1956 = vld [vmem:[#allocation2] sm:$0xf]
        %v1957 = vld [vmem:[#allocation2 + $0x4] sm:$0xf]
        %v1958 = vld [vmem:[#allocation2 + $0x8] sm:$0xf]
        %v1959 = vld [vmem:[#allocation2 + $0xc] sm:$0xf]
        %v1961 = vlaneseq
        %v1962 = vshrl.u32 %v1961, 7
        %v1963 = vsub.s32 0, %v1962
        %v1964 = vrot.slane %v583, %v1963
        %v1968 = vunpack.c.l.b16 %v1956
        %v1969 = vunpack.c.l.b16 %v1957
        %v1970 = vpack.c.b16 %v1969, %v1968
        %1972 = vmatprep.subr.bf16.mxu0 0
        %1973 = vmatpush1.bf16.xpose.msra.mxu0 0
        %1974 = vmatprep.subr.bf16.mxu0 0
        %1975 = vmatpush1.bf16.xpose.msra.mxu0 0
        %1976 = vmatprep.subr.bf16.mxu0 0
        %1977 = vmatpush1.bf16.xpose.msra.mxu0 0
        %1978 = vmatprep.subr.bf16.mxu0 0
        %1979 = vmatpush1.bf16.xpose.msra.mxu0 0
        %1980 = vmatprep.subr.bf16.mxu0 0
        %1981 = vmatpush1.bf16.xpose.msra.mxu0 0
        %1982 = vmatprep.subr.bf16.mxu0 0
        %1983 = vmatpush1.bf16.xpose.msra.mxu0 0
        %1984 = vmatprep.subr.bf16.mxu0 0
        %1985 = vmatpush1.bf16.xpose.msra.mxu0 0
        %1986 = vmatprep.subr.bf16.mxu0 0
        %1987 = vmatpush1.bf16.xpose.msra.mxu0 %v1970
        %1988 = vmatprep.subr.bf16.mxu0 0
        %1989 = vmatpush2.bf16.xpose.msra.mxu0 0
        %1990 = vmatprep.subr.bf16.mxu0 0
        %1991 = vmatpush2.bf16.xpose.msra.mxu0 0
        %1992 = vmatprep.subr.bf16.mxu0 0
        %1993 = vmatpush2.bf16.xpose.msra.mxu0 0
        %1994 = vmatprep.subr.bf16.mxu0 0
        %1995 = vmatpush2.bf16.xpose.msra.mxu0 0
        %1996 = vmatprep.subr.bf16.mxu0 0
        %1997 = vmatpush2.bf16.xpose.msra.mxu0 0
        %1998 = vmatprep.subr.bf16.mxu0 0
        %1999 = vmatpush2.bf16.xpose.msra.mxu0 0
        %2000 = vmatprep.subr.bf16.mxu0 0
        %2001 = vmatpush2.bf16.xpose.msra.mxu0 0
        %2002 = vmatprep.subr.bf16.mxu0 0
        %2003 = vmatpush2.bf16.xpose.msra.mxu0 0
        %2004 = vmatprep.mubr.bf16.mxu0 0
        %2005 = vmatmul.mubr.bf16.gmra.mxu0 %v1954
        %v2006 = vpop.f32.mrf.mxu0
        %v2007 = vadd.f32 %v1964, %v2006
        %v2008 = vpop.f32.mrf.mxu0
        %v2009 = vpop.f32.mrf.mxu0
        %v2010 = vpop.f32.mrf.mxu0
        %2011 = vdwg.mxu0
        %v2014 = vunpack.c.l.b16 %v1958
        %v2015 = vunpack.c.l.b16 %v1959
        %v2016 = vpack.c.b16 %v2015, %v2014
        %2018 = vmatprep.subr.bf16.mxu0 0
        %2019 = vmatpush1.bf16.xpose.msra.mxu0 0
        %2020 = vmatprep.subr.bf16.mxu0 0
        %2021 = vmatpush1.bf16.xpose.msra.mxu0 0
        %2022 = vmatprep.subr.bf16.mxu0 0
        %2023 = vmatpush1.bf16.xpose.msra.mxu0 0
        %2024 = vmatprep.subr.bf16.mxu0 0
        %2025 = vmatpush1.bf16.xpose.msra.mxu0 0
        %2026 = vmatprep.subr.bf16.mxu0 0
        %2027 = vmatpush1.bf16.xpose.msra.mxu0 0
        %2028 = vmatprep.subr.bf16.mxu0 0
        %2029 = vmatpush1.bf16.xpose.msra.mxu0 0
        %2030 = vmatprep.subr.bf16.mxu0 0
        %2031 = vmatpush1.bf16.xpose.msra.mxu0 0
        %2032 = vmatprep.subr.bf16.mxu0 0
        %2033 = vmatpush1.bf16.xpose.msra.mxu0 %v2016
        %2034 = vmatprep.subr.bf16.mxu0 0
        %2035 = vmatpush2.bf16.xpose.msra.mxu0 0
        %2036 = vmatprep.subr.bf16.mxu0 0
        %2037 = vmatpush2.bf16.xpose.msra.mxu0 0
        %2038 = vmatprep.subr.bf16.mxu0 0
        %2039 = vmatpush2.bf16.xpose.msra.mxu0 0
        %2040 = vmatprep.subr.bf16.mxu0 0
        %2041 = vmatpush2.bf16.xpose.msra.mxu0 0
        %2042 = vmatprep.subr.bf16.mxu0 0
        %2043 = vmatpush2.bf16.xpose.msra.mxu0 0
        %2044 = vmatprep.subr.bf16.mxu0 0
        %2045 = vmatpush2.bf16.xpose.msra.mxu0 0
        %2046 = vmatprep.subr.bf16.mxu0 0
        %2047 = vmatpush2.bf16.xpose.msra.mxu0 0
        %2048 = vmatprep.subr.bf16.mxu0 0
        %2049 = vmatpush2.bf16.xpose.msra.mxu0 0
        %2050 = vmatprep.mubr.bf16.mxu0 0
        %2051 = vmatmul.mubr.bf16.gmra.mxu0 %v1955
        %v2052 = vpop.f32.mrf.mxu0
        %v2053 = vadd.f32 %v1964, %v2052
        %v2054 = vpop.f32.mrf.mxu0
        %v2055 = vpop.f32.mrf.mxu0
        %v2056 = vpop.f32.mrf.mxu0
        %2057 = vdwg.mxu0
        %vm2058 = vcmask 130048
        %v2059 = vsel %vm2058, %v2007, -inf
        %2060 = vmax.xlane.f32.xlu0 %v2059
        %v2061 = vpop.xlane.xlu0 %2060
        %v2062 = vsel %vm2058, %v2053, -inf
        %2063 = vmax.xlane.f32.xlu0 %v2062
        %v2064 = vpop.xlane.xlu0 %2063
        %v2065 = vsub.f32 %v2007, %v2061
        %v2066 = vsub.f32 %v2053, %v2064
        %v2067 = vmul.f32 %v2065, 1.442695
        %v2068 = vpow.pop %v2067
        %v2069 = vmul.f32 %v2066, 1.442695
        %v2070 = vpow.pop %v2069
        %v2071 = vsel %vm2058, %v2068, 0.0
        %2072 = vadd.xlane.f32.xlu0 %v2071
        %v2073 = vpop.xlane.xlu0 %2072
        %v2074 = vsel %vm2058, %v2070, 0.0
        %2075 = vadd.xlane.f32.xlu0 %v2074
        %v2076 = vpop.xlane.xlu0 %2075
        %v2077 = vpack.c.bf16 %v2068, %v2068
        %v2078 = vpack.c.bf16 %v2070, %v2070
        %v2079 = vld [vmem:[#allocation3] sm:$0xf]
        %v2080 = vld [vmem:[#allocation3 + $0x4] sm:$0xf]
        %v2081 = vld [vmem:[#allocation3 + $0x8] sm:$0xf]
        %v2082 = vld [vmem:[#allocation3 + $0xc] sm:$0xf]
        %v2085 = vunpack.c.l.b16 %v2079
        %v2086 = vunpack.c.l.b16 %v2080
        %v2087 = vpack.c.b16 %v2086, %v2085
        %v2090 = vsel %vm2058, %v2077, 0
        %2092 = vmatprep.subr.bf16.mxu0 0
        %2093 = vmatpush1.bf16.msra.mxu0 0
        %2094 = vmatprep.subr.bf16.mxu0 0
        %2095 = vmatpush1.bf16.msra.mxu0 0
        %2096 = vmatprep.subr.bf16.mxu0 0
        %2097 = vmatpush1.bf16.msra.mxu0 0
        %2098 = vmatprep.subr.bf16.mxu0 0
        %2099 = vmatpush1.bf16.msra.mxu0 0
        %2100 = vmatprep.subr.bf16.mxu0 0
        %2101 = vmatpush1.bf16.msra.mxu0 0
        %2102 = vmatprep.subr.bf16.mxu0 0
        %2103 = vmatpush1.bf16.msra.mxu0 0
        %2104 = vmatprep.subr.bf16.mxu0 0
        %2105 = vmatpush1.bf16.msra.mxu0 0
        %2106 = vmatprep.subr.bf16.mxu0 0
        %2107 = vmatpush1.bf16.msra.mxu0 %v2087
        %2108 = vmatprep.subr.bf16.mxu0 0
        %2109 = vmatpush2.bf16.msra.mxu0 0
        %2110 = vmatprep.subr.bf16.mxu0 0
        %2111 = vmatpush2.bf16.msra.mxu0 0
        %2112 = vmatprep.subr.bf16.mxu0 0
        %2113 = vmatpush2.bf16.msra.mxu0 0
        %2114 = vmatprep.subr.bf16.mxu0 0
        %2115 = vmatpush2.bf16.msra.mxu0 0
        %2116 = vmatprep.subr.bf16.mxu0 0
        %2117 = vmatpush2.bf16.msra.mxu0 0
        %2118 = vmatprep.subr.bf16.mxu0 0
        %2119 = vmatpush2.bf16.msra.mxu0 0
        %2120 = vmatprep.subr.bf16.mxu0 0
        %2121 = vmatpush2.bf16.msra.mxu0 0
        %2122 = vmatprep.subr.bf16.mxu0 0
        %2123 = vmatpush2.bf16.msra.mxu0 0
        %2124 = vmatprep.mubr.bf16.mxu0 0
        %2125 = vmatmul.mubr.bf16.gmra.mxu0 %v2090
        %v2126 = vpop.f32.mrf.mxu0
        %v2127 = vadd.f32 0.0, %v2126
        %v2128 = vpop.f32.mrf.mxu0
        %v2129 = vpop.f32.mrf.mxu0
        %v2130 = vpop.f32.mrf.mxu0
        %2131 = vdwg.mxu0
        %v2134 = vunpack.c.l.b16 %v2081
        %v2135 = vunpack.c.l.b16 %v2082
        %v2136 = vpack.c.b16 %v2135, %v2134
        %v2139 = vsel %vm2058, %v2078, 0
        %2141 = vmatprep.subr.bf16.mxu0 0
        %2142 = vmatpush1.bf16.msra.mxu0 0
        %2143 = vmatprep.subr.bf16.mxu0 0
        %2144 = vmatpush1.bf16.msra.mxu0 0
        %2145 = vmatprep.subr.bf16.mxu0 0
        %2146 = vmatpush1.bf16.msra.mxu0 0
        %2147 = vmatprep.subr.bf16.mxu0 0
        %2148 = vmatpush1.bf16.msra.mxu0 0
        %2149 = vmatprep.subr.bf16.mxu0 0
        %2150 = vmatpush1.bf16.msra.mxu0 0
        %2151 = vmatprep.subr.bf16.mxu0 0
        %2152 = vmatpush1.bf16.msra.mxu0 0
        %2153 = vmatprep.subr.bf16.mxu0 0
        %2154 = vmatpush1.bf16.msra.mxu0 0
        %2155 = vmatprep.subr.bf16.mxu0 0
        %2156 = vmatpush1.bf16.msra.mxu0 %v2136
        %2157 = vmatprep.subr.bf16.mxu0 0
        %2158 = vmatpush2.bf16.msra.mxu0 0
        %2159 = vmatprep.subr.bf16.mxu0 0
        %2160 = vmatpush2.bf16.msra.mxu0 0
        %2161 = vmatprep.subr.bf16.mxu0 0
        %2162 = vmatpush2.bf16.msra.mxu0 0
        %2163 = vmatprep.subr.bf16.mxu0 0
        %2164 = vmatpush2.bf16.msra.mxu0 0
        %2165 = vmatprep.subr.bf16.mxu0 0
        %2166 = vmatpush2.bf16.msra.mxu0 0
        %2167 = vmatprep.subr.bf16.mxu0 0
        %2168 = vmatpush2.bf16.msra.mxu0 0
        %2169 = vmatprep.subr.bf16.mxu0 0
        %2170 = vmatpush2.bf16.msra.mxu0 0
        %2171 = vmatprep.subr.bf16.mxu0 0
        %2172 = vmatpush2.bf16.msra.mxu0 0
        %2173 = vmatprep.mubr.bf16.mxu0 0
        %2174 = vmatmul.mubr.bf16.gmra.mxu0 %v2139
        %v2175 = vpop.f32.mrf.mxu0
        %v2176 = vadd.f32 0.0, %v2175
        %v2177 = vpop.f32.mrf.mxu0
        %v2178 = vpop.f32.mrf.mxu0
        %v2179 = vpop.f32.mrf.mxu0
        %2180 = vdwg.mxu0
        %v2181 = vrcp.pop %v2073
        %v2182 = vrcp.pop %v2076
        %v2183 = vmul.f32 %v2127, %v2181
        %v2184 = vmul.f32 %v2176, %v2182
        %v2185 = vcombine.high %v2183, 0.0
        %v2187 = vunpack.c.l.s4 1983009808
        %v2188 = vunpack.c.0.s8 %v2187
        %v2189 = vlaneseq
        %v2190 = vshrl.u32 %v2189, 7
        %v2191 = vsub.s32 %v2188, %v2190
        %v2192 = vrot.slane %v2183, %v2191
        %v2194 = vunpack.c.l.s4 1983009808
        %v2195 = vunpack.c.0.s8 %v2194
        %v2196 = vlaneseq
        %v2197 = vshrl.u32 %v2196, 7
        %v2198 = vsub.s32 %v2195, %v2197
        %v2199 = vrot.slane %v2185, %v2198
        %v2200 = vcombine.high %v2184, 0.0
        %v2202 = vunpack.c.l.s4 1983009808
        %v2203 = vunpack.c.0.s8 %v2202
        %v2204 = vlaneseq
        %v2205 = vshrl.u32 %v2204, 7
        %v2206 = vsub.s32 %v2203, %v2205
        %v2207 = vrot.slane %v2184, %v2206
        %v2209 = vunpack.c.l.s4 1983009808
        %v2210 = vunpack.c.0.s8 %v2209
        %v2211 = vlaneseq
        %v2212 = vshrl.u32 %v2211, 7
        %v2213 = vsub.s32 %v2210, %v2212
        %v2214 = vrot.slane %v2200, %v2213
        %v2215 = vcombine.low %v2192, %v2207
        %v2216 = vcombine.high %v2192, %v2207
        %v2218 = vunpack.c.l.s4 1934713408
        %v2219 = vunpack.c.0.s8 %v2218
        %v2220 = vlaneseq
        %v2221 = vshrl.u32 %v2220, 7
        %v2222 = vsub.s32 %v2219, %v2221
        %v2223 = vrot.slane %v2215, %v2222
        %v2225 = vunpack.c.l.s4 1934713408
        %v2226 = vunpack.c.0.s8 %v2225
        %v2227 = vlaneseq
        %v2228 = vshrl.u32 %v2227, 7
        %v2229 = vsub.s32 %v2226, %v2228
        %v2230 = vrot.slane %v2216, %v2229
        %v2231 = vcombine.low %v2199, %v2214
        %v2232 = vcombine.high %v2199, %v2214
        %v2234 = vunpack.c.l.s4 1934713408
        %v2235 = vunpack.c.0.s8 %v2234
        %v2236 = vlaneseq
        %v2237 = vshrl.u32 %v2236, 7
        %v2238 = vsub.s32 %v2235, %v2237
        %v2239 = vrot.slane %v2231, %v2238
        %v2241 = vunpack.c.l.s4 1934713408
        %v2242 = vunpack.c.0.s8 %v2241
        %v2243 = vlaneseq
        %v2244 = vshrl.u32 %v2243, 7
        %v2245 = vsub.s32 %v2242, %v2244
        %v2246 = vrot.slane %v2232, %v2245
        %v2247 = vcombine.high %v2223, 0.0
        %v2248 = vcombine.high %v2230, 0.0
        %v2249 = vcombine.high %v2239, 0.0
        %v2250 = vcombine.high %v2246, 0.0
        %v2251 = vcombine.low %v2223, %v2230
        %v2253 = vunpack.c.l.s4 1983009808
        %v2254 = vunpack.c.0.s8 %v2253
        %v2255 = vlaneseq
        %v2256 = vshrl.u32 %v2255, 7
        %v2257 = vsub.s32 %v2254, %v2256
        %v2258 = vrot.slane %v2251, %v2257
        %v2259 = vcombine.low %v2247, %v2248
        %v2261 = vunpack.c.l.s4 1983009808
        %v2262 = vunpack.c.0.s8 %v2261
        %v2263 = vlaneseq
        %v2264 = vshrl.u32 %v2263, 7
        %v2265 = vsub.s32 %v2262, %v2264
        %v2266 = vrot.slane %v2259, %v2265
        %v2267 = vcombine.low %v2239, %v2246
        %v2269 = vunpack.c.l.s4 1983009808
        %v2270 = vunpack.c.0.s8 %v2269
        %v2271 = vlaneseq
        %v2272 = vshrl.u32 %v2271, 7
        %v2273 = vsub.s32 %v2270, %v2272
        %v2274 = vrot.slane %v2267, %v2273
        %v2275 = vcombine.low %v2249, %v2250
        %v2277 = vunpack.c.l.s4 1983009808
        %v2278 = vunpack.c.0.s8 %v2277
        %v2279 = vlaneseq
        %v2280 = vshrl.u32 %v2279, 7
        %v2281 = vsub.s32 %v2278, %v2280
        %v2282 = vrot.slane %v2275, %v2281
        %v2283 = vcombine.low %v2258, %v2266
        %v2285 = vunpack.c.l.s4 1934713408
        %v2286 = vunpack.c.0.s8 %v2285
        %v2287 = vlaneseq
        %v2288 = vshrl.u32 %v2287, 7
        %v2289 = vsub.s32 %v2286, %v2288
        %v2290 = vrot.slane %v2283, %v2289
        %v2291 = vcombine.low %v2274, %v2282
        %v2293 = vunpack.c.l.s4 1934713408
        %v2294 = vunpack.c.0.s8 %v2293
        %v2295 = vlaneseq
        %v2296 = vshrl.u32 %v2295, 7
        %v2297 = vsub.s32 %v2294, %v2296
        %v2298 = vrot.slane %v2291, %v2297
        %v2299 = vcombine.low %v2290, %v2298
        %v2300 = vcombine.high %v2290, %v2298
        %v2301 = vpack.c.bf16 %v2299, %v2299
        %v2302 = vpack.c.bf16 %v2300, %v2300
        %v2303 = vld [vmem:[#allocation15] sm:$0xff]
        %v2304 = vld [vmem:[#allocation15 + $0x8] sm:$0xff]
        %v2305 = vld [vmem:[#allocation15 + $0x10] sm:$0xff]
        %v2306 = vld [vmem:[#allocation15 + $0x18] sm:$0xff]
        %v2307 = vld [vmem:[#allocation15 + $0x20] sm:$0xff]
        %v2308 = vld [vmem:[#allocation15 + $0x28] sm:$0xff]
        %v2309 = vld [vmem:[#allocation15 + $0x30] sm:$0xff]
        %v2310 = vld [vmem:[#allocation15 + $0x38] sm:$0xff]
        %v2311 = vld [vmem:[#allocation15 + $0x40] sm:$0xff]
        %v2312 = vld [vmem:[#allocation15 + $0x48] sm:$0xff]
        %v2313 = vld [vmem:[#allocation15 + $0x50] sm:$0xff]
        %v2314 = vld [vmem:[#allocation15 + $0x58] sm:$0xff]
        %v2315 = vld [vmem:[#allocation15 + $0x60] sm:$0xff]
        %v2316 = vld [vmem:[#allocation15 + $0x68] sm:$0xff]
        %v2317 = vld [vmem:[#allocation15 + $0x70] sm:$0xff]
        %v2318 = vld [vmem:[#allocation15 + $0x78] sm:$0xff]
        %v2319 = vld [vmem:[#allocation15 + $0x80] sm:$0xff]
        %v2320 = vld [vmem:[#allocation15 + $0x88] sm:$0xff]
        %v2321 = vld [vmem:[#allocation15 + $0x90] sm:$0xff]
        %v2322 = vld [vmem:[#allocation15 + $0x98] sm:$0xff]
        %v2323 = vld [vmem:[#allocation15 + $0xa0] sm:$0xff]
        %v2324 = vld [vmem:[#allocation15 + $0xa8] sm:$0xff]
        %v2325 = vld [vmem:[#allocation15 + $0xb0] sm:$0xff]
        %v2326 = vld [vmem:[#allocation15 + $0xb8] sm:$0xff]
        %v2327 = vld [vmem:[#allocation15 + $0xc0] sm:$0xff]
        %v2328 = vld [vmem:[#allocation15 + $0xc8] sm:$0xff]
        %v2329 = vld [vmem:[#allocation15 + $0xd0] sm:$0xff]
        %v2330 = vld [vmem:[#allocation15 + $0xd8] sm:$0xff]
        %v2331 = vld [vmem:[#allocation15 + $0xe0] sm:$0xff]
        %v2332 = vld [vmem:[#allocation15 + $0xe8] sm:$0xff]
        %v2333 = vld [vmem:[#allocation15 + $0xf0] sm:$0xff]
        %v2334 = vld [vmem:[#allocation15 + $0xf8] sm:$0xff]
        %v2335 = vlaneseq
        %v2336 = vshrl.u32 %v2335, 7
        %v2337 = vsub.s32 3, %v2336
        %v2338 = vrot.slane %v584, %v2337
        %v2339 = vlaneseq
        %v2340 = vshrl.u32 %v2339, 7
        %v2341 = vsub.s32 3, %v2340
        %v2342 = vrot.slane %v585, %v2341
        %v2375 = vunpack.c.l.b16 %v2303
        %v2376 = vunpack.c.h.b16 %v2303
        %v2377 = vunpack.c.l.b16 %v2304
        %v2378 = vunpack.c.h.b16 %v2304
        %v2379 = vunpack.c.l.b16 %v2305
        %v2380 = vunpack.c.h.b16 %v2305
        %v2381 = vunpack.c.l.b16 %v2306
        %v2382 = vunpack.c.h.b16 %v2306
        %v2383 = vunpack.c.l.b16 %v2307
        %v2384 = vunpack.c.h.b16 %v2307
        %v2385 = vunpack.c.l.b16 %v2308
        %v2386 = vunpack.c.h.b16 %v2308
        %v2387 = vunpack.c.l.b16 %v2309
        %v2388 = vunpack.c.h.b16 %v2309
        %v2389 = vunpack.c.l.b16 %v2310
        %v2390 = vunpack.c.h.b16 %v2310
        %v2391 = vunpack.c.l.b16 %v2311
        %v2392 = vunpack.c.h.b16 %v2311
        %v2393 = vunpack.c.l.b16 %v2312
        %v2394 = vunpack.c.h.b16 %v2312
        %v2395 = vunpack.c.l.b16 %v2313
        %v2396 = vunpack.c.h.b16 %v2313
        %v2397 = vunpack.c.l.b16 %v2314
        %v2398 = vunpack.c.h.b16 %v2314
        %v2399 = vunpack.c.l.b16 %v2315
        %v2400 = vunpack.c.h.b16 %v2315
        %v2401 = vunpack.c.l.b16 %v2316
        %v2402 = vunpack.c.h.b16 %v2316
        %v2403 = vunpack.c.l.b16 %v2317
        %v2404 = vunpack.c.h.b16 %v2317
        %v2405 = vunpack.c.l.b16 %v2318
        %v2406 = vunpack.c.h.b16 %v2318
        %v2407 = vunpack.c.l.b16 %v2319
        %v2408 = vunpack.c.h.b16 %v2319
        %v2409 = vunpack.c.l.b16 %v2320
        %v2410 = vunpack.c.h.b16 %v2320
        %v2411 = vunpack.c.l.b16 %v2321
        %v2412 = vunpack.c.h.b16 %v2321
        %v2413 = vunpack.c.l.b16 %v2322
        %v2414 = vunpack.c.h.b16 %v2322
        %v2415 = vunpack.c.l.b16 %v2323
        %v2416 = vunpack.c.h.b16 %v2323
        %v2417 = vunpack.c.l.b16 %v2324
        %v2418 = vunpack.c.h.b16 %v2324
        %v2419 = vunpack.c.l.b16 %v2325
        %v2420 = vunpack.c.h.b16 %v2325
        %v2421 = vunpack.c.l.b16 %v2326
        %v2422 = vunpack.c.h.b16 %v2326
        %v2423 = vunpack.c.l.b16 %v2327
        %v2424 = vunpack.c.h.b16 %v2327
        %v2425 = vunpack.c.l.b16 %v2328
        %v2426 = vunpack.c.h.b16 %v2328
        %v2427 = vunpack.c.l.b16 %v2329
        %v2428 = vunpack.c.h.b16 %v2329
        %v2429 = vunpack.c.l.b16 %v2330
        %v2430 = vunpack.c.h.b16 %v2330
        %v2431 = vunpack.c.l.b16 %v2331
        %v2432 = vunpack.c.h.b16 %v2331
        %v2433 = vunpack.c.l.b16 %v2332
        %v2434 = vunpack.c.h.b16 %v2332
        %v2435 = vunpack.c.l.b16 %v2333
        %v2436 = vunpack.c.h.b16 %v2333
        %v2437 = vunpack.c.l.b16 %v2334
        %v2438 = vunpack.c.h.b16 %v2334
        %v2439 = vpack.c.b16 %v2377, %v2375
        %v2440 = vpack.c.b16 %v2378, %v2376
        %v2441 = vpack.c.b16 %v2381, %v2379
        %v2442 = vpack.c.b16 %v2382, %v2380
        %v2443 = vpack.c.b16 %v2385, %v2383
        %v2444 = vpack.c.b16 %v2386, %v2384
        %v2445 = vpack.c.b16 %v2389, %v2387
        %v2446 = vpack.c.b16 %v2390, %v2388
        %v2447 = vpack.c.b16 %v2393, %v2391
        %v2448 = vpack.c.b16 %v2394, %v2392
        %v2449 = vpack.c.b16 %v2397, %v2395
        %v2450 = vpack.c.b16 %v2398, %v2396
        %v2451 = vpack.c.b16 %v2401, %v2399
        %v2452 = vpack.c.b16 %v2402, %v2400
        %v2453 = vpack.c.b16 %v2405, %v2403
        %v2454 = vpack.c.b16 %v2406, %v2404
        %v2455 = vpack.c.b16 %v2409, %v2407
        %v2456 = vpack.c.b16 %v2410, %v2408
        %v2457 = vpack.c.b16 %v2413, %v2411
        %v2458 = vpack.c.b16 %v2414, %v2412
        %v2459 = vpack.c.b16 %v2417, %v2415
        %v2460 = vpack.c.b16 %v2418, %v2416
        %v2461 = vpack.c.b16 %v2421, %v2419
        %v2462 = vpack.c.b16 %v2422, %v2420
        %v2463 = vpack.c.b16 %v2425, %v2423
        %v2464 = vpack.c.b16 %v2426, %v2424
        %v2465 = vpack.c.b16 %v2429, %v2427
        %v2466 = vpack.c.b16 %v2430, %v2428
        %v2467 = vpack.c.b16 %v2433, %v2431
        %v2468 = vpack.c.b16 %v2434, %v2432
        %v2469 = vpack.c.b16 %v2437, %v2435
        %v2470 = vpack.c.b16 %v2438, %v2436
        %2503 = vmatprep.subr.bf16.mxu0 %v2454
        %2504 = vmatpush1.bf16.msra.mxu0 %v2453
        %2505 = vmatprep.subr.bf16.mxu0 %v2452
        %2506 = vmatpush1.bf16.msra.mxu0 %v2451
        %2507 = vmatprep.subr.bf16.mxu0 %v2450
        %2508 = vmatpush1.bf16.msra.mxu0 %v2449
        %2509 = vmatprep.subr.bf16.mxu0 %v2448
        %2510 = vmatpush1.bf16.msra.mxu0 %v2447
        %2511 = vmatprep.subr.bf16.mxu0 %v2446
        %2512 = vmatpush1.bf16.msra.mxu0 %v2445
        %2513 = vmatprep.subr.bf16.mxu0 %v2444
        %2514 = vmatpush1.bf16.msra.mxu0 %v2443
        %2515 = vmatprep.subr.bf16.mxu0 %v2442
        %2516 = vmatpush1.bf16.msra.mxu0 %v2441
        %2517 = vmatprep.subr.bf16.mxu0 %v2440
        %2518 = vmatpush1.bf16.msra.mxu0 %v2439
        %2519 = vmatprep.subr.bf16.mxu0 %v2470
        %2520 = vmatpush2.bf16.msra.mxu0 %v2469
        %2521 = vmatprep.subr.bf16.mxu0 %v2468
        %2522 = vmatpush2.bf16.msra.mxu0 %v2467
        %2523 = vmatprep.subr.bf16.mxu0 %v2466
        %2524 = vmatpush2.bf16.msra.mxu0 %v2465
        %2525 = vmatprep.subr.bf16.mxu0 %v2464
        %2526 = vmatpush2.bf16.msra.mxu0 %v2463
        %2527 = vmatprep.subr.bf16.mxu0 %v2462
        %2528 = vmatpush2.bf16.msra.mxu0 %v2461
        %2529 = vmatprep.subr.bf16.mxu0 %v2460
        %2530 = vmatpush2.bf16.msra.mxu0 %v2459
        %2531 = vmatprep.subr.bf16.mxu0 %v2458
        %2532 = vmatpush2.bf16.msra.mxu0 %v2457
        %2533 = vmatprep.subr.bf16.mxu0 %v2456
        %2534 = vmatpush2.bf16.msra.mxu0 %v2455
        %2535 = vmatprep.mubr.bf16.mxu0 %v2302
        %2536 = vmatmul.mubr.bf16.gmra.mxu0 %v2301
        %v2537 = vpop.f32.mrf.mxu0
        %v2538 = vadd.f32 %v2338, %v2537
        %v2539 = vpop.f32.mrf.mxu0
        %v2540 = vadd.f32 %v2342, %v2539
        %v2541 = vpop.f32.mrf.mxu0
        %v2542 = vpop.f32.mrf.mxu0
        %2543 = vdwg.mxu0
        %v2544 = vadd.f32 %v580, %v2538
        %v2545 = vadd.f32 %v581, %v2540
        %v2546 = vadd.f32 %v2544, %v2545
        %2547 = vadd.xlane.f32.xlu0 %v2546
        %v2548 = vpop.xlane.xlu0 %2547
        %v2549 = vrcp.pop 256.0
        %v2550 = vmul.f32 %v2548, %v2549
        %v2551 = vsub.f32 %v2544, %v2550
        %v2552 = vsub.f32 %v2545, %v2550
        %v2553 = vmul.f32 %v2551, %v2551
        %v2554 = vmul.f32 %v2552, %v2552
        %v2555 = vadd.f32 %v2553, %v2554
        %2556 = vadd.xlane.f32.xlu0 %v2555
        %v2557 = vpop.xlane.xlu0 %2556
        %v2558 = vmul.f32 %v2557, %v2549
        %v2559 = vadd.f32 %v2558, 1e-05
        %v2560 = vrsqrt.pop %v2559
        %v2561 = vmul.f32 %v2551, %v2560
        %v2562 = vmul.f32 %v2552, %v2560
        %v2563 = vlaneseq
        %v2564 = vshrl.u32 %v2563, 7
        %v2565 = vsub.s32 4, %v2564
        %v2566 = vrot.slane %v584, %v2565
        %v2567 = vlaneseq
        %v2568 = vshrl.u32 %v2567, 7
        %v2569 = vsub.s32 4, %v2568
        %v2570 = vrot.slane %v585, %v2569
        %v2571 = vmul.f32 %v2561, %v2566
        %v2572 = vmul.f32 %v2562, %v2570
        %v2573 = vlaneseq
        %v2574 = vshrl.u32 %v2573, 7
        %v2575 = vsub.s32 5, %v2574
        %v2576 = vrot.slane %v584, %v2575
        %v2577 = vlaneseq
        %v2578 = vshrl.u32 %v2577, 7
        %v2579 = vsub.s32 5, %v2578
        %v2580 = vrot.slane %v585, %v2579
        %v2581 = vadd.f32 %v2571, %v2576
        %v2582 = vadd.f32 %v2572, %v2580
        %v2583 = vpack.c.bf16 %v2581, %v2581
        %v2584 = vpack.c.bf16 %v2582, %v2582
        %v2585 = vld [vmem:[#allocation16] sm:$0xff]
        %v2586 = vld [vmem:[#allocation16 + $0x8] sm:$0xff]
        %v2587 = vld [vmem:[#allocation16 + $0x10] sm:$0xff]
        %v2588 = vld [vmem:[#allocation16 + $0x18] sm:$0xff]
        %v2589 = vld [vmem:[#allocation16 + $0x20] sm:$0xff]
        %v2590 = vld [vmem:[#allocation16 + $0x28] sm:$0xff]
        %v2591 = vld [vmem:[#allocation16 + $0x30] sm:$0xff]
        %v2592 = vld [vmem:[#allocation16 + $0x38] sm:$0xff]
        %v2593 = vld [vmem:[#allocation16 + $0x40] sm:$0xff]
        %v2594 = vld [vmem:[#allocation16 + $0x48] sm:$0xff]
        %v2595 = vld [vmem:[#allocation16 + $0x50] sm:$0xff]
        %v2596 = vld [vmem:[#allocation16 + $0x58] sm:$0xff]
        %v2597 = vld [vmem:[#allocation16 + $0x60] sm:$0xff]
        %v2598 = vld [vmem:[#allocation16 + $0x68] sm:$0xff]
        %v2599 = vld [vmem:[#allocation16 + $0x70] sm:$0xff]
        %v2600 = vld [vmem:[#allocation16 + $0x78] sm:$0xff]
        %v2601 = vld [vmem:[#allocation16 + $0x80] sm:$0xff]
        %v2602 = vld [vmem:[#allocation16 + $0x88] sm:$0xff]
        %v2603 = vld [vmem:[#allocation16 + $0x90] sm:$0xff]
        %v2604 = vld [vmem:[#allocation16 + $0x98] sm:$0xff]
        %v2605 = vld [vmem:[#allocation16 + $0xa0] sm:$0xff]
        %v2606 = vld [vmem:[#allocation16 + $0xa8] sm:$0xff]
        %v2607 = vld [vmem:[#allocation16 + $0xb0] sm:$0xff]
        %v2608 = vld [vmem:[#allocation16 + $0xb8] sm:$0xff]
        %v2609 = vld [vmem:[#allocation16 + $0xc0] sm:$0xff]
        %v2610 = vld [vmem:[#allocation16 + $0xc8] sm:$0xff]
        %v2611 = vld [vmem:[#allocation16 + $0xd0] sm:$0xff]
        %v2612 = vld [vmem:[#allocation16 + $0xd8] sm:$0xff]
        %v2613 = vld [vmem:[#allocation16 + $0xe0] sm:$0xff]
        %v2614 = vld [vmem:[#allocation16 + $0xe8] sm:$0xff]
        %v2615 = vld [vmem:[#allocation16 + $0xf0] sm:$0xff]
        %v2616 = vld [vmem:[#allocation16 + $0xf8] sm:$0xff]
        %v2618 = vlaneseq
        %v2619 = vshrl.u32 %v2618, 7
        %v2620 = vsub.s32 0, %v2619
        %v2621 = vrot.slane %v586, %v2620
        %v2622 = vlaneseq
        %v2623 = vshrl.u32 %v2622, 7
        %v2624 = vsub.s32 1, %v2623
        %v2625 = vrot.slane %v586, %v2624
        %v2660 = vunpack.c.l.b16 %v2585
        %v2661 = vunpack.c.h.b16 %v2585
        %v2662 = vunpack.c.l.b16 %v2586
        %v2663 = vunpack.c.h.b16 %v2586
        %v2664 = vunpack.c.l.b16 %v2587
        %v2665 = vunpack.c.h.b16 %v2587
        %v2666 = vunpack.c.l.b16 %v2588
        %v2667 = vunpack.c.h.b16 %v2588
        %v2668 = vunpack.c.l.b16 %v2589
        %v2669 = vunpack.c.h.b16 %v2589
        %v2670 = vunpack.c.l.b16 %v2590
        %v2671 = vunpack.c.h.b16 %v2590
        %v2672 = vunpack.c.l.b16 %v2591
        %v2673 = vunpack.c.h.b16 %v2591
        %v2674 = vunpack.c.l.b16 %v2592
        %v2675 = vunpack.c.h.b16 %v2592
        %v2676 = vunpack.c.l.b16 %v2593
        %v2677 = vunpack.c.h.b16 %v2593
        %v2678 = vunpack.c.l.b16 %v2594
        %v2679 = vunpack.c.h.b16 %v2594
        %v2680 = vunpack.c.l.b16 %v2595
        %v2681 = vunpack.c.h.b16 %v2595
        %v2682 = vunpack.c.l.b16 %v2596
        %v2683 = vunpack.c.h.b16 %v2596
        %v2684 = vunpack.c.l.b16 %v2597
        %v2685 = vunpack.c.h.b16 %v2597
        %v2686 = vunpack.c.l.b16 %v2598
        %v2687 = vunpack.c.h.b16 %v2598
        %v2688 = vunpack.c.l.b16 %v2599
        %v2689 = vunpack.c.h.b16 %v2599
        %v2690 = vunpack.c.l.b16 %v2600
        %v2691 = vunpack.c.h.b16 %v2600
        %v2692 = vunpack.c.l.b16 %v2601
        %v2693 = vunpack.c.h.b16 %v2601
        %v2694 = vunpack.c.l.b16 %v2602
        %v2695 = vunpack.c.h.b16 %v2602
        %v2696 = vunpack.c.l.b16 %v2603
        %v2697 = vunpack.c.h.b16 %v2603
        %v2698 = vunpack.c.l.b16 %v2604
        %v2699 = vunpack.c.h.b16 %v2604
        %v2700 = vunpack.c.l.b16 %v2605
        %v2701 = vunpack.c.h.b16 %v2605
        %v2702 = vunpack.c.l.b16 %v2606
        %v2703 = vunpack.c.h.b16 %v2606
        %v2704 = vunpack.c.l.b16 %v2607
        %v2705 = vunpack.c.h.b16 %v2607
        %v2706 = vunpack.c.l.b16 %v2608
        %v2707 = vunpack.c.h.b16 %v2608
        %v2708 = vunpack.c.l.b16 %v2609
        %v2709 = vunpack.c.h.b16 %v2609
        %v2710 = vunpack.c.l.b16 %v2610
        %v2711 = vunpack.c.h.b16 %v2610
        %v2712 = vunpack.c.l.b16 %v2611
        %v2713 = vunpack.c.h.b16 %v2611
        %v2714 = vunpack.c.l.b16 %v2612
        %v2715 = vunpack.c.h.b16 %v2612
        %v2716 = vunpack.c.l.b16 %v2613
        %v2717 = vunpack.c.h.b16 %v2613
        %v2718 = vunpack.c.l.b16 %v2614
        %v2719 = vunpack.c.h.b16 %v2614
        %v2720 = vunpack.c.l.b16 %v2615
        %v2721 = vunpack.c.h.b16 %v2615
        %v2722 = vunpack.c.l.b16 %v2616
        %v2723 = vunpack.c.h.b16 %v2616
        %v2724 = vpack.c.b16 %v2662, %v2660
        %v2725 = vpack.c.b16 %v2663, %v2661
        %v2726 = vpack.c.b16 %v2666, %v2664
        %v2727 = vpack.c.b16 %v2667, %v2665
        %v2728 = vpack.c.b16 %v2670, %v2668
        %v2729 = vpack.c.b16 %v2671, %v2669
        %v2730 = vpack.c.b16 %v2674, %v2672
        %v2731 = vpack.c.b16 %v2675, %v2673
        %v2732 = vpack.c.b16 %v2678, %v2676
        %v2733 = vpack.c.b16 %v2679, %v2677
        %v2734 = vpack.c.b16 %v2682, %v2680
        %v2735 = vpack.c.b16 %v2683, %v2681
        %v2736 = vpack.c.b16 %v2686, %v2684
        %v2737 = vpack.c.b16 %v2687, %v2685
        %v2738 = vpack.c.b16 %v2690, %v2688
        %v2739 = vpack.c.b16 %v2691, %v2689
        %v2740 = vpack.c.b16 %v2694, %v2692
        %v2741 = vpack.c.b16 %v2695, %v2693
        %v2742 = vpack.c.b16 %v2698, %v2696
        %v2743 = vpack.c.b16 %v2699, %v2697
        %v2744 = vpack.c.b16 %v2702, %v2700
        %v2745 = vpack.c.b16 %v2703, %v2701
        %v2746 = vpack.c.b16 %v2706, %v2704
        %v2747 = vpack.c.b16 %v2707, %v2705
        %v2748 = vpack.c.b16 %v2710, %v2708
        %v2749 = vpack.c.b16 %v2711, %v2709
        %v2750 = vpack.c.b16 %v2714, %v2712
        %v2751 = vpack.c.b16 %v2715, %v2713
        %v2752 = vpack.c.b16 %v2718, %v2716
        %v2753 = vpack.c.b16 %v2719, %v2717
        %v2754 = vpack.c.b16 %v2722, %v2720
        %v2755 = vpack.c.b16 %v2723, %v2721
        %2788 = vmatprep.subr.bf16.mxu0 %v2739
        %2789 = vmatpush1.bf16.msra.mxu0 %v2738
        %2790 = vmatprep.subr.bf16.mxu0 %v2737
        %2791 = vmatpush1.bf16.msra.mxu0 %v2736
        %2792 = vmatprep.subr.bf16.mxu0 %v2735
        %2793 = vmatpush1.bf16.msra.mxu0 %v2734
        %2794 = vmatprep.subr.bf16.mxu0 %v2733
        %2795 = vmatpush1.bf16.msra.mxu0 %v2732
        %2796 = vmatprep.subr.bf16.mxu0 %v2731
        %2797 = vmatpush1.bf16.msra.mxu0 %v2730
        %2798 = vmatprep.subr.bf16.mxu0 %v2729
        %2799 = vmatpush1.bf16.msra.mxu0 %v2728
        %2800 = vmatprep.subr.bf16.mxu0 %v2727
        %2801 = vmatpush1.bf16.msra.mxu0 %v2726
        %2802 = vmatprep.subr.bf16.mxu0 %v2725
        %2803 = vmatpush1.bf16.msra.mxu0 %v2724
        %2804 = vmatprep.subr.bf16.mxu0 %v2755
        %2805 = vmatpush2.bf16.msra.mxu0 %v2754
        %2806 = vmatprep.subr.bf16.mxu0 %v2753
        %2807 = vmatpush2.bf16.msra.mxu0 %v2752
        %2808 = vmatprep.subr.bf16.mxu0 %v2751
        %2809 = vmatpush2.bf16.msra.mxu0 %v2750
        %2810 = vmatprep.subr.bf16.mxu0 %v2749
        %2811 = vmatpush2.bf16.msra.mxu0 %v2748
        %2812 = vmatprep.subr.bf16.mxu0 %v2747
        %2813 = vmatpush2.bf16.msra.mxu0 %v2746
        %2814 = vmatprep.subr.bf16.mxu0 %v2745
        %2815 = vmatpush2.bf16.msra.mxu0 %v2744
        %2816 = vmatprep.subr.bf16.mxu0 %v2743
        %2817 = vmatpush2.bf16.msra.mxu0 %v2742
        %2818 = vmatprep.subr.bf16.mxu0 %v2741
        %2819 = vmatpush2.bf16.msra.mxu0 %v2740
        %2820 = vmatprep.mubr.bf16.mxu0 %v2584
        %2821 = vmatmul.mubr.bf16.gmra.mxu0 %v2583
        %v2822 = vpop.f32.mrf.mxu0
        %v2823 = vadd.f32 %v2621, %v2822
        %v2824 = vpop.f32.mrf.mxu0
        %v2825 = vadd.f32 %v2625, %v2824
        %v2826 = vpop.f32.mrf.mxu0
        %v2827 = vpop.f32.mrf.mxu0
        %2828 = vdwg.mxu0
        %v2829 = vmax.f32 %v2823, 0.0
        %v2830 = vmax.f32 %v2825, 0.0
        %v2831 = vpack.c.bf16 %v2829, %v2829
        %v2832 = vpack.c.bf16 %v2830, %v2830
        %v2833 = vld [vmem:[#allocation18] sm:$0xff]
        %v2834 = vld [vmem:[#allocation18 + $0x8] sm:$0xff]
        %v2835 = vld [vmem:[#allocation18 + $0x10] sm:$0xff]
        %v2836 = vld [vmem:[#allocation18 + $0x18] sm:$0xff]
        %v2837 = vld [vmem:[#allocation18 + $0x20] sm:$0xff]
        %v2838 = vld [vmem:[#allocation18 + $0x28] sm:$0xff]
        %v2839 = vld [vmem:[#allocation18 + $0x30] sm:$0xff]
        %v2840 = vld [vmem:[#allocation18 + $0x38] sm:$0xff]
        %v2841 = vld [vmem:[#allocation18 + $0x40] sm:$0xff]
        %v2842 = vld [vmem:[#allocation18 + $0x48] sm:$0xff]
        %v2843 = vld [vmem:[#allocation18 + $0x50] sm:$0xff]
        %v2844 = vld [vmem:[#allocation18 + $0x58] sm:$0xff]
        %v2845 = vld [vmem:[#allocation18 + $0x60] sm:$0xff]
        %v2846 = vld [vmem:[#allocation18 + $0x68] sm:$0xff]
        %v2847 = vld [vmem:[#allocation18 + $0x70] sm:$0xff]
        %v2848 = vld [vmem:[#allocation18 + $0x78] sm:$0xff]
        %v2849 = vld [vmem:[#allocation18 + $0x80] sm:$0xff]
        %v2850 = vld [vmem:[#allocation18 + $0x88] sm:$0xff]
        %v2851 = vld [vmem:[#allocation18 + $0x90] sm:$0xff]
        %v2852 = vld [vmem:[#allocation18 + $0x98] sm:$0xff]
        %v2853 = vld [vmem:[#allocation18 + $0xa0] sm:$0xff]
        %v2854 = vld [vmem:[#allocation18 + $0xa8] sm:$0xff]
        %v2855 = vld [vmem:[#allocation18 + $0xb0] sm:$0xff]
        %v2856 = vld [vmem:[#allocation18 + $0xb8] sm:$0xff]
        %v2857 = vld [vmem:[#allocation18 + $0xc0] sm:$0xff]
        %v2858 = vld [vmem:[#allocation18 + $0xc8] sm:$0xff]
        %v2859 = vld [vmem:[#allocation18 + $0xd0] sm:$0xff]
        %v2860 = vld [vmem:[#allocation18 + $0xd8] sm:$0xff]
        %v2861 = vld [vmem:[#allocation18 + $0xe0] sm:$0xff]
        %v2862 = vld [vmem:[#allocation18 + $0xe8] sm:$0xff]
        %v2863 = vld [vmem:[#allocation18 + $0xf0] sm:$0xff]
        %v2864 = vld [vmem:[#allocation18 + $0xf8] sm:$0xff]
        %v2865 = vlaneseq
        %v2866 = vshrl.u32 %v2865, 7
        %v2867 = vsub.s32 6, %v2866
        %v2868 = vrot.slane %v584, %v2867
        %v2869 = vlaneseq
        %v2870 = vshrl.u32 %v2869, 7
        %v2871 = vsub.s32 6, %v2870
        %v2872 = vrot.slane %v585, %v2871
        %v2905 = vunpack.c.l.b16 %v2833
        %v2906 = vunpack.c.h.b16 %v2833
        %v2907 = vunpack.c.l.b16 %v2834
        %v2908 = vunpack.c.h.b16 %v2834
        %v2909 = vunpack.c.l.b16 %v2835
        %v2910 = vunpack.c.h.b16 %v2835
        %v2911 = vunpack.c.l.b16 %v2836
        %v2912 = vunpack.c.h.b16 %v2836
        %v2913 = vunpack.c.l.b16 %v2837
        %v2914 = vunpack.c.h.b16 %v2837
        %v2915 = vunpack.c.l.b16 %v2838
        %v2916 = vunpack.c.h.b16 %v2838
        %v2917 = vunpack.c.l.b16 %v2839
        %v2918 = vunpack.c.h.b16 %v2839
        %v2919 = vunpack.c.l.b16 %v2840
        %v2920 = vunpack.c.h.b16 %v2840
        %v2921 = vunpack.c.l.b16 %v2841
        %v2922 = vunpack.c.h.b16 %v2841
        %v2923 = vunpack.c.l.b16 %v2842
        %v2924 = vunpack.c.h.b16 %v2842
        %v2925 = vunpack.c.l.b16 %v2843
        %v2926 = vunpack.c.h.b16 %v2843
        %v2927 = vunpack.c.l.b16 %v2844
        %v2928 = vunpack.c.h.b16 %v2844
        %v2929 = vunpack.c.l.b16 %v2845
        %v2930 = vunpack.c.h.b16 %v2845
        %v2931 = vunpack.c.l.b16 %v2846
        %v2932 = vunpack.c.h.b16 %v2846
        %v2933 = vunpack.c.l.b16 %v2847
        %v2934 = vunpack.c.h.b16 %v2847
        %v2935 = vunpack.c.l.b16 %v2848
        %v2936 = vunpack.c.h.b16 %v2848
        %v2937 = vunpack.c.l.b16 %v2849
        %v2938 = vunpack.c.h.b16 %v2849
        %v2939 = vunpack.c.l.b16 %v2850
        %v2940 = vunpack.c.h.b16 %v2850
        %v2941 = vunpack.c.l.b16 %v2851
        %v2942 = vunpack.c.h.b16 %v2851
        %v2943 = vunpack.c.l.b16 %v2852
        %v2944 = vunpack.c.h.b16 %v2852
        %v2945 = vunpack.c.l.b16 %v2853
        %v2946 = vunpack.c.h.b16 %v2853
        %v2947 = vunpack.c.l.b16 %v2854
        %v2948 = vunpack.c.h.b16 %v2854
        %v2949 = vunpack.c.l.b16 %v2855
        %v2950 = vunpack.c.h.b16 %v2855
        %v2951 = vunpack.c.l.b16 %v2856
        %v2952 = vunpack.c.h.b16 %v2856
        %v2953 = vunpack.c.l.b16 %v2857
        %v2954 = vunpack.c.h.b16 %v2857
        %v2955 = vunpack.c.l.b16 %v2858
        %v2956 = vunpack.c.h.b16 %v2858
        %v2957 = vunpack.c.l.b16 %v2859
        %v2958 = vunpack.c.h.b16 %v2859
        %v2959 = vunpack.c.l.b16 %v2860
        %v2960 = vunpack.c.h.b16 %v2860
        %v2961 = vunpack.c.l.b16 %v2861
        %v2962 = vunpack.c.h.b16 %v2861
        %v2963 = vunpack.c.l.b16 %v2862
        %v2964 = vunpack.c.h.b16 %v2862
        %v2965 = vunpack.c.l.b16 %v2863
        %v2966 = vunpack.c.h.b16 %v2863
        %v2967 = vunpack.c.l.b16 %v2864
        %v2968 = vunpack.c.h.b16 %v2864
        %v2969 = vpack.c.b16 %v2907, %v2905
        %v2970 = vpack.c.b16 %v2908, %v2906
        %v2971 = vpack.c.b16 %v2911, %v2909
        %v2972 = vpack.c.b16 %v2912, %v2910
        %v2973 = vpack.c.b16 %v2915, %v2913
        %v2974 = vpack.c.b16 %v2916, %v2914
        %v2975 = vpack.c.b16 %v2919, %v2917
        %v2976 = vpack.c.b16 %v2920, %v2918
        %v2977 = vpack.c.b16 %v2923, %v2921
        %v2978 = vpack.c.b16 %v2924, %v2922
        %v2979 = vpack.c.b16 %v2927, %v2925
        %v2980 = vpack.c.b16 %v2928, %v2926
        %v2981 = vpack.c.b16 %v2931, %v2929
        %v2982 = vpack.c.b16 %v2932, %v2930
        %v2983 = vpack.c.b16 %v2935, %v2933
        %v2984 = vpack.c.b16 %v2936, %v2934
        %v2985 = vpack.c.b16 %v2939, %v2937
        %v2986 = vpack.c.b16 %v2940, %v2938
        %v2987 = vpack.c.b16 %v2943, %v2941
        %v2988 = vpack.c.b16 %v2944, %v2942
        %v2989 = vpack.c.b16 %v2947, %v2945
        %v2990 = vpack.c.b16 %v2948, %v2946
        %v2991 = vpack.c.b16 %v2951, %v2949
        %v2992 = vpack.c.b16 %v2952, %v2950
        %v2993 = vpack.c.b16 %v2955, %v2953
        %v2994 = vpack.c.b16 %v2956, %v2954
        %v2995 = vpack.c.b16 %v2959, %v2957
        %v2996 = vpack.c.b16 %v2960, %v2958
        %v2997 = vpack.c.b16 %v2963, %v2961
        %v2998 = vpack.c.b16 %v2964, %v2962
        %v2999 = vpack.c.b16 %v2967, %v2965
        %v3000 = vpack.c.b16 %v2968, %v2966
        %3033 = vmatprep.subr.bf16.mxu0 %v2984
        %3034 = vmatpush1.bf16.msra.mxu0 %v2983
        %3035 = vmatprep.subr.bf16.mxu0 %v2982
        %3036 = vmatpush1.bf16.msra.mxu0 %v2981
        %3037 = vmatprep.subr.bf16.mxu0 %v2980
        %3038 = vmatpush1.bf16.msra.mxu0 %v2979
        %3039 = vmatprep.subr.bf16.mxu0 %v2978
        %3040 = vmatpush1.bf16.msra.mxu0 %v2977
        %3041 = vmatprep.subr.bf16.mxu0 %v2976
        %3042 = vmatpush1.bf16.msra.mxu0 %v2975
        %3043 = vmatprep.subr.bf16.mxu0 %v2974
        %3044 = vmatpush1.bf16.msra.mxu0 %v2973
        %3045 = vmatprep.subr.bf16.mxu0 %v2972
        %3046 = vmatpush1.bf16.msra.mxu0 %v2971
        %3047 = vmatprep.subr.bf16.mxu0 %v2970
        %3048 = vmatpush1.bf16.msra.mxu0 %v2969
        %3049 = vmatprep.subr.bf16.mxu0 %v3000
        %3050 = vmatpush2.bf16.msra.mxu0 %v2999
        %3051 = vmatprep.subr.bf16.mxu0 %v2998
        %3052 = vmatpush2.bf16.msra.mxu0 %v2997
        %3053 = vmatprep.subr.bf16.mxu0 %v2996
        %3054 = vmatpush2.bf16.msra.mxu0 %v2995
        %3055 = vmatprep.subr.bf16.mxu0 %v2994
        %3056 = vmatpush2.bf16.msra.mxu0 %v2993
        %3057 = vmatprep.subr.bf16.mxu0 %v2992
        %3058 = vmatpush2.bf16.msra.mxu0 %v2991
        %3059 = vmatprep.subr.bf16.mxu0 %v2990
        %3060 = vmatpush2.bf16.msra.mxu0 %v2989
        %3061 = vmatprep.subr.bf16.mxu0 %v2988
        %3062 = vmatpush2.bf16.msra.mxu0 %v2987
        %3063 = vmatprep.subr.bf16.mxu0 %v2986
        %3064 = vmatpush2.bf16.msra.mxu0 %v2985
        %3065 = vmatprep.mubr.bf16.mxu0 %v2832
        %3066 = vmatmul.mubr.bf16.gmra.mxu0 %v2831
        %v3067 = vpop.f32.mrf.mxu0
        %v3068 = vadd.f32 %v2868, %v3067
        %v3069 = vpop.f32.mrf.mxu0
        %v3070 = vadd.f32 %v2872, %v3069
        %v3071 = vpop.f32.mrf.mxu0
        %v3072 = vpop.f32.mrf.mxu0
        %3073 = vdwg.mxu0
        %v3074 = vadd.f32 %v2581, %v3068
        %v3075 = vadd.f32 %v2582, %v3070
        %v3076 = vadd.f32 %v3074, %v3075
        %3077 = vadd.xlane.f32.xlu0 %v3076
        %v3078 = vpop.xlane.xlu0 %3077
        %v3079 = vmul.f32 %v3078, %v2549
        %v3080 = vsub.f32 %v3074, %v3079
        %v3081 = vsub.f32 %v3075, %v3079
        %v3082 = vmul.f32 %v3080, %v3080
        %v3083 = vmul.f32 %v3081, %v3081
        %v3084 = vadd.f32 %v3082, %v3083
        %3085 = vadd.xlane.f32.xlu0 %v3084
        %v3086 = vpop.xlane.xlu0 %3085
        %v3087 = vmul.f32 %v3086, %v2549
        %v3088 = vadd.f32 %v3087, 1e-05
        %v3089 = vrsqrt.pop %v3088
        %v3090 = vmul.f32 %v3080, %v3089
        %v3091 = vmul.f32 %v3081, %v3089
        %v3092 = vmul.f32 %v3090, %v2566
        %v3093 = vmul.f32 %v3091, %v2570
        %v3094 = vadd.f32 %v3092, %v2576
        %v3095 = vadd.f32 %v3093, %v2580
        %3096 = vst [vmem:[%s578] sm:$0xff] %v3094
        %3097 = vst [vmem:[%s578 + $0x8] sm:$0xff] %v3095
        %s3098 = sand.u32 %s304, 1
        %s3099 = scalar_lea.sflag [#allocation6], %s3098
        %s3100 = sand.u32 %s304, 1
        %s3101 = smul.addr %s3100, 16
        %s3102 = scalar_lea.vmem [#allocation19], %s3101
        // Predicated region
        $region105: #{tpu_custom_call.1} parent=63 // pred_check
          %p3103 = pneg %p314
        $region106: #{tpu_custom_call.1} parent=63 // pred_check_branch
          %3105 = sbr.rel (%p3103) target = $region108
        $region107: #{tpu_custom_call.1} parent=63 // pred_region
          %s3107 = ssub.s32 256, 256
          %3108 = vsyncadd %s3099, %s3107
          %s3109 = smul.addr %s39, 2
          %s3110 = smul.addr %s38, 4
          %s3111 = sadd.s32 %s3109, %s3110
          %s3112 = smul.addr %s3111, 128
          %s3113 = scalar_lea.hbm %s11, %s3112
          %s3115 = sshll.u32 %s3102, 4
          %s3116 = int_to_ptr.vmem [resolvable:$true] %s3115
          %3118 = dma.vmem_to_hbm [thread:$0]  %s3116, 256, %s3113, %s3099
        $region108: #{tpu_custom_call.1} parent=63 // pred_fallthru
          _
      $region64: #{tpu_custom_call.1} parent=5 // pred_fallthru
        _
      %p3119 = scmp.le.s32.totalorder 2, %s29
      // Predicated region
      $region109: #{tpu_custom_call.1} parent=5 // pred_check
        %p3120 = pneg %p3119
      $region110: #{tpu_custom_call.1} parent=5 // pred_check_branch
        %3122 = sbr.rel (%p3120) target = $region112
      $region111: #{tpu_custom_call.1} parent=5 // pred_region
        %s3123 = ssub.s32 %s29, 2
        // Predicated region
        $region113: #{tpu_custom_call.1} parent=111 // pred_check
          %p3124 = pneg %p320
        $region114: #{tpu_custom_call.1} parent=111 // pred_check_branch
          %3126 = sbr.rel (%p3124) target = $region116
        $region115: #{tpu_custom_call.1} parent=111 // pred_region
          %s3127 = sand.u32 %s305, 1
          %s3128 = scalar_lea.sflag [#allocation6], %s3127
          %s3129 = sand.u32 %s305, 1
          %s3130 = smul.addr %s3129, 16
          %s3131 = scalar_lea.vmem [#allocation19], %s3130
          %3132 = dma.done %s3128, 256
        $region116: #{tpu_custom_call.1} parent=111 // pred_fallthru
          _
      $region112: #{tpu_custom_call.1} parent=5 // pred_fallthru
        _
    $region6: #{tpu_custom_call.1} parent=1 // loop_footer
      %s33 = sadd.s32 1, %s29
    $region7: #{tpu_custom_call.1} parent=1 // loop_footer_branch
      %28 = sbr.rel target = $region3
    $region8: #{tpu_custom_call.1} parent=1 // loop_exit
      _
    %3133 = vsyncpa [#allocation5], 1
    %s3134 = scalar_lea.sflag [#allocation5], 1
    %3135 = vsyncpa %s3134, 1
    %3136 = vsyncpa [#allocation8], 1
    %s3137 = scalar_lea.sflag [#allocation8], 1
    %3138 = vsyncpa %s3137, 1
    %3139 = vsyncpa [#allocation11], 1
    %3140 = vsyncpa [#allocation14], 1
    %3141 = vsyncpa [#allocation17], 1
    %3142 = vsyncpa [#allocation6], 1
    %s3143 = scalar_lea.sflag [#allocation6], 1
    %3144 = vsyncpa %s3143, 1

</llo_original>
